<compile_context>
chip_gen: v7x
topology: tpu7x:2x2x1
jax: 0.10.0
libtpu: 0.0.40
codegen_flags: <defaults>
</compile_context>

<pallas_src>
import math
import functools
import numpy as np
import jax
import jax.numpy as jnp
from jax import lax
from jax.experimental import pallas as pl
from jax.experimental.pallas import tpu as pltpu

CONFIG = {'cde_func_channels': 128, 'cde_func_depth': 3}


# ---------------------------------------------------------------------------
# Pallas kernel: the strictly-serial part of the Neural CDE forward.
#   z0 = initial(x0); 3/8-rule RK4 over the (precomputed) spline derivative;
#   pred = readout(z_T).   Grid = (batch_blocks, step_chunks).
# ---------------------------------------------------------------------------
def _neural_cde_kernel(steps_per_chunk, nsteps_total,
                       x0_ref, dx_ref,
                       wi_ref, bi_ref,
                       w1_ref, b1_ref, w2_ref, b2_ref, w3_ref, b3_ref,
                       w4_ref, b4_ref, t_ref, s_ref, wr_ref, br_ref,
                       out_ref, z_ref):
    f32 = jnp.float32
    bb = x0_ref.shape[0]
    width = w1_ref.shape[1]
    hc = w4_ref.shape[1]

    chunk = pl.program_id(1)
    nchunks = pl.num_programs(1)

    # z0 = initial(X.evaluate(X.interval[0])); X.evaluate(t0) == x[:, 0, :]
    @pl.when(chunk == 0)
    def _():
        z_ref[...] = (jnp.dot(x0_ref[...], wi_ref[...],
                              preferred_element_type=f32) + bi_ref[...])

    # Matmul-operand dtype for the big MLP weights (f32 or bf16); everything
    # else (tanh, RK4 combines, accumulation) stays f32.
    cdt = w1_ref.dtype

    # Hoist the small (one-vreg) bias broadcasts once; big weights are read
    # from VMEM next to each matmul (don't carry ~50 vregs across the loop).
    B1 = jnp.broadcast_to(b1_ref[...], (bb, width))
    B2 = jnp.broadcast_to(b2_ref[...], (bb, width))
    B3 = jnp.broadcast_to(b3_ref[...], (bb, width))
    B4 = jnp.broadcast_to(b4_ref[...], (bb, hc))

    def vector_field(y, stage):
        # dX/dt at this stage, already scaled by this step's dt.
        dx = dx_ref[stage]                                              # (bb, C_in)
        # Tile over hidden channels in-kernel: dxt[b, h*C+c] = dx[b, c].
        dxt = jnp.dot(dx, t_ref[...], preferred_element_type=f32)       # (bb, H*C_in)
        # CDEFunc: Linear(H,128)->Tanh -> [Linear(128,128)->Tanh] x2 -> Linear(128, H*C_in)
        h = jnp.tanh(jnp.dot(y.astype(cdt), w1_ref[...],
                             preferred_element_type=f32) + B1)
        h = jnp.tanh(jnp.dot(h.astype(cdt), w2_ref[...],
                             preferred_element_type=f32) + B2)
        h = jnp.tanh(jnp.dot(h.astype(cdt), w3_ref[...],
                             preferred_element_type=f32) + B3)
        v = jnp.dot(h.astype(cdt), w4_ref[...],
                    preferred_element_type=f32) + B4                    # (bb, H*C_in)
        # (f(z).view(B,H,C) @ dX)[b,h] = sum_c v[b, h*C+c]*dx[b,c]; S sums c per h.
        return jnp.dot(v * dxt, s_ref[...], preferred_element_type=f32)  # (bb, H)

    third = f32(1.0 / 3.0)

    def rk4_step(i, z):
        base = i * 4
        # dt is folded into dx, so these k's are dt*k of the plain 3/8-rule.
        k1 = vector_field(z, base)
        k2 = vector_field(z + third * k1, base + 1)
        k3 = vector_field(z + (k2 - third * k1), base + 2)
        k4 = vector_field(z + (k1 - k2 + k3), base + 3)
        # torchdiffeq fixed-grid 'rk4' solver uses the 3/8-rule (rk4_alt_step_func).
        return z + 0.125 * (k1 + 3.0 * (k2 + k3) + k4)

    # Ragged last chunk: skip the zero-padded (identity) steps entirely.
    steps_here = jnp.minimum(steps_per_chunk,
                             nsteps_total - chunk * steps_per_chunk)
    z_ref[...] = lax.fori_loop(0, steps_here, rk4_step, z_ref[...])

    @pl.when(chunk == nchunks - 1)
    def _():
        out_ref[...] = (jnp.dot(z_ref[...], wr_ref[...],
                                preferred_element_type=f32) + br_ref[...])


# ---------------------------------------------------------------------------
# Glue: spline coefficients (torchcde hermite w/ backward differences), RK4
# grid, and the per-stage spline derivative (batched, outside the kernel).
# ---------------------------------------------------------------------------
def hermite_coeffs_backward_diff(x):
    # torchcde.hermite_cubic_coefficients_with_backward_differences, t=arange(L)
    # (unit knot spacing, so every time-difference is 1).
    # TODO(synk): torchcde's NaN fill-forward of missing values is not
    # implemented; inputs are assumed dense.
    derivs = x[:, 1:, :] - x[:, :-1, :]
    derivs_prev = jnp.concatenate([derivs[:, :1], derivs[:, :-1]], axis=1)
    a = x[:, :-1, :]
    b = derivs_prev
    two_c = 2.0 * (3.0 * (derivs - b) - derivs + b)
    three_d = (derivs - b) - two_c
    return a, b, two_c, three_d


def rk4_time_grid(L, step_size=0.1):
    # torchdiffeq fixed-grid constructor + per-stage bucketize (right=False) of
    # the cubic-spline segment index / fractional offset.  Scalar bookkeeping.
    start, end = np.float32(0.0), np.float32(L - 1)
    niters = int(math.ceil(float(end - start) / step_size + 1))
    t_grid = (np.arange(niters, dtype=np.float32) * np.float32(step_size) + start).astype(np.float32)
    t_grid[-1] = end
    t0s, t1s = t_grid[:-1], t_grid[1:]
    dts = (t1s - t0s).astype(np.float32)
    stage_t = np.stack([t0s,
                        t0s + dts * np.float32(1.0 / 3.0),
                        t0s + dts * np.float32(2.0 / 3.0),
                        t1s], axis=1).astype(np.float32)                # (nsteps, 4)
    knots = np.arange(L, dtype=np.float32)
    bucket = np.searchsorted(knots, stage_t, side='left')               # == torch.bucketize
    idx = np.clip(bucket - 1, 0, L - 2).astype(np.int32)
    frac = (stage_t - knots[idx]).astype(np.float32)
    return dts, idx.reshape(-1), frac.reshape(-1)


def neural_cde_forward(x, params, step_size=0.1, steps_per_chunk=32,
                       batch_block=None, mlp_weights_dtype=jnp.float32):
    B, L, C_in = x.shape
    H = params['Wi'].shape[1]
    C_out = params['Wr'].shape[1]
    width = params['W1'].shape[1]
    HC = H * C_in

    a, b_spl, two_c, three_d = hermite_coeffs_backward_diff(x)
    x0 = a[:, 0, :]                                                     # X.evaluate(t0)

    dts, idx_flat, frac_flat = rk4_time_grid(L, step_size)
    nsteps = int(dts.shape[0])

    spc = max(1, min(int(steps_per_chunk), nsteps))
    nchunks = -(-nsteps // spc)
    nstages_pad = nchunks * spc * 4

    bb = B if batch_block is None else min(int(batch_block), B)
    if B % bb != 0 or (bb % 8 != 0 and bb != B):
        bb = B
    nb = B // bb

    idx = jnp.asarray(idx_flat)                                         # (4*nsteps,)
    frac = jnp.asarray(frac_flat)[None, :, None]                        # (1, 4*nsteps, 1)
    dt_s = jnp.asarray(np.repeat(dts, 4).astype(np.float32))[None, :, None]

    # Spline derivative at every RK4 stage with this step's dt folded in
    # (vector field is linear in dX, so the fold is exact).  Batched JAX.
    dX = (jnp.take(b_spl, idx, axis=1)
          + (jnp.take(two_c, idx, axis=1)
             + jnp.take(three_d, idx, axis=1) * frac) * frac) * dt_s    # (B, 4*nsteps, C_in)
    dX = jnp.transpose(dX, (1, 0, 2)).astype(jnp.float32)               # (4*nsteps, B, C_in)
    if nstages_pad > dX.shape[0]:
        # Pad the trajectory to whole chunks with zero-dX stages (exact identity
        # steps; the kernel also skips them via its per-chunk step bound).
        dX = jnp.concatenate(
            [dX, jnp.zeros((nstages_pad - dX.shape[0], B, C_in), jnp.float32)],
            axis=0)

    # Constant 0/1 matrices (tiny):
    #   T tiles dX over hidden channels: dxt[b, h*C_in + c] = dX[b, c]
    #   S sums input channels per hidden unit: out[b, h] = sum_c w[b, h*C_in + c]
    j = np.arange(HC)
    T = jnp.asarray((np.arange(C_in)[:, None] == (j[None, :] % C_in)).astype(np.float32))
    S = jnp.asarray(((j[:, None] // C_in) == np.arange(H)[None, :]).astype(np.float32))

    wdt = mlp_weights_dtype
    inputs = (x0, dX,
              params['Wi'], params['Bi'],
              params['W1'].astype(wdt), params['B1'],
              params['W2'].astype(wdt), params['B2'],
              params['W3'].astype(wdt), params['B3'],
              params['W4'].astype(wdt), params['B4'],
              T, S, params['Wr'], params['Br'])

    def const_spec(arr):
        nd = arr.ndim
        return pl.BlockSpec(arr.shape, lambda b, c, _nd=nd: (0,) * _nd)

    in_specs = (
        [pl.BlockSpec((bb, C_in), lambda b, c: (b, 0)),                  # x0
         pl.BlockSpec((4 * spc, bb, C_in), lambda b, c: (c, b, 0))]      # dX chunk
        + [const_spec(arr) for arr in inputs[2:]]
    )
    out_specs = pl.BlockSpec((bb, C_out), lambda b, c: (b, 0))

    kernel = functools.partial(_neural_cde_kernel, spc, nsteps)

    flops = int(nsteps * 4 * 2 * B * (C_in * HC + H * width + 2 * width * width
                                      + width * HC + HC * H)
                + 2 * B * (C_in * H + H * C_out))
    transcendentals = int(nsteps * 4 * 3 * B * width)
    bytes_accessed = int(sum(int(np.prod(t.shape)) * t.dtype.itemsize for t in inputs)
                         + B * C_out * 4)

    return pl.pallas_call(
        kernel,
        out_shape=jax.ShapeDtypeStruct((B, C_out), jnp.float32),
        grid=(nb, nchunks),
        in_specs=in_specs,
        out_specs=out_specs,
        scratch_shapes=[pltpu.VMEM((bb, H), jnp.float32)],               # carried z
        compiler_params=pltpu.CompilerParams(
            dimension_semantics=("parallel", "arbitrary")),
        cost_estimate=pl.CostEstimate(flops=flops,
                                      transcendentals=transcendentals,
                                      bytes_accessed=bytes_accessed),
    )(*inputs)


# ---------------------------------------------------------------------------
# Deterministic parameter init (PyTorch nn.Linear default: U(-1/sqrt(fan_in), +))
# ---------------------------------------------------------------------------
def init_params(key, C_in, H, C_out, width):
    def linear(k, fi, fo):
        kw, kb = jax.random.split(k)
        bound = 1.0 / math.sqrt(fi)
        W = jax.random.uniform(kw, (fi, fo), jnp.float32, -bound, bound)
        b = jax.random.uniform(kb, (1, fo), jnp.float32, -bound, bound)
        return W, b

    keys = jax.random.split(key, 6)
    Wi, Bi = linear(keys[0], C_in, H)
    W1, B1 = linear(keys[1], H, width)
    W2, B2 = linear(keys[2], width, width)
    W3, B3 = linear(keys[3], width, width)
    W4, B4 = linear(keys[4], width, C_in * H)
    Wr, Br = linear(keys[5], H, C_out)
    return dict(Wi=Wi, Bi=Bi, W1=W1, B1=B1, W2=W2, B2=B2, W3=W3, B3=B3,
                W4=W4, B4=B4, Wr=Wr, Br=Br)


# ---------------------------------------------------------------------------
# Pure numpy (float64) reference — mirrors the module semantics exactly
# ---------------------------------------------------------------------------
def reference_forward(x, params, L, step_size=0.1):
    p = {k: np.asarray(v, dtype=np.float64) for k, v in params.items()}
    xn = np.asarray(x, dtype=np.float64)
    B, _, C_in = xn.shape
    H = p['Wi'].shape[1]
    derivs = xn[:, 1:] - xn[:, :-1]
    derivs_prev = np.concatenate([derivs[:, :1], derivs[:, :-1]], axis=1)
    b = derivs_prev
    two_c = 2.0 * (3.0 * (derivs - b) - derivs + b)
    three_d = (derivs - b) - two_c
    dts, idx_flat, frac_flat = rk4_time_grid(L, step_size)

    def dxdt(k):
        i = int(idx_flat[k]); fr = float(frac_flat[k])
        return b[:, i] + (two_c[:, i] + three_d[:, i] * fr) * fr

    def g(z, k):
        h = np.tanh(z @ p['W1'] + p['B1'])
        h = np.tanh(h @ p['W2'] + p['B2'])
        h = np.tanh(h @ p['W3'] + p['B3'])
        v = (h @ p['W4'] + p['B4']).reshape(B, H, C_in)     # .view(-1, hidden, input)
        return np.einsum('bhc,bc->bh', v, dxdt(k))

    z = xn[:, 0] @ p['Wi'] + p['Bi']
    for s in range(dts.shape[0]):
        dt = float(dts[s]); base = 4 * s
        k1 = g(z, base + 0)
        k2 = g(z + dt * k1 / 3.0, base + 1)
        k3 = g(z + dt * (k2 - k1 / 3.0), base + 2)
        k4 = g(z + dt * (k1 - k2 + k3), base + 3)
        z = z + dt * 0.125 * (k1 + 3.0 * (k2 + k3) + k4)
    return z @ p['Wr'] + p['Br']


if __name__ == "__main__":
    B, L, C_in, H, C_out = 16, 8, 4, 32, 4
    width = CONFIG['cde_func_channels']
    key = jax.random.PRNGKey(0)
    kx, kp = jax.random.split(key)
    x = jax.random.normal(kx, (B, L, C_in), dtype=jnp.float32)
    params = init_params(kp, C_in, H, C_out, width)

    out = neural_cde_forward(x, params, step_size=0.1,
                             steps_per_chunk=32, batch_block=8)
    out = jax.block_until_ready(out)

    ref = reference_forward(np.asarray(x), params, L, step_size=0.1)
    if not np.allclose(np.asarray(out), ref, rtol=5e-2, atol=5e-2):
        raise AssertionError("Pallas NeuralCDE output does not match reference")
    print("KERNEL_OK")
</pallas_src>

<mosaic_0001>
module attributes {stable_mosaic.version = 11 : i64} {
  func.func @_neural_cde_kernel(%arg0: i32, %arg1: i32, %arg2: memref<8x4xf32, #tpu.memory_space<vmem>>, %arg3: memref<128x8x4xf32, #tpu.memory_space<vmem>>, %arg4: memref<4x32xf32, #tpu.memory_space<vmem>>, %arg5: memref<1x32xf32, #tpu.memory_space<vmem>>, %arg6: memref<32x128xf32, #tpu.memory_space<vmem>>, %arg7: memref<1x128xf32, #tpu.memory_space<vmem>>, %arg8: memref<128x128xf32, #tpu.memory_space<vmem>>, %arg9: memref<1x128xf32, #tpu.memory_space<vmem>>, %arg10: memref<128x128xf32, #tpu.memory_space<vmem>>, %arg11: memref<1x128xf32, #tpu.memory_space<vmem>>, %arg12: memref<128x128xf32, #tpu.memory_space<vmem>>, %arg13: memref<1x128xf32, #tpu.memory_space<vmem>>, %arg14: memref<4x128xf32, #tpu.memory_space<vmem>>, %arg15: memref<128x32xf32, #tpu.memory_space<vmem>>, %arg16: memref<32x4xf32, #tpu.memory_space<vmem>>, %arg17: memref<1x4xf32, #tpu.memory_space<vmem>>, %arg18: memref<8x4xf32, #tpu.memory_space<vmem>>, %arg19: memref<8x32xf32, #tpu.memory_space<vmem>>) attributes {dimension_semantics = [#tpu.dimension_semantics<parallel>, #tpu.dimension_semantics<arbitrary>], iteration_bounds = array<i64: 2, 3>, scalar_prefetch = 0 : i64, scratch_operands = 1 : i64, tpu.core_type = #tpu.core_type<tc>, window_params = [{transform_indices = @transform_0, window_bounds = array<i64: 8, 4>}, {transform_indices = @transform_1, window_bounds = array<i64: 128, 8, 4>}, {pipeline_mode = #tpu.pipeline_mode<synchronous>, transform_indices = @transform_2, window_bounds = array<i64: 4, 32>}, {pipeline_mode = #tpu.pipeline_mode<synchronous>, transform_indices = @transform_3, window_bounds = array<i64: 1, 32>}, {pipeline_mode = #tpu.pipeline_mode<synchronous>, transform_indices = @transform_4, window_bounds = array<i64: 32, 128>}, {pipeline_mode = #tpu.pipeline_mode<synchronous>, transform_indices = @transform_5, window_bounds = array<i64: 1, 128>}, {pipeline_mode = #tpu.pipeline_mode<synchronous>, transform_indices = @transform_6, window_bounds = array<i64: 128, 128>}, {pipeline_mode = #tpu.pipeline_mode<synchronous>, transform_indices = @transform_7, window_bounds = array<i64: 1, 128>}, {pipeline_mode = #tpu.pipeline_mode<synchronous>, transform_indices = @transform_8, window_bounds = array<i64: 128, 128>}, {pipeline_mode = #tpu.pipeline_mode<synchronous>, transform_indices = @transform_9, window_bounds = array<i64: 1, 128>}, {pipeline_mode = #tpu.pipeline_mode<synchronous>, transform_indices = @transform_10, window_bounds = array<i64: 128, 128>}, {pipeline_mode = #tpu.pipeline_mode<synchronous>, transform_indices = @transform_11, window_bounds = array<i64: 1, 128>}, {pipeline_mode = #tpu.pipeline_mode<synchronous>, transform_indices = @transform_12, window_bounds = array<i64: 4, 128>}, {pipeline_mode = #tpu.pipeline_mode<synchronous>, transform_indices = @transform_13, window_bounds = array<i64: 128, 32>}, {pipeline_mode = #tpu.pipeline_mode<synchronous>, transform_indices = @transform_14, window_bounds = array<i64: 32, 4>}, {pipeline_mode = #tpu.pipeline_mode<synchronous>, transform_indices = @transform_15, window_bounds = array<i64: 1, 4>}, {transform_indices = @transform_16, window_bounds = array<i64: 8, 4>}]} {
    %c0_i32 = arith.constant 0 : i32
    %0 = arith.cmpi eq, %arg1, %c0_i32 : i32
    %1 = arith.extui %0 : i1 to i32
    %c0_i32_0 = arith.constant 0 : i32
    %2 = arith.cmpi ne, %1, %c0_i32_0 : i32
    scf.if %2 {
      %c0_15 = arith.constant 0 : index
      %c0_16 = arith.constant 0 : index
      %26 = vector.load %arg2[%c0_15, %c0_16] : memref<8x4xf32, #tpu.memory_space<vmem>>, vector<8x4xf32>
      %c0_17 = arith.constant 0 : index
      %c0_18 = arith.constant 0 : index
      %27 = vector.load %arg4[%c0_17, %c0_18] : memref<4x32xf32, #tpu.memory_space<vmem>>, vector<4x32xf32>
      %cst_19 = arith.constant dense<0.000000e+00> : vector<8x32xf32>
      %28 = tpu.matmul %26, %27, %cst_19 {dimension_numbers = #tpu.dot_dimension_numbers<[1], [0], [0], [1], [0, 0, 1, 1], [], []>} : vector<8x4xf32>, vector<4x32xf32>, vector<8x32xf32> -> vector<8x32xf32>
      %c0_20 = arith.constant 0 : index
      %c0_21 = arith.constant 0 : index
      %29 = vector.load %arg5[%c0_20, %c0_21] : memref<1x32xf32, #tpu.memory_space<vmem>>, vector<1x32xf32>
      %30 = vector.broadcast %29 : vector<1x32xf32> to vector<8x32xf32>
      %31 = arith.addf %28, %30 : vector<8x32xf32>
      %c0_22 = arith.constant 0 : index
      %c0_23 = arith.constant 0 : index
      %32 = vector.load %arg19[%c0_22, %c0_23] : memref<8x32xf32, #tpu.memory_space<vmem>>, vector<8x32xf32>
      tpu.vector_store %arg19[%c0_22, %c0_23], %31 {strides = array<i32>} : memref<8x32xf32, #tpu.memory_space<vmem>>, vector<8x32xf32>,
    } else {
    }
    %c0 = arith.constant 0 : index
    %c0_1 = arith.constant 0 : index
    %3 = vector.load %arg7[%c0, %c0_1] : memref<1x128xf32, #tpu.memory_space<vmem>>, vector<1x128xf32>
    %4 = vector.shape_cast %3 : vector<1x128xf32> to vector<1x128xf32>
    %5 = vector.broadcast %4 : vector<1x128xf32> to vector<8x128xf32>
    %c0_2 = arith.constant 0 : index
    %c0_3 = arith.constant 0 : index
    %6 = vector.load %arg9[%c0_2, %c0_3] : memref<1x128xf32, #tpu.memory_space<vmem>>, vector<1x128xf32>
    %7 = vector.shape_cast %6 : vector<1x128xf32> to vector<1x128xf32>
    %8 = vector.broadcast %7 : vector<1x128xf32> to vector<8x128xf32>
    %c0_4 = arith.constant 0 : index
    %c0_5 = arith.constant 0 : index
    %9 = vector.load %arg11[%c0_4, %c0_5] : memref<1x128xf32, #tpu.memory_space<vmem>>, vector<1x128xf32>
    %10 = vector.shape_cast %9 : vector<1x128xf32> to vector<1x128xf32>
    %11 = vector.broadcast %10 : vector<1x128xf32> to vector<8x128xf32>
    %c0_6 = arith.constant 0 : index
    %c0_7 = arith.constant 0 : index
    %12 = vector.load %arg13[%c0_6, %c0_7] : memref<1x128xf32, #tpu.memory_space<vmem>>, vector<1x128xf32>
    %13 = vector.shape_cast %12 : vector<1x128xf32> to vector<1x128xf32>
    %14 = vector.broadcast %13 : vector<1x128xf32> to vector<8x128xf32>
    %c32_i32 = arith.constant 32 : i32
    %15 = arith.muli %arg1, %c32_i32 : i32
    %c70_i32 = arith.constant 70 : i32
    %16 = arith.subi %c70_i32, %15 : i32
    %c32_i32_8 = arith.constant 32 : i32
    %17 = arith.minsi %c32_i32_8, %16 : i32
    %c0_9 = arith.constant 0 : index
    %c0_10 = arith.constant 0 : index
    %18 = vector.load %arg19[%c0_9, %c0_10] : memref<8x32xf32, #tpu.memory_space<vmem>>, vector<8x32xf32>
    %cst = arith.constant 0.333333343 : f32
    %c0_i32_11 = arith.constant 0 : i32
    %19 = arith.subi %17, %c0_i32_11 : i32
    %20 = arith.addi %c0_i32_11, %19 : i32
    %c1_i32 = arith.constant 1 : i32
    %21 = scf.for %arg20 = %c0_i32_11 to %20 step %c1_i32 iter_args(%arg21 = %18) -> (vector<8x32xf32>)  : i32 {
      %c4_i32 = arith.constant 4 : i32
      %26 = arith.muli %arg20, %c4_i32 : i32
      %27 = arith.index_cast %26 : i32 to index
      %c0_15 = arith.constant 0 : index
      %c0_16 = arith.constant 0 : index
      %28 = vector.load %arg3[%27, %c0_15, %c0_16] : memref<128x8x4xf32, #tpu.memory_space<vmem>>, vector<1x8x4xf32>
      %29 = vector.shape_cast %28 : vector<1x8x4xf32> to vector<8x4xf32>
      %c0_17 = arith.constant 0 : index
      %c0_18 = arith.constant 0 : index
      %30 = vector.load %arg14[%c0_17, %c0_18] : memref<4x128xf32, #tpu.memory_space<vmem>>, vector<4x128xf32>
      %cst_19 = arith.constant dense<0.000000e+00> : vector<8x128xf32>
      %31 = tpu.matmul %29, %30, %cst_19 {dimension_numbers = #tpu.dot_dimension_numbers<[1], [0], [0], [1], [0, 0, 1, 1], [], []>} : vector<8x4xf32>, vector<4x128xf32>, vector<8x128xf32> -> vector<8x128xf32>
      %c0_20 = arith.constant 0 : index
      %c0_21 = arith.constant 0 : index
      %32 = vector.load %arg6[%c0_20, %c0_21] : memref<32x128xf32, #tpu.memory_space<vmem>>, vector<32x128xf32>
      %cst_22 = arith.constant dense<0.000000e+00> : vector<8x128xf32>
      %33 = tpu.matmul %arg21, %32, %cst_22 {dimension_numbers = #tpu.dot_dimension_numbers<[1], [0], [0], [1], [0, 0, 1, 1], [], []>} : vector<8x32xf32>, vector<32x128xf32>, vector<8x128xf32> -> vector<8x128xf32>
      %34 = arith.addf %33, %5 : vector<8x128xf32>
      %35 = math.tanh %34 : vector<8x128xf32>
      %c0_23 = arith.constant 0 : index
      %c0_24 = arith.constant 0 : index
      %36 = vector.load %arg8[%c0_23, %c0_24] : memref<128x128xf32, #tpu.memory_space<vmem>>, vector<128x128xf32>
      %cst_25 = arith.constant dense<0.000000e+00> : vector<8x128xf32>
      %37 = tpu.matmul %35, %36, %cst_25 {dimension_numbers = #tpu.dot_dimension_numbers<[1], [0], [0], [1], [0, 0, 1, 1], [], []>} : vector<8x128xf32>, vector<128x128xf32>, vector<8x128xf32> -> vector<8x128xf32>
      %38 = arith.addf %37, %8 : vector<8x128xf32>
      %39 = math.tanh %38 : vector<8x128xf32>
      %c0_26 = arith.constant 0 : index
      %c0_27 = arith.constant 0 : index
      %40 = vector.load %arg10[%c0_26, %c0_27] : memref<128x128xf32, #tpu.memory_space<vmem>>, vector<128x128xf32>
      %cst_28 = arith.constant dense<0.000000e+00> : vector<8x128xf32>
      %41 = tpu.matmul %39, %40, %cst_28 {dimension_numbers = #tpu.dot_dimension_numbers<[1], [0], [0], [1], [0, 0, 1, 1], [], []>} : vector<8x128xf32>, vector<128x128xf32>, vector<8x128xf32> -> vector<8x128xf32>
      %42 = arith.addf %41, %11 : vector<8x128xf32>
      %43 = math.tanh %42 : vector<8x128xf32>
      %c0_29 = arith.constant 0 : index
      %c0_30 = arith.constant 0 : index
      %44 = vector.load %arg12[%c0_29, %c0_30] : memref<128x128xf32, #tpu.memory_space<vmem>>, vector<128x128xf32>
      %cst_31 = arith.constant dense<0.000000e+00> : vector<8x128xf32>
      %45 = tpu.matmul %43, %44, %cst_31 {dimension_numbers = #tpu.dot_dimension_numbers<[1], [0], [0], [1], [0, 0, 1, 1], [], []>} : vector<8x128xf32>, vector<128x128xf32>, vector<8x128xf32> -> vector<8x128xf32>
      %46 = arith.addf %45, %14 : vector<8x128xf32>
      %47 = arith.mulf %46, %31 : vector<8x128xf32>
      %c0_32 = arith.constant 0 : index
      %c0_33 = arith.constant 0 : index
      %48 = vector.load %arg15[%c0_32, %c0_33] : memref<128x32xf32, #tpu.memory_space<vmem>>, vector<128x32xf32>
      %cst_34 = arith.constant dense<0.000000e+00> : vector<8x32xf32>
      %49 = tpu.matmul %47, %48, %cst_34 {dimension_numbers = #tpu.dot_dimension_numbers<[1], [0], [0], [1], [0, 0, 1, 1], [], []>} : vector<8x128xf32>, vector<128x32xf32>, vector<8x32xf32> -> vector<8x32xf32>
      %50 = vector.broadcast %cst : f32 to vector<8x32xf32>
      %51 = arith.mulf %50, %49 : vector<8x32xf32>
      %52 = arith.addf %arg21, %51 : vector<8x32xf32>
      %c1_i32_35 = arith.constant 1 : i32
      %53 = arith.addi %26, %c1_i32_35 : i32
      %54 = arith.index_cast %53 : i32 to index
      %c0_36 = arith.constant 0 : index
      %c0_37 = arith.constant 0 : index
      %55 = vector.load %arg3[%54, %c0_36, %c0_37] : memref<128x8x4xf32, #tpu.memory_space<vmem>>, vector<1x8x4xf32>
      %56 = vector.shape_cast %55 : vector<1x8x4xf32> to vector<8x4xf32>
      %c0_38 = arith.constant 0 : index
      %c0_39 = arith.constant 0 : index
      %57 = vector.load %arg14[%c0_38, %c0_39] : memref<4x128xf32, #tpu.memory_space<vmem>>, vector<4x128xf32>
      %cst_40 = arith.constant dense<0.000000e+00> : vector<8x128xf32>
      %58 = tpu.matmul %56, %57, %cst_40 {dimension_numbers = #tpu.dot_dimension_numbers<[1], [0], [0], [1], [0, 0, 1, 1], [], []>} : vector<8x4xf32>, vector<4x128xf32>, vector<8x128xf32> -> vector<8x128xf32>
      %c0_41 = arith.constant 0 : index
      %c0_42 = arith.constant 0 : index
      %59 = vector.load %arg6[%c0_41, %c0_42] : memref<32x128xf32, #tpu.memory_space<vmem>>, vector<32x128xf32>
      %cst_43 = arith.constant dense<0.000000e+00> : vector<8x128xf32>
      %60 = tpu.matmul %52, %59, %cst_43 {dimension_numbers = #tpu.dot_dimension_numbers<[1], [0], [0], [1], [0, 0, 1, 1], [], []>} : vector<8x32xf32>, vector<32x128xf32>, vector<8x128xf32> -> vector<8x128xf32>
      %61 = arith.addf %60, %5 : vector<8x128xf32>
      %62 = math.tanh %61 : vector<8x128xf32>
      %c0_44 = arith.constant 0 : index
      %c0_45 = arith.constant 0 : index
      %63 = vector.load %arg8[%c0_44, %c0_45] : memref<128x128xf32, #tpu.memory_space<vmem>>, vector<128x128xf32>
      %cst_46 = arith.constant dense<0.000000e+00> : vector<8x128xf32>
      %64 = tpu.matmul %62, %63, %cst_46 {dimension_numbers = #tpu.dot_dimension_numbers<[1], [0], [0], [1], [0, 0, 1, 1], [], []>} : vector<8x128xf32>, vector<128x128xf32>, vector<8x128xf32> -> vector<8x128xf32>
      %65 = arith.addf %64, %8 : vector<8x128xf32>
      %66 = math.tanh %65 : vector<8x128xf32>
      %c0_47 = arith.constant 0 : index
      %c0_48 = arith.constant 0 : index
      %67 = vector.load %arg10[%c0_47, %c0_48] : memref<128x128xf32, #tpu.memory_space<vmem>>, vector<128x128xf32>
      %cst_49 = arith.constant dense<0.000000e+00> : vector<8x128xf32>
      %68 = tpu.matmul %66, %67, %cst_49 {dimension_numbers = #tpu.dot_dimension_numbers<[1], [0], [0], [1], [0, 0, 1, 1], [], []>} : vector<8x128xf32>, vector<128x128xf32>, vector<8x128xf32> -> vector<8x128xf32>
      %69 = arith.addf %68, %11 : vector<8x128xf32>
      %70 = math.tanh %69 : vector<8x128xf32>
      %c0_50 = arith.constant 0 : index
      %c0_51 = arith.constant 0 : index
      %71 = vector.load %arg12[%c0_50, %c0_51] : memref<128x128xf32, #tpu.memory_space<vmem>>, vector<128x128xf32>
      %cst_52 = arith.constant dense<0.000000e+00> : vector<8x128xf32>
      %72 = tpu.matmul %70, %71, %cst_52 {dimension_numbers = #tpu.dot_dimension_numbers<[1], [0], [0], [1], [0, 0, 1, 1], [], []>} : vector<8x128xf32>, vector<128x128xf32>, vector<8x128xf32> -> vector<8x128xf32>
      %73 = arith.addf %72, %14 : vector<8x128xf32>
      %74 = arith.mulf %73, %58 : vector<8x128xf32>
      %c0_53 = arith.constant 0 : index
      %c0_54 = arith.constant 0 : index
      %75 = vector.load %arg15[%c0_53, %c0_54] : memref<128x32xf32, #tpu.memory_space<vmem>>, vector<128x32xf32>
      %cst_55 = arith.constant dense<0.000000e+00> : vector<8x32xf32>
      %76 = tpu.matmul %74, %75, %cst_55 {dimension_numbers = #tpu.dot_dimension_numbers<[1], [0], [0], [1], [0, 0, 1, 1], [], []>} : vector<8x128xf32>, vector<128x32xf32>, vector<8x32xf32> -> vector<8x32xf32>
      %77 = vector.broadcast %cst : f32 to vector<8x32xf32>
      %78 = arith.mulf %77, %49 : vector<8x32xf32>
      %79 = arith.subf %76, %78 : vector<8x32xf32>
      %80 = arith.addf %arg21, %79 : vector<8x32xf32>
      %c2_i32_56 = arith.constant 2 : i32
      %81 = arith.addi %26, %c2_i32_56 : i32
      %82 = arith.index_cast %81 : i32 to index
      %c0_57 = arith.constant 0 : index
      %c0_58 = arith.constant 0 : index
      %83 = vector.load %arg3[%82, %c0_57, %c0_58] : memref<128x8x4xf32, #tpu.memory_space<vmem>>, vector<1x8x4xf32>
      %84 = vector.shape_cast %83 : vector<1x8x4xf32> to vector<8x4xf32>
      %c0_59 = arith.constant 0 : index
      %c0_60 = arith.constant 0 : index
      %85 = vector.load %arg14[%c0_59, %c0_60] : memref<4x128xf32, #tpu.memory_space<vmem>>, vector<4x128xf32>
      %cst_61 = arith.constant dense<0.000000e+00> : vector<8x128xf32>
      %86 = tpu.matmul %84, %85, %cst_61 {dimension_numbers = #tpu.dot_dimension_numbers<[1], [0], [0], [1], [0, 0, 1, 1], [], []>} : vector<8x4xf32>, vector<4x128xf32>, vector<8x128xf32> -> vector<8x128xf32>
      %c0_62 = arith.constant 0 : index
      %c0_63 = arith.constant 0 : index
      %87 = vector.load %arg6[%c0_62, %c0_63] : memref<32x128xf32, #tpu.memory_space<vmem>>, vector<32x128xf32>
      %cst_64 = arith.constant dense<0.000000e+00> : vector<8x128xf32>
      %88 = tpu.matmul %80, %87, %cst_64 {dimension_numbers = #tpu.dot_dimension_numbers<[1], [0], [0], [1], [0, 0, 1, 1], [], []>} : vector<8x32xf32>, vector<32x128xf32>, vector<8x128xf32> -> vector<8x128xf32>
      %89 = arith.addf %88, %5 : vector<8x128xf32>
      %90 = math.tanh %89 : vector<8x128xf32>
      %c0_65 = arith.constant 0 : index
      %c0_66 = arith.constant 0 : index
      %91 = vector.load %arg8[%c0_65, %c0_66] : memref<128x128xf32, #tpu.memory_space<vmem>>, vector<128x128xf32>
      %cst_67 = arith.constant dense<0.000000e+00> : vector<8x128xf32>
      %92 = tpu.matmul %90, %91, %cst_67 {dimension_numbers = #tpu.dot_dimension_numbers<[1], [0], [0], [1], [0, 0, 1, 1], [], []>} : vector<8x128xf32>, vector<128x128xf32>, vector<8x128xf32> -> vector<8x128xf32>
      %93 = arith.addf %92, %8 : vector<8x128xf32>
      %94 = math.tanh %93 : vector<8x128xf32>
      %c0_68 = arith.constant 0 : index
      %c0_69 = arith.constant 0 : index
      %95 = vector.load %arg10[%c0_68, %c0_69] : memref<128x128xf32, #tpu.memory_space<vmem>>, vector<128x128xf32>
      %cst_70 = arith.constant dense<0.000000e+00> : vector<8x128xf32>
      %96 = tpu.matmul %94, %95, %cst_70 {dimension_numbers = #tpu.dot_dimension_numbers<[1], [0], [0], [1], [0, 0, 1, 1], [], []>} : vector<8x128xf32>, vector<128x128xf32>, vector<8x128xf32> -> vector<8x128xf32>
      %97 = arith.addf %96, %11 : vector<8x128xf32>
      %98 = math.tanh %97 : vector<8x128xf32>
      %c0_71 = arith.constant 0 : index
      %c0_72 = arith.constant 0 : index
      %99 = vector.load %arg12[%c0_71, %c0_72] : memref<128x128xf32, #tpu.memory_space<vmem>>, vector<128x128xf32>
      %cst_73 = arith.constant dense<0.000000e+00> : vector<8x128xf32>
      %100 = tpu.matmul %98, %99, %cst_73 {dimension_numbers = #tpu.dot_dimension_numbers<[1], [0], [0], [1], [0, 0, 1, 1], [], []>} : vector<8x128xf32>, vector<128x128xf32>, vector<8x128xf32> -> vector<8x128xf32>
      %101 = arith.addf %100, %14 : vector<8x128xf32>
      %102 = arith.mulf %101, %86 : vector<8x128xf32>
      %c0_74 = arith.constant 0 : index
      %c0_75 = arith.constant 0 : index
      %103 = vector.load %arg15[%c0_74, %c0_75] : memref<128x32xf32, #tpu.memory_space<vmem>>, vector<128x32xf32>
      %cst_76 = arith.constant dense<0.000000e+00> : vector<8x32xf32>
      %104 = tpu.matmul %102, %103, %cst_76 {dimension_numbers = #tpu.dot_dimension_numbers<[1], [0], [0], [1], [0, 0, 1, 1], [], []>} : vector<8x128xf32>, vector<128x32xf32>, vector<8x32xf32> -> vector<8x32xf32>
      %105 = arith.subf %49, %76 : vector<8x32xf32>
      %106 = arith.addf %105, %104 : vector<8x32xf32>
      %107 = arith.addf %arg21, %106 : vector<8x32xf32>
      %c3_i32 = arith.constant 3 : i32
      %108 = arith.addi %26, %c3_i32 : i32
      %109 = arith.index_cast %108 : i32 to index
      %c0_77 = arith.constant 0 : index
      %c0_78 = arith.constant 0 : index
      %110 = vector.load %arg3[%109, %c0_77, %c0_78] : memref<128x8x4xf32, #tpu.memory_space<vmem>>, vector<1x8x4xf32>
      %111 = vector.shape_cast %110 : vector<1x8x4xf32> to vector<8x4xf32>
      %c0_79 = arith.constant 0 : index
      %c0_80 = arith.constant 0 : index
      %112 = vector.load %arg14[%c0_79, %c0_80] : memref<4x128xf32, #tpu.memory_space<vmem>>, vector<4x128xf32>
      %cst_81 = arith.constant dense<0.000000e+00> : vector<8x128xf32>
      %113 = tpu.matmul %111, %112, %cst_81 {dimension_numbers = #tpu.dot_dimension_numbers<[1], [0], [0], [1], [0, 0, 1, 1], [], []>} : vector<8x4xf32>, vector<4x128xf32>, vector<8x128xf32> -> vector<8x128xf32>
      %c0_82 = arith.constant 0 : index
      %c0_83 = arith.constant 0 : index
      %114 = vector.load %arg6[%c0_82, %c0_83] : memref<32x128xf32, #tpu.memory_space<vmem>>, vector<32x128xf32>
      %cst_84 = arith.constant dense<0.000000e+00> : vector<8x128xf32>
      %115 = tpu.matmul %107, %114, %cst_84 {dimension_numbers = #tpu.dot_dimension_numbers<[1], [0], [0], [1], [0, 0, 1, 1], [], []>} : vector<8x32xf32>, vector<32x128xf32>, vector<8x128xf32> -> vector<8x128xf32>
      %116 = arith.addf %115, %5 : vector<8x128xf32>
      %117 = math.tanh %116 : vector<8x128xf32>
      %c0_85 = arith.constant 0 : index
      %c0_86 = arith.constant 0 : index
      %118 = vector.load %arg8[%c0_85, %c0_86] : memref<128x128xf32, #tpu.memory_space<vmem>>, vector<128x128xf32>
      %cst_87 = arith.constant dense<0.000000e+00> : vector<8x128xf32>
      %119 = tpu.matmul %117, %118, %cst_87 {dimension_numbers = #tpu.dot_dimension_numbers<[1], [0], [0], [1], [0, 0, 1, 1], [], []>} : vector<8x128xf32>, vector<128x128xf32>, vector<8x128xf32> -> vector<8x128xf32>
      %120 = arith.addf %119, %8 : vector<8x128xf32>
      %121 = math.tanh %120 : vector<8x128xf32>
      %c0_88 = arith.constant 0 : index
      %c0_89 = arith.constant 0 : index
      %122 = vector.load %arg10[%c0_88, %c0_89] : memref<128x128xf32, #tpu.memory_space<vmem>>, vector<128x128xf32>
      %cst_90 = arith.constant dense<0.000000e+00> : vector<8x128xf32>
      %123 = tpu.matmul %121, %122, %cst_90 {dimension_numbers = #tpu.dot_dimension_numbers<[1], [0], [0], [1], [0, 0, 1, 1], [], []>} : vector<8x128xf32>, vector<128x128xf32>, vector<8x128xf32> -> vector<8x128xf32>
      %124 = arith.addf %123, %11 : vector<8x128xf32>
      %125 = math.tanh %124 : vector<8x128xf32>
      %c0_91 = arith.constant 0 : index
      %c0_92 = arith.constant 0 : index
      %126 = vector.load %arg12[%c0_91, %c0_92] : memref<128x128xf32, #tpu.memory_space<vmem>>, vector<128x128xf32>
      %cst_93 = arith.constant dense<0.000000e+00> : vector<8x128xf32>
      %127 = tpu.matmul %125, %126, %cst_93 {dimension_numbers = #tpu.dot_dimension_numbers<[1], [0], [0], [1], [0, 0, 1, 1], [], []>} : vector<8x128xf32>, vector<128x128xf32>, vector<8x128xf32> -> vector<8x128xf32>
      %128 = arith.addf %127, %14 : vector<8x128xf32>
      %129 = arith.mulf %128, %113 : vector<8x128xf32>
      %c0_94 = arith.constant 0 : index
      %c0_95 = arith.constant 0 : index
      %130 = vector.load %arg15[%c0_94, %c0_95] : memref<128x32xf32, #tpu.memory_space<vmem>>, vector<128x32xf32>
      %cst_96 = arith.constant dense<0.000000e+00> : vector<8x32xf32>
      %131 = tpu.matmul %129, %130, %cst_96 {dimension_numbers = #tpu.dot_dimension_numbers<[1], [0], [0], [1], [0, 0, 1, 1], [], []>} : vector<8x128xf32>, vector<128x32xf32>, vector<8x32xf32> -> vector<8x32xf32>
      %132 = arith.addf %76, %104 : vector<8x32xf32>
      %cst_97 = arith.constant 3.000000e+00 : f32
      %133 = vector.broadcast %cst_97 : f32 to vector<8x32xf32>
      %134 = arith.mulf %133, %132 : vector<8x32xf32>
      %135 = arith.addf %49, %134 : vector<8x32xf32>
      %136 = arith.addf %135, %131 : vector<8x32xf32>
      %cst_98 = arith.constant 1.250000e-01 : f32
      %137 = vector.broadcast %cst_98 : f32 to vector<8x32xf32>
      %138 = arith.mulf %137, %136 : vector<8x32xf32>
      %139 = arith.addf %arg21, %138 : vector<8x32xf32>
      scf.yield %139 : vector<8x32xf32>
    }
    %c0_12 = arith.constant 0 : index
    %c0_13 = arith.constant 0 : index
    %22 = vector.load %arg19[%c0_12, %c0_13] : memref<8x32xf32, #tpu.memory_space<vmem>>, vector<8x32xf32>
    tpu.vector_store %arg19[%c0_12, %c0_13], %21 {strides = array<i32>} : memref<8x32xf32, #tpu.memory_space<vmem>>, vector<8x32xf32>,
    %c2_i32 = arith.constant 2 : i32
    %23 = arith.cmpi eq, %arg1, %c2_i32 : i32
    %24 = arith.extui %23 : i1 to i32
    %c0_i32_14 = arith.constant 0 : i32
    %25 = arith.cmpi ne, %24, %c0_i32_14 : i32
    scf.if %25 {
      %c0_15 = arith.constant 0 : index
      %c0_16 = arith.constant 0 : index
      %26 = vector.load %arg19[%c0_15, %c0_16] : memref<8x32xf32, #tpu.memory_space<vmem>>, vector<8x32xf32>
      %c0_17 = arith.constant 0 : index
      %c0_18 = arith.constant 0 : index
      %27 = vector.load %arg16[%c0_17, %c0_18] : memref<32x4xf32, #tpu.memory_space<vmem>>, vector<32x4xf32>
      %cst_19 = arith.constant dense<0.000000e+00> : vector<8x4xf32>
      %28 = tpu.matmul %26, %27, %cst_19 {dimension_numbers = #tpu.dot_dimension_numbers<[1], [0], [0], [1], [0, 0, 1, 1], [], []>} : vector<8x32xf32>, vector<32x4xf32>, vector<8x4xf32> -> vector<8x4xf32>
      %c0_20 = arith.constant 0 : index
      %c0_21 = arith.constant 0 : index
      %29 = vector.load %arg17[%c0_20, %c0_21] : memref<1x4xf32, #tpu.memory_space<vmem>>, vector<1x4xf32>
      %30 = vector.broadcast %29 : vector<1x4xf32> to vector<8x4xf32>
      %31 = arith.addf %28, %30 : vector<8x4xf32>
      %c0_22 = arith.constant 0 : index
      %c0_23 = arith.constant 0 : index
      %32 = vector.load %arg18[%c0_22, %c0_23] : memref<8x4xf32, #tpu.memory_space<vmem>>, vector<8x4xf32>
      tpu.vector_store %arg18[%c0_22, %c0_23], %31 {strides = array<i32>} : memref<8x4xf32, #tpu.memory_space<vmem>>, vector<8x4xf32>,
    } else {
    }
    return
  }
  func.func @transform_0(%arg0: i32, %arg1: i32) -> (i32, i32) {
    %c0_i32 = arith.constant 0 : i32
    %c0_i32_0 = arith.constant 0 : i32
    return %arg0, %c0_i32 : i32, i32
  }
  func.func @transform_1(%arg0: i32, %arg1: i32) -> (i32, i32, i32) {
    %c0_i32 = arith.constant 0 : i32
    %c0_i32_0 = arith.constant 0 : i32
    return %arg1, %arg0, %c0_i32 : i32, i32, i32
  }
  func.func @transform_2(%arg0: i32, %arg1: i32) -> (i32, i32) {
    %c0_i32 = arith.constant 0 : i32
    %c0_i32_0 = arith.constant 0 : i32
    %c0_i32_1 = arith.constant 0 : i32
    return %c0_i32, %c0_i32_0 : i32, i32
  }
  func.func @transform_3(%arg0: i32, %arg1: i32) -> (i32, i32) {
    %c0_i32 = arith.constant 0 : i32
    %c0_i32_0 = arith.constant 0 : i32
    %c0_i32_1 = arith.constant 0 : i32
    return %c0_i32, %c0_i32_0 : i32, i32
  }
  func.func @transform_4(%arg0: i32, %arg1: i32) -> (i32, i32) {
    %c0_i32 = arith.constant 0 : i32
    %c0_i32_0 = arith.constant 0 : i32
    %c0_i32_1 = arith.constant 0 : i32
    return %c0_i32, %c0_i32_0 : i32, i32
  }
  func.func @transform_5(%arg0: i32, %arg1: i32) -> (i32, i32) {
    %c0_i32 = arith.constant 0 : i32
    %c0_i32_0 = arith.constant 0 : i32
    %c0_i32_1 = arith.constant 0 : i32
    return %c0_i32, %c0_i32_0 : i32, i32
  }
  func.func @transform_6(%arg0: i32, %arg1: i32) -> (i32, i32) {
    %c0_i32 = arith.constant 0 : i32
    %c0_i32_0 = arith.constant 0 : i32
    %c0_i32_1 = arith.constant 0 : i32
    return %c0_i32, %c0_i32_0 : i32, i32
  }
  func.func @transform_7(%arg0: i32, %arg1: i32) -> (i32, i32) {
    %c0_i32 = arith.constant 0 : i32
    %c0_i32_0 = arith.constant 0 : i32
    %c0_i32_1 = arith.constant 0 : i32
    return %c0_i32, %c0_i32_0 : i32, i32
  }
  func.func @transform_8(%arg0: i32, %arg1: i32) -> (i32, i32) {
    %c0_i32 = arith.constant 0 : i32
    %c0_i32_0 = arith.constant 0 : i32
    %c0_i32_1 = arith.constant 0 : i32
    return %c0_i32, %c0_i32_0 : i32, i32
  }
  func.func @transform_9(%arg0: i32, %arg1: i32) -> (i32, i32) {
    %c0_i32 = arith.constant 0 : i32
    %c0_i32_0 = arith.constant 0 : i32
    %c0_i32_1 = arith.constant 0 : i32
    return %c0_i32, %c0_i32_0 : i32, i32
  }
  func.func @transform_10(%arg0: i32, %arg1: i32) -> (i32, i32) {
    %c0_i32 = arith.constant 0 : i32
    %c0_i32_0 = arith.constant 0 : i32
    %c0_i32_1 = arith.constant 0 : i32
    return %c0_i32, %c0_i32_0 : i32, i32
  }
  func.func @transform_11(%arg0: i32, %arg1: i32) -> (i32, i32) {
    %c0_i32 = arith.constant 0 : i32
    %c0_i32_0 = arith.constant 0 : i32
    %c0_i32_1 = arith.constant 0 : i32
    return %c0_i32, %c0_i32_0 : i32, i32
  }
  func.func @transform_12(%arg0: i32, %arg1: i32) -> (i32, i32) {
    %c0_i32 = arith.constant 0 : i32
    %c0_i32_0 = arith.constant 0 : i32
    %c0_i32_1 = arith.constant 0 : i32
    return %c0_i32, %c0_i32_0 : i32, i32
  }
  func.func @transform_13(%arg0: i32, %arg1: i32) -> (i32, i32) {
    %c0_i32 = arith.constant 0 : i32
    %c0_i32_0 = arith.constant 0 : i32
    %c0_i32_1 = arith.constant 0 : i32
    return %c0_i32, %c0_i32_0 : i32, i32
  }
  func.func @transform_14(%arg0: i32, %arg1: i32) -> (i32, i32) {
    %c0_i32 = arith.constant 0 : i32
    %c0_i32_0 = arith.constant 0 : i32
    %c0_i32_1 = arith.constant 0 : i32
    return %c0_i32, %c0_i32_0 : i32, i32
  }
  func.func @transform_15(%arg0: i32, %arg1: i32) -> (i32, i32) {
    %c0_i32 = arith.constant 0 : i32
    %c0_i32_0 = arith.constant 0 : i32
    %c0_i32_1 = arith.constant 0 : i32
    return %c0_i32, %c0_i32_0 : i32, i32
  }
  func.func @transform_16(%arg0: i32, %arg1: i32) -> (i32, i32) {
    %c0_i32 = arith.constant 0 : i32
    %c0_i32_0 = arith.constant 0 : i32
    return %arg0, %c0_i32 : i32, i32
  }
}

</mosaic_0001>

<llo_original>
// kernel: tpu_custom_call.1
$region0: #{tpu_custom_call.1}
  #allocation0 [shape = 'u32[]', space=smem, size = 0x4, offset = 0x4, fixed_abs, tag = 'smem constant byte address 0x4 - core index']
  #allocation1 [shape = 'u32[144,128]{1,0:T(1,128)}', space=vmem, size = 0x12000, scoped, tag = 'internal scratch']
  #allocation2 [shape = 'f32[8,32]{1,0:T(8,128)}', space=vmem, size = 0x1000, scoped, tag = 'scratch operand']
  %s0 = inlined_call_operand.vmem [shape: f32[16,4], index: 0, kind: input, shape index: {}]
  %s1 = inlined_call_operand.vmem [shape: f32[384,16,4], index: 1, kind: input, shape index: {}]
  %s2 = inlined_call_operand.vmem [shape: f32[4,32], index: 2, kind: input, shape index: {}]
  %s3 = inlined_call_operand.vmem [shape: f32[1,32], index: 3, kind: input, shape index: {}]
  %s4 = inlined_call_operand.vmem [shape: f32[32,128], index: 4, kind: input, shape index: {}]
  %s5 = inlined_call_operand.vmem [shape: f32[1,128], index: 5, kind: input, shape index: {}]
  %s6 = inlined_call_operand.vmem [shape: f32[128,128], index: 6, kind: input, shape index: {}]
  %s7 = inlined_call_operand.vmem [shape: f32[1,128], index: 7, kind: input, shape index: {}]
  %s8 = inlined_call_operand.vmem [shape: f32[128,128], index: 8, kind: input, shape index: {}]
  %s9 = inlined_call_operand.vmem [shape: f32[1,128], index: 9, kind: input, shape index: {}]
  %s10 = inlined_call_operand.vmem [shape: f32[128,128], index: 10, kind: input, shape index: {}]
  %s11 = inlined_call_operand.vmem [shape: f32[1,128], index: 11, kind: input, shape index: {}]
  %s12 = inlined_call_operand.vmem [shape: f32[4,128], index: 12, kind: input, shape index: {}]
  %s13 = inlined_call_operand.vmem [shape: f32[128,32], index: 13, kind: input, shape index: {}]
  %s14 = inlined_call_operand.vmem [shape: f32[32,4], index: 14, kind: input, shape index: {}]
  %s15 = inlined_call_operand.vmem [shape: f32[1,4], index: 15, kind: input, shape index: {}]
  %s16 = inlined_call_operand.vmem [shape: f32[16,4], index: 16, kind: output, shape index: {}]
  %s17 = sld [smem:[#allocation0]]
  $region150: #{tpu_custom_call.1} parent=0
    _
  %s19 = ssub.s32 1, %s17
  %s20 = scalar_select 0, %s19, %s17
  $region1: #{tpu_custom_call.1} parent=0
    #allocation3 [shape = 'u8[1048576]{0}', space=vmem, size = 0x100000, scoped, tag = 'input window, operand 1']
    loop: start=0, step=1, limit=8
    $region2: #{tpu_custom_call.1} parent=1 // loop_pre_header
      _
    $region3: #{tpu_custom_call.1} parent=1 // loop_header
      %s22 = sphi 0, %s26
      %p23 = scmp.ge.s32.totalorder %s22, 8
      %s29 = sphi 0, %s41
      %s30 = sphi 0, %s37
      %s31 = sphi 0, %s29
      %s32 = sphi 0, %s30
      %s33 = sphi 0, %s31
      %s34 = sphi 0, %s32
      %s44 = sphi 0, %s46
      %s47 = sphi 0, %s44
      %s48 = sphi 0, %s47
      %s64 = sphi 0, %s48
      %s72 = sphi 0, %s74
      %s75 = sphi 0, %s72
      %s76 = sphi 0, %s75
      %s92 = sphi 0, %s76
      %s96 = sphi 0, %s96
      %s98 = sphi 0, %s96
      %s99 = sphi 0, %s98
      %s113 = sphi 0, %s99
      %s117 = sphi 0, %s117
      %s119 = sphi 0, %s117
      %s120 = sphi 0, %s119
      %s134 = sphi 0, %s120
      %s138 = sphi 0, %s138
      %s140 = sphi 0, %s138
      %s141 = sphi 0, %s140
      %s155 = sphi 0, %s141
      %s159 = sphi 0, %s159
      %s161 = sphi 0, %s159
      %s162 = sphi 0, %s161
      %s176 = sphi 0, %s162
      %s180 = sphi 0, %s180
      %s182 = sphi 0, %s180
      %s183 = sphi 0, %s182
      %s197 = sphi 0, %s183
      %s201 = sphi 0, %s201
      %s203 = sphi 0, %s201
      %s204 = sphi 0, %s203
      %s218 = sphi 0, %s204
      %s222 = sphi 0, %s222
      %s224 = sphi 0, %s222
      %s225 = sphi 0, %s224
      %s239 = sphi 0, %s225
      %s243 = sphi 0, %s243
      %s245 = sphi 0, %s243
      %s246 = sphi 0, %s245
      %s260 = sphi 0, %s246
      %s264 = sphi 0, %s264
      %s266 = sphi 0, %s264
      %s267 = sphi 0, %s266
      %s281 = sphi 0, %s267
      %s285 = sphi 0, %s285
      %s287 = sphi 0, %s285
      %s288 = sphi 0, %s287
      %s302 = sphi 0, %s288
      %s306 = sphi 0, %s306
      %s308 = sphi 0, %s306
      %s309 = sphi 0, %s308
      %s323 = sphi 0, %s309
      %s327 = sphi 0, %s327
      %s329 = sphi 0, %s327
      %s330 = sphi 0, %s329
      %s344 = sphi 0, %s330
      %s348 = sphi 0, %s348
      %s350 = sphi 0, %s348
      %s351 = sphi 0, %s350
      %s365 = sphi 0, %s351
      %s369 = sphi 0, %s369
      %s371 = sphi 0, %s369
      %s372 = sphi 0, %s371
      %s386 = sphi 0, %s372
      %s392 = sphi 0, %s394
      %s395 = sphi 0, %s392
      %s396 = sphi 0, %s395
      %s412 = sphi 0, %s396
    $region4: #{tpu_custom_call.1} parent=1 // loop_header_branch
      %25 = sbr.rel (%p23) target = $region8
    $region5: #{tpu_custom_call.1} parent=1 // loop_body
      %s27 = ssub.s32 %s22, 1
      %s28 = ssub.s32 %s22, 2
      %s35 = sadd.s32 1, %s30
      %p36 = scmp.ge.s32.totalorder %s35, 3
      %s37 = scalar_select %p36, 0, %s35
      %s38 = sadd.s32 1, %s29
      %s39 = scalar_select %p36, %s38, %s29
      %p40 = scmp.ge.s32.totalorder %s39, 2
      %s41 = scalar_select %p40, 0, %s39
      %s42 = ssub.s32 %s29, %s41
      %p43 = scmp.eq.s32.totalorder %s42, 0
      %s45 = sadd.s32 %s44, 1
      %s46 = scalar_select %p43, %s44, %s45
      %p49 = pneg %p43
      %p50 = scmp.eq.s32.totalorder %s22, 5
      %p51 = por %p49, %p50
      %p52 = scmp.ne.s32.totalorder %s44, %s47
      %p53 = scmp.eq.s32.totalorder %s22, 0
      %p54 = por %p52, %p53
      %p55 = scmp.ne.s32.totalorder %s44, %s47
      %p56 = scmp.eq.s32.totalorder %s27, 5
      %p57 = por %p55, %p56
      %p58 = scmp.ne.s32.totalorder %s47, %s48
      %p59 = scmp.eq.s32.totalorder %s27, 0
      %p60 = por %p58, %p59
      %p61 = scmp.ne.s32.totalorder %s47, %s48
      %p62 = scmp.eq.s32.totalorder %s28, 5
      %p63 = por %p61, %p62
      %p65 = scmp.ne.s32.totalorder %s48, %s64
      %p66 = scmp.eq.s32.totalorder %s28, 0
      %p67 = por %p65, %p66
      %s68 = ssub.s32 %s30, %s37
      %s69 = ssub.s32 %s29, %s41
      %s70 = sor.u32 %s68, %s69
      %p71 = scmp.eq.s32.totalorder %s70, 0
      %s73 = sadd.s32 %s72, 1
      %s74 = scalar_select %p71, %s72, %s73
      %p77 = pneg %p71
      %p78 = scmp.eq.s32.totalorder %s22, 5
      %p79 = por %p77, %p78
      %p80 = scmp.ne.s32.totalorder %s72, %s75
      %p81 = scmp.eq.s32.totalorder %s22, 0
      %p82 = por %p80, %p81
      %p83 = scmp.ne.s32.totalorder %s72, %s75
      %p84 = scmp.eq.s32.totalorder %s27, 5
      %p85 = por %p83, %p84
      %p86 = scmp.ne.s32.totalorder %s75, %s76
      %p87 = scmp.eq.s32.totalorder %s27, 0
      %p88 = por %p86, %p87
      %p89 = scmp.ne.s32.totalorder %s75, %s76
      %p90 = scmp.eq.s32.totalorder %s28, 5
      %p91 = por %p89, %p90
      %p93 = scmp.ne.s32.totalorder %s76, %s92
      %p94 = scmp.eq.s32.totalorder %s28, 0
      %p95 = por %p93, %p94
      %s97 = sadd.s32 %s96, 1
      %p100 = scmp.eq.s32.totalorder %s22, 5
      %p101 = scmp.ne.s32.totalorder %s96, %s98
      %p102 = scmp.eq.s32.totalorder %s22, 0
      %p103 = por %p101, %p102
      %p104 = scmp.ne.s32.totalorder %s96, %s98
      %p105 = scmp.eq.s32.totalorder %s27, 5
      %p106 = por %p104, %p105
      %p107 = scmp.ne.s32.totalorder %s98, %s99
      %p108 = scmp.eq.s32.totalorder %s27, 0
      %p109 = por %p107, %p108
      %p110 = scmp.ne.s32.totalorder %s98, %s99
      %p111 = scmp.eq.s32.totalorder %s28, 5
      %p112 = por %p110, %p111
      %p114 = scmp.ne.s32.totalorder %s99, %s113
      %p115 = scmp.eq.s32.totalorder %s28, 0
      %p116 = por %p114, %p115
      %s118 = sadd.s32 %s117, 1
      %p121 = scmp.eq.s32.totalorder %s22, 5
      %p122 = scmp.ne.s32.totalorder %s117, %s119
      %p123 = scmp.eq.s32.totalorder %s22, 0
      %p124 = por %p122, %p123
      %p125 = scmp.ne.s32.totalorder %s117, %s119
      %p126 = scmp.eq.s32.totalorder %s27, 5
      %p127 = por %p125, %p126
      %p128 = scmp.ne.s32.totalorder %s119, %s120
      %p129 = scmp.eq.s32.totalorder %s27, 0
      %p130 = por %p128, %p129
      %p131 = scmp.ne.s32.totalorder %s119, %s120
      %p132 = scmp.eq.s32.totalorder %s28, 5
      %p133 = por %p131, %p132
      %p135 = scmp.ne.s32.totalorder %s120, %s134
      %p136 = scmp.eq.s32.totalorder %s28, 0
      %p137 = por %p135, %p136
      %s139 = sadd.s32 %s138, 1
      %p142 = scmp.eq.s32.totalorder %s22, 5
      %p143 = scmp.ne.s32.totalorder %s138, %s140
      %p144 = scmp.eq.s32.totalorder %s22, 0
      %p145 = por %p143, %p144
      %p146 = scmp.ne.s32.totalorder %s138, %s140
      %p147 = scmp.eq.s32.totalorder %s27, 5
      %p148 = por %p146, %p147
      %p149 = scmp.ne.s32.totalorder %s140, %s141
      %p150 = scmp.eq.s32.totalorder %s27, 0
      %p151 = por %p149, %p150
      %p152 = scmp.ne.s32.totalorder %s140, %s141
      %p153 = scmp.eq.s32.totalorder %s28, 5
      %p154 = por %p152, %p153
      %p156 = scmp.ne.s32.totalorder %s141, %s155
      %p157 = scmp.eq.s32.totalorder %s28, 0
      %p158 = por %p156, %p157
      %s160 = sadd.s32 %s159, 1
      %p163 = scmp.eq.s32.totalorder %s22, 5
      %p164 = scmp.ne.s32.totalorder %s159, %s161
      %p165 = scmp.eq.s32.totalorder %s22, 0
      %p166 = por %p164, %p165
      %p167 = scmp.ne.s32.totalorder %s159, %s161
      %p168 = scmp.eq.s32.totalorder %s27, 5
      %p169 = por %p167, %p168
      %p170 = scmp.ne.s32.totalorder %s161, %s162
      %p171 = scmp.eq.s32.totalorder %s27, 0
      %p172 = por %p170, %p171
      %p173 = scmp.ne.s32.totalorder %s161, %s162
      %p174 = scmp.eq.s32.totalorder %s28, 5
      %p175 = por %p173, %p174
      %p177 = scmp.ne.s32.totalorder %s162, %s176
      %p178 = scmp.eq.s32.totalorder %s28, 0
      %p179 = por %p177, %p178
      %s181 = sadd.s32 %s180, 1
      %p184 = scmp.eq.s32.totalorder %s22, 5
      %p185 = scmp.ne.s32.totalorder %s180, %s182
      %p186 = scmp.eq.s32.totalorder %s22, 0
      %p187 = por %p185, %p186
      %p188 = scmp.ne.s32.totalorder %s180, %s182
      %p189 = scmp.eq.s32.totalorder %s27, 5
      %p190 = por %p188, %p189
      %p191 = scmp.ne.s32.totalorder %s182, %s183
      %p192 = scmp.eq.s32.totalorder %s27, 0
      %p193 = por %p191, %p192
      %p194 = scmp.ne.s32.totalorder %s182, %s183
      %p195 = scmp.eq.s32.totalorder %s28, 5
      %p196 = por %p194, %p195
      %p198 = scmp.ne.s32.totalorder %s183, %s197
      %p199 = scmp.eq.s32.totalorder %s28, 0
      %p200 = por %p198, %p199
      %s202 = sadd.s32 %s201, 1
      %p205 = scmp.eq.s32.totalorder %s22, 5
      %p206 = scmp.ne.s32.totalorder %s201, %s203
      %p207 = scmp.eq.s32.totalorder %s22, 0
      %p208 = por %p206, %p207
      %p209 = scmp.ne.s32.totalorder %s201, %s203
      %p210 = scmp.eq.s32.totalorder %s27, 5
      %p211 = por %p209, %p210
      %p212 = scmp.ne.s32.totalorder %s203, %s204
      %p213 = scmp.eq.s32.totalorder %s27, 0
      %p214 = por %p212, %p213
      %p215 = scmp.ne.s32.totalorder %s203, %s204
      %p216 = scmp.eq.s32.totalorder %s28, 5
      %p217 = por %p215, %p216
      %p219 = scmp.ne.s32.totalorder %s204, %s218
      %p220 = scmp.eq.s32.totalorder %s28, 0
      %p221 = por %p219, %p220
      %s223 = sadd.s32 %s222, 1
      %p226 = scmp.eq.s32.totalorder %s22, 5
      %p227 = scmp.ne.s32.totalorder %s222, %s224
      %p228 = scmp.eq.s32.totalorder %s22, 0
      %p229 = por %p227, %p228
      %p230 = scmp.ne.s32.totalorder %s222, %s224
      %p231 = scmp.eq.s32.totalorder %s27, 5
      %p232 = por %p230, %p231
      %p233 = scmp.ne.s32.totalorder %s224, %s225
      %p234 = scmp.eq.s32.totalorder %s27, 0
      %p235 = por %p233, %p234
      %p236 = scmp.ne.s32.totalorder %s224, %s225
      %p237 = scmp.eq.s32.totalorder %s28, 5
      %p238 = por %p236, %p237
      %p240 = scmp.ne.s32.totalorder %s225, %s239
      %p241 = scmp.eq.s32.totalorder %s28, 0
      %p242 = por %p240, %p241
      %s244 = sadd.s32 %s243, 1
      %p247 = scmp.eq.s32.totalorder %s22, 5
      %p248 = scmp.ne.s32.totalorder %s243, %s245
      %p249 = scmp.eq.s32.totalorder %s22, 0
      %p250 = por %p248, %p249
      %p251 = scmp.ne.s32.totalorder %s243, %s245
      %p252 = scmp.eq.s32.totalorder %s27, 5
      %p253 = por %p251, %p252
      %p254 = scmp.ne.s32.totalorder %s245, %s246
      %p255 = scmp.eq.s32.totalorder %s27, 0
      %p256 = por %p254, %p255
      %p257 = scmp.ne.s32.totalorder %s245, %s246
      %p258 = scmp.eq.s32.totalorder %s28, 5
      %p259 = por %p257, %p258
      %p261 = scmp.ne.s32.totalorder %s246, %s260
      %p262 = scmp.eq.s32.totalorder %s28, 0
      %p263 = por %p261, %p262
      %s265 = sadd.s32 %s264, 1
      %p268 = scmp.eq.s32.totalorder %s22, 5
      %p269 = scmp.ne.s32.totalorder %s264, %s266
      %p270 = scmp.eq.s32.totalorder %s22, 0
      %p271 = por %p269, %p270
      %p272 = scmp.ne.s32.totalorder %s264, %s266
      %p273 = scmp.eq.s32.totalorder %s27, 5
      %p274 = por %p272, %p273
      %p275 = scmp.ne.s32.totalorder %s266, %s267
      %p276 = scmp.eq.s32.totalorder %s27, 0
      %p277 = por %p275, %p276
      %p278 = scmp.ne.s32.totalorder %s266, %s267
      %p279 = scmp.eq.s32.totalorder %s28, 5
      %p280 = por %p278, %p279
      %p282 = scmp.ne.s32.totalorder %s267, %s281
      %p283 = scmp.eq.s32.totalorder %s28, 0
      %p284 = por %p282, %p283
      %s286 = sadd.s32 %s285, 1
      %p289 = scmp.eq.s32.totalorder %s22, 5
      %p290 = scmp.ne.s32.totalorder %s285, %s287
      %p291 = scmp.eq.s32.totalorder %s22, 0
      %p292 = por %p290, %p291
      %p293 = scmp.ne.s32.totalorder %s285, %s287
      %p294 = scmp.eq.s32.totalorder %s27, 5
      %p295 = por %p293, %p294
      %p296 = scmp.ne.s32.totalorder %s287, %s288
      %p297 = scmp.eq.s32.totalorder %s27, 0
      %p298 = por %p296, %p297
      %p299 = scmp.ne.s32.totalorder %s287, %s288
      %p300 = scmp.eq.s32.totalorder %s28, 5
      %p301 = por %p299, %p300
      %p303 = scmp.ne.s32.totalorder %s288, %s302
      %p304 = scmp.eq.s32.totalorder %s28, 0
      %p305 = por %p303, %p304
      %s307 = sadd.s32 %s306, 1
      %p310 = scmp.eq.s32.totalorder %s22, 5
      %p311 = scmp.ne.s32.totalorder %s306, %s308
      %p312 = scmp.eq.s32.totalorder %s22, 0
      %p313 = por %p311, %p312
      %p314 = scmp.ne.s32.totalorder %s306, %s308
      %p315 = scmp.eq.s32.totalorder %s27, 5
      %p316 = por %p314, %p315
      %p317 = scmp.ne.s32.totalorder %s308, %s309
      %p318 = scmp.eq.s32.totalorder %s27, 0
      %p319 = por %p317, %p318
      %p320 = scmp.ne.s32.totalorder %s308, %s309
      %p321 = scmp.eq.s32.totalorder %s28, 5
      %p322 = por %p320, %p321
      %p324 = scmp.ne.s32.totalorder %s309, %s323
      %p325 = scmp.eq.s32.totalorder %s28, 0
      %p326 = por %p324, %p325
      %s328 = sadd.s32 %s327, 1
      %p331 = scmp.eq.s32.totalorder %s22, 5
      %p332 = scmp.ne.s32.totalorder %s327, %s329
      %p333 = scmp.eq.s32.totalorder %s22, 0
      %p334 = por %p332, %p333
      %p335 = scmp.ne.s32.totalorder %s327, %s329
      %p336 = scmp.eq.s32.totalorder %s27, 5
      %p337 = por %p335, %p336
      %p338 = scmp.ne.s32.totalorder %s329, %s330
      %p339 = scmp.eq.s32.totalorder %s27, 0
      %p340 = por %p338, %p339
      %p341 = scmp.ne.s32.totalorder %s329, %s330
      %p342 = scmp.eq.s32.totalorder %s28, 5
      %p343 = por %p341, %p342
      %p345 = scmp.ne.s32.totalorder %s330, %s344
      %p346 = scmp.eq.s32.totalorder %s28, 0
      %p347 = por %p345, %p346
      %s349 = sadd.s32 %s348, 1
      %p352 = scmp.eq.s32.totalorder %s22, 5
      %p353 = scmp.ne.s32.totalorder %s348, %s350
      %p354 = scmp.eq.s32.totalorder %s22, 0
      %p355 = por %p353, %p354
      %p356 = scmp.ne.s32.totalorder %s348, %s350
      %p357 = scmp.eq.s32.totalorder %s27, 5
      %p358 = por %p356, %p357
      %p359 = scmp.ne.s32.totalorder %s350, %s351
      %p360 = scmp.eq.s32.totalorder %s27, 0
      %p361 = por %p359, %p360
      %p362 = scmp.ne.s32.totalorder %s350, %s351
      %p363 = scmp.eq.s32.totalorder %s28, 5
      %p364 = por %p362, %p363
      %p366 = scmp.ne.s32.totalorder %s351, %s365
      %p367 = scmp.eq.s32.totalorder %s28, 0
      %p368 = por %p366, %p367
      %s370 = sadd.s32 %s369, 1
      %p373 = scmp.eq.s32.totalorder %s22, 5
      %p374 = scmp.ne.s32.totalorder %s369, %s371
      %p375 = scmp.eq.s32.totalorder %s22, 0
      %p376 = por %p374, %p375
      %p377 = scmp.ne.s32.totalorder %s369, %s371
      %p378 = scmp.eq.s32.totalorder %s27, 5
      %p379 = por %p377, %p378
      %p380 = scmp.ne.s32.totalorder %s371, %s372
      %p381 = scmp.eq.s32.totalorder %s27, 0
      %p382 = por %p380, %p381
      %p383 = scmp.ne.s32.totalorder %s371, %s372
      %p384 = scmp.eq.s32.totalorder %s28, 5
      %p385 = por %p383, %p384
      %p387 = scmp.ne.s32.totalorder %s372, %s386
      %p388 = scmp.eq.s32.totalorder %s28, 0
      %p389 = por %p387, %p388
      %s390 = ssub.s32 %s29, %s41
      %p391 = scmp.eq.s32.totalorder %s390, 0
      %s393 = sadd.s32 %s392, 1
      %s394 = scalar_select %p391, %s392, %s393
      %p397 = pneg %p391
      %p398 = scmp.eq.s32.totalorder %s22, 5
      %p399 = por %p397, %p398
      %p400 = scmp.ne.s32.totalorder %s392, %s395
      %p401 = scmp.eq.s32.totalorder %s22, 0
      %p402 = por %p400, %p401
      %p403 = scmp.ne.s32.totalorder %s392, %s395
      %p404 = scmp.eq.s32.totalorder %s27, 5
      %p405 = por %p403, %p404
      %p406 = scmp.ne.s32.totalorder %s395, %s396
      %p407 = scmp.eq.s32.totalorder %s27, 0
      %p408 = por %p406, %p407
      %p409 = scmp.ne.s32.totalorder %s395, %s396
      %p410 = scmp.eq.s32.totalorder %s28, 5
      %p411 = por %p409, %p410
      %p413 = scmp.ne.s32.totalorder %s396, %s412
      %p414 = scmp.eq.s32.totalorder %s28, 0
      %p415 = por %p413, %p414
      %p416 = scmp.le.s32.totalorder 1, %s22
      %p417 = scmp.lt.s32.totalorder %s22, 7
      %p418 = pnand %p416, %p417
      %p419 = pneg %p418
      // Predicated region
      $region9: #{tpu_custom_call.1} parent=5 // pred_check
        _
      $region10: #{tpu_custom_call.1} parent=5 // pred_check_branch
        %421 = sbr.rel (%p418) target = $region12
      $region11: #{tpu_custom_call.1} parent=5 // pred_region
        %s422 = ssub.s32 %s22, 1
        // Predicated region
        $region13: #{tpu_custom_call.1} parent=11 // pred_check
          %p423 = pneg %p109
        $region14: #{tpu_custom_call.1} parent=11 // pred_check_branch
          %425 = sbr.rel (%p423) target = $region16
        $region15: #{tpu_custom_call.1} parent=11 // pred_region
          _
        $region16: #{tpu_custom_call.1} parent=11 // pred_fallthru
          _
        // Predicated region
        $region17: #{tpu_custom_call.1} parent=11 // pred_check
          %p426 = pneg %p130
        $region18: #{tpu_custom_call.1} parent=11 // pred_check_branch
          %428 = sbr.rel (%p426) target = $region20
        $region19: #{tpu_custom_call.1} parent=11 // pred_region
          _
        $region20: #{tpu_custom_call.1} parent=11 // pred_fallthru
          _
        // Predicated region
        $region21: #{tpu_custom_call.1} parent=11 // pred_check
          %p429 = pneg %p151
        $region22: #{tpu_custom_call.1} parent=11 // pred_check_branch
          %431 = sbr.rel (%p429) target = $region24
        $region23: #{tpu_custom_call.1} parent=11 // pred_region
          _
        $region24: #{tpu_custom_call.1} parent=11 // pred_fallthru
          _
        // Predicated region
        $region25: #{tpu_custom_call.1} parent=11 // pred_check
          %p432 = pneg %p172
        $region26: #{tpu_custom_call.1} parent=11 // pred_check_branch
          %434 = sbr.rel (%p432) target = $region28
        $region27: #{tpu_custom_call.1} parent=11 // pred_region
          _
        $region28: #{tpu_custom_call.1} parent=11 // pred_fallthru
          _
        // Predicated region
        $region29: #{tpu_custom_call.1} parent=11 // pred_check
          %p435 = pneg %p193
        $region30: #{tpu_custom_call.1} parent=11 // pred_check_branch
          %437 = sbr.rel (%p435) target = $region32
        $region31: #{tpu_custom_call.1} parent=11 // pred_region
          _
        $region32: #{tpu_custom_call.1} parent=11 // pred_fallthru
          _
        // Predicated region
        $region33: #{tpu_custom_call.1} parent=11 // pred_check
          %p438 = pneg %p214
        $region34: #{tpu_custom_call.1} parent=11 // pred_check_branch
          %440 = sbr.rel (%p438) target = $region36
        $region35: #{tpu_custom_call.1} parent=11 // pred_region
          _
        $region36: #{tpu_custom_call.1} parent=11 // pred_fallthru
          _
        // Predicated region
        $region37: #{tpu_custom_call.1} parent=11 // pred_check
          %p441 = pneg %p235
        $region38: #{tpu_custom_call.1} parent=11 // pred_check_branch
          %443 = sbr.rel (%p441) target = $region40
        $region39: #{tpu_custom_call.1} parent=11 // pred_region
          _
        $region40: #{tpu_custom_call.1} parent=11 // pred_fallthru
          _
        // Predicated region
        $region41: #{tpu_custom_call.1} parent=11 // pred_check
          %p444 = pneg %p256
        $region42: #{tpu_custom_call.1} parent=11 // pred_check_branch
          %446 = sbr.rel (%p444) target = $region44
        $region43: #{tpu_custom_call.1} parent=11 // pred_region
          _
        $region44: #{tpu_custom_call.1} parent=11 // pred_fallthru
          _
        // Predicated region
        $region45: #{tpu_custom_call.1} parent=11 // pred_check
          %p447 = pneg %p277
        $region46: #{tpu_custom_call.1} parent=11 // pred_check_branch
          %449 = sbr.rel (%p447) target = $region48
        $region47: #{tpu_custom_call.1} parent=11 // pred_region
          _
        $region48: #{tpu_custom_call.1} parent=11 // pred_fallthru
          _
        // Predicated region
        $region49: #{tpu_custom_call.1} parent=11 // pred_check
          %p450 = pneg %p298
        $region50: #{tpu_custom_call.1} parent=11 // pred_check_branch
          %452 = sbr.rel (%p450) target = $region52
        $region51: #{tpu_custom_call.1} parent=11 // pred_region
          _
        $region52: #{tpu_custom_call.1} parent=11 // pred_fallthru
          _
        // Predicated region
        $region53: #{tpu_custom_call.1} parent=11 // pred_check
          %p453 = pneg %p319
        $region54: #{tpu_custom_call.1} parent=11 // pred_check_branch
          %455 = sbr.rel (%p453) target = $region56
        $region55: #{tpu_custom_call.1} parent=11 // pred_region
          _
        $region56: #{tpu_custom_call.1} parent=11 // pred_fallthru
          _
        // Predicated region
        $region57: #{tpu_custom_call.1} parent=11 // pred_check
          %p456 = pneg %p340
        $region58: #{tpu_custom_call.1} parent=11 // pred_check_branch
          %458 = sbr.rel (%p456) target = $region60
        $region59: #{tpu_custom_call.1} parent=11 // pred_region
          _
        $region60: #{tpu_custom_call.1} parent=11 // pred_fallthru
          _
        // Predicated region
        $region61: #{tpu_custom_call.1} parent=11 // pred_check
          %p459 = pneg %p361
        $region62: #{tpu_custom_call.1} parent=11 // pred_check_branch
          %461 = sbr.rel (%p459) target = $region64
        $region63: #{tpu_custom_call.1} parent=11 // pred_region
          _
        $region64: #{tpu_custom_call.1} parent=11 // pred_fallthru
          _
        // Predicated region
        $region65: #{tpu_custom_call.1} parent=11 // pred_check
          %p462 = pneg %p382
        $region66: #{tpu_custom_call.1} parent=11 // pred_check_branch
          %464 = sbr.rel (%p462) target = $region68
        $region67: #{tpu_custom_call.1} parent=11 // pred_region
          _
        $region68: #{tpu_custom_call.1} parent=11 // pred_fallthru
          _
      $region12: #{tpu_custom_call.1} parent=5 // pred_fallthru
        _
      %p465 = scmp.lt.s32.totalorder %s22, 6
      // Predicated region
      $region69: #{tpu_custom_call.1} parent=5 // pred_check
        %p466 = pneg %p465
      $region70: #{tpu_custom_call.1} parent=5 // pred_check_branch
        %468 = sbr.rel (%p466) target = $region72
      $region71: #{tpu_custom_call.1} parent=5 // pred_region
        // Predicated region
        $region73: #{tpu_custom_call.1} parent=71 // pred_check
          %p469 = pneg %p54
        $region74: #{tpu_custom_call.1} parent=71 // pred_check_branch
          %471 = sbr.rel (%p469) target = $region76
        $region75: #{tpu_custom_call.1} parent=71 // pred_region
          %p472 = scmp.lt.s32.totalorder %s29, 1
          %s473 = scalar_select %p472, %s29, 1
          %s474 = smul.addr %s473, 8
          %s475 = scalar_lea.vmem %s0, %s474
        $region76: #{tpu_custom_call.1} parent=71 // pred_fallthru
          _
        // Predicated region
        $region77: #{tpu_custom_call.1} parent=71 // pred_check
          %p476 = pneg %p82
        $region78: #{tpu_custom_call.1} parent=71 // pred_check_branch
          %478 = sbr.rel (%p476) target = $region80
        $region79: #{tpu_custom_call.1} parent=71 // pred_region
          %s479 = sand.u32 %s72, 1
          %s480 = sand.u32 %s72, 1
          %s481 = smul.addr %s480, 1024
          %s482 = scalar_lea.vmem [#allocation3], %s481
          %s483 = smul.u32 128, %s30
          %s484 = smul.addr %s483, 2
          %s485 = sadd.s32 %s29, %s484
          %s486 = smul.addr %s485, 8
          %s487 = scalar_lea.vmem %s1, %s486
          // Predicated region
          $region81: #{tpu_custom_call.1} parent=79 // pred_check
            _
          $region82: #{tpu_custom_call.1} parent=79 // pred_check_branch
            %489 = sbr.rel (0) target = $region84
          $region83: #{tpu_custom_call.1} parent=79 // pred_region
            // Predicated region
            $region85: #{tpu_custom_call.1} parent=83 // pred_check
              _
            $region86: #{tpu_custom_call.1} parent=83 // pred_check_branch
              %491 = sbr.rel (0) target = $region88
            $region87: #{tpu_custom_call.1} parent=83 // pred_region
              // Predicated region
              $region100: #{tpu_custom_call.1} parent=87 // pred_check
                _
              $region101: #{tpu_custom_call.1} parent=87 // pred_check_branch
                %760 = sbr.rel (0) target = $region103
              $region102: #{tpu_custom_call.1} parent=87 // pred_region
                loop: start=0, step=1, limit=1
                $region104: #{tpu_custom_call.1} parent=102 // loop_pre_header
                  _
                $region105: #{tpu_custom_call.1} parent=102 // loop_header
                  %s762 = sphi 0, %s766
                  %p763 = scmp.ge.s32.totalorder %s762, 1
                  %s767 = sphi %s487, %s487
                  %s768 = sphi %s482, %s482
                $region106: #{tpu_custom_call.1} parent=102 // loop_header_branch
                  %765 = sbr.rel (%p763) target = $region110
                $region107: #{tpu_custom_call.1} parent=102 // loop_body
                  %v769 = vld [vmem:[%s767] sm:$0xff]
                  %770 = vst [vmem:[%s768] sm:$0xff] %v769
                  %v771 = vld [vmem:[%s767 + $0x10] sm:$0xff]
                  %772 = vst [vmem:[%s768 + $0x8] sm:$0xff] %v771
                  %v773 = vld [vmem:[%s767 + $0x20] sm:$0xff]
                  %774 = vst [vmem:[%s768 + $0x10] sm:$0xff] %v773
                  %v775 = vld [vmem:[%s767 + $0x30] sm:$0xff]
                  %776 = vst [vmem:[%s768 + $0x18] sm:$0xff] %v775
                  %v777 = vld [vmem:[%s767 + $0x40] sm:$0xff]
                  %778 = vst [vmem:[%s768 + $0x20] sm:$0xff] %v777
                  %v779 = vld [vmem:[%s767 + $0x50] sm:$0xff]
                  %780 = vst [vmem:[%s768 + $0x28] sm:$0xff] %v779
                  %v781 = vld [vmem:[%s767 + $0x60] sm:$0xff]
                  %782 = vst [vmem:[%s768 + $0x30] sm:$0xff] %v781
                  %v783 = vld [vmem:[%s767 + $0x70] sm:$0xff]
                  %784 = vst [vmem:[%s768 + $0x38] sm:$0xff] %v783
                  %v785 = vld [vmem:[%s767 + $0x80] sm:$0xff]
                  %786 = vst [vmem:[%s768 + $0x40] sm:$0xff] %v785
                  %v787 = vld [vmem:[%s767 + $0x90] sm:$0xff]
                  %788 = vst [vmem:[%s768 + $0x48] sm:$0xff] %v787
                  %v789 = vld [vmem:[%s767 + $0xa0] sm:$0xff]
                  %790 = vst [vmem:[%s768 + $0x50] sm:$0xff] %v789
                  %v791 = vld [vmem:[%s767 + $0xb0] sm:$0xff]
                  %792 = vst [vmem:[%s768 + $0x58] sm:$0xff] %v791
                  %v793 = vld [vmem:[%s767 + $0xc0] sm:$0xff]
                  %794 = vst [vmem:[%s768 + $0x60] sm:$0xff] %v793
                  %v795 = vld [vmem:[%s767 + $0xd0] sm:$0xff]
                  %796 = vst [vmem:[%s768 + $0x68] sm:$0xff] %v795
                  %v797 = vld [vmem:[%s767 + $0xe0] sm:$0xff]
                  %798 = vst [vmem:[%s768 + $0x70] sm:$0xff] %v797
                  %v799 = vld [vmem:[%s767 + $0xf0] sm:$0xff]
                  %800 = vst [vmem:[%s768 + $0x78] sm:$0xff] %v799
                  %v801 = vld [vmem:[%s767 + $0x100] sm:$0xff]
                  %802 = vst [vmem:[%s768 + $0x80] sm:$0xff] %v801
                  %v803 = vld [vmem:[%s767 + $0x110] sm:$0xff]
                  %804 = vst [vmem:[%s768 + $0x88] sm:$0xff] %v803
                  %v805 = vld [vmem:[%s767 + $0x120] sm:$0xff]
                  %806 = vst [vmem:[%s768 + $0x90] sm:$0xff] %v805
                  %v807 = vld [vmem:[%s767 + $0x130] sm:$0xff]
                  %808 = vst [vmem:[%s768 + $0x98] sm:$0xff] %v807
                  %v809 = vld [vmem:[%s767 + $0x140] sm:$0xff]
                  %810 = vst [vmem:[%s768 + $0xa0] sm:$0xff] %v809
                  %v811 = vld [vmem:[%s767 + $0x150] sm:$0xff]
                  %812 = vst [vmem:[%s768 + $0xa8] sm:$0xff] %v811
                  %v813 = vld [vmem:[%s767 + $0x160] sm:$0xff]
                  %814 = vst [vmem:[%s768 + $0xb0] sm:$0xff] %v813
                  %v815 = vld [vmem:[%s767 + $0x170] sm:$0xff]
                  %816 = vst [vmem:[%s768 + $0xb8] sm:$0xff] %v815
                  %v817 = vld [vmem:[%s767 + $0x180] sm:$0xff]
                  %818 = vst [vmem:[%s768 + $0xc0] sm:$0xff] %v817
                  %v819 = vld [vmem:[%s767 + $0x190] sm:$0xff]
                  %820 = vst [vmem:[%s768 + $0xc8] sm:$0xff] %v819
                  %v821 = vld [vmem:[%s767 + $0x1a0] sm:$0xff]
                  %822 = vst [vmem:[%s768 + $0xd0] sm:$0xff] %v821
                  %v823 = vld [vmem:[%s767 + $0x1b0] sm:$0xff]
                  %824 = vst [vmem:[%s768 + $0xd8] sm:$0xff] %v823
                  %v825 = vld [vmem:[%s767 + $0x1c0] sm:$0xff]
                  %826 = vst [vmem:[%s768 + $0xe0] sm:$0xff] %v825
                  %v827 = vld [vmem:[%s767 + $0x1d0] sm:$0xff]
                  %828 = vst [vmem:[%s768 + $0xe8] sm:$0xff] %v827
                  %v829 = vld [vmem:[%s767 + $0x1e0] sm:$0xff]
                  %830 = vst [vmem:[%s768 + $0xf0] sm:$0xff] %v829
                  %v831 = vld [vmem:[%s767 + $0x1f0] sm:$0xff]
                  %832 = vst [vmem:[%s768 + $0xf8] sm:$0xff] %v831
                  %v833 = vld [vmem:[%s767 + $0x200] sm:$0xff]
                  %834 = vst [vmem:[%s768 + $0x100] sm:$0xff] %v833
                  %v835 = vld [vmem:[%s767 + $0x210] sm:$0xff]
                  %836 = vst [vmem:[%s768 + $0x108] sm:$0xff] %v835
                  %v837 = vld [vmem:[%s767 + $0x220] sm:$0xff]
                  %838 = vst [vmem:[%s768 + $0x110] sm:$0xff] %v837
                  %v839 = vld [vmem:[%s767 + $0x230] sm:$0xff]
                  %840 = vst [vmem:[%s768 + $0x118] sm:$0xff] %v839
                  %v841 = vld [vmem:[%s767 + $0x240] sm:$0xff]
                  %842 = vst [vmem:[%s768 + $0x120] sm:$0xff] %v841
                  %v843 = vld [vmem:[%s767 + $0x250] sm:$0xff]
                  %844 = vst [vmem:[%s768 + $0x128] sm:$0xff] %v843
                  %v845 = vld [vmem:[%s767 + $0x260] sm:$0xff]
                  %846 = vst [vmem:[%s768 + $0x130] sm:$0xff] %v845
                  %v847 = vld [vmem:[%s767 + $0x270] sm:$0xff]
                  %848 = vst [vmem:[%s768 + $0x138] sm:$0xff] %v847
                  %v849 = vld [vmem:[%s767 + $0x280] sm:$0xff]
                  %850 = vst [vmem:[%s768 + $0x140] sm:$0xff] %v849
                  %v851 = vld [vmem:[%s767 + $0x290] sm:$0xff]
                  %852 = vst [vmem:[%s768 + $0x148] sm:$0xff] %v851
                  %v853 = vld [vmem:[%s767 + $0x2a0] sm:$0xff]
                  %854 = vst [vmem:[%s768 + $0x150] sm:$0xff] %v853
                  %v855 = vld [vmem:[%s767 + $0x2b0] sm:$0xff]
                  %856 = vst [vmem:[%s768 + $0x158] sm:$0xff] %v855
                  %v857 = vld [vmem:[%s767 + $0x2c0] sm:$0xff]
                  %858 = vst [vmem:[%s768 + $0x160] sm:$0xff] %v857
                  %v859 = vld [vmem:[%s767 + $0x2d0] sm:$0xff]
                  %860 = vst [vmem:[%s768 + $0x168] sm:$0xff] %v859
                  %v861 = vld [vmem:[%s767 + $0x2e0] sm:$0xff]
                  %862 = vst [vmem:[%s768 + $0x170] sm:$0xff] %v861
                  %v863 = vld [vmem:[%s767 + $0x2f0] sm:$0xff]
                  %864 = vst [vmem:[%s768 + $0x178] sm:$0xff] %v863
                  %v865 = vld [vmem:[%s767 + $0x300] sm:$0xff]
                  %866 = vst [vmem:[%s768 + $0x180] sm:$0xff] %v865
                  %v867 = vld [vmem:[%s767 + $0x310] sm:$0xff]
                  %868 = vst [vmem:[%s768 + $0x188] sm:$0xff] %v867
                  %v869 = vld [vmem:[%s767 + $0x320] sm:$0xff]
                  %870 = vst [vmem:[%s768 + $0x190] sm:$0xff] %v869
                  %v871 = vld [vmem:[%s767 + $0x330] sm:$0xff]
                  %872 = vst [vmem:[%s768 + $0x198] sm:$0xff] %v871
                  %v873 = vld [vmem:[%s767 + $0x340] sm:$0xff]
                  %874 = vst [vmem:[%s768 + $0x1a0] sm:$0xff] %v873
                  %v875 = vld [vmem:[%s767 + $0x350] sm:$0xff]
                  %876 = vst [vmem:[%s768 + $0x1a8] sm:$0xff] %v875
                  %v877 = vld [vmem:[%s767 + $0x360] sm:$0xff]
                  %878 = vst [vmem:[%s768 + $0x1b0] sm:$0xff] %v877
                  %v879 = vld [vmem:[%s767 + $0x370] sm:$0xff]
                  %880 = vst [vmem:[%s768 + $0x1b8] sm:$0xff] %v879
                  %v881 = vld [vmem:[%s767 + $0x380] sm:$0xff]
                  %882 = vst [vmem:[%s768 + $0x1c0] sm:$0xff] %v881
                  %v883 = vld [vmem:[%s767 + $0x390] sm:$0xff]
                  %884 = vst [vmem:[%s768 + $0x1c8] sm:$0xff] %v883
                  %v885 = vld [vmem:[%s767 + $0x3a0] sm:$0xff]
                  %886 = vst [vmem:[%s768 + $0x1d0] sm:$0xff] %v885
                  %v887 = vld [vmem:[%s767 + $0x3b0] sm:$0xff]
                  %888 = vst [vmem:[%s768 + $0x1d8] sm:$0xff] %v887
                  %v889 = vld [vmem:[%s767 + $0x3c0] sm:$0xff]
                  %890 = vst [vmem:[%s768 + $0x1e0] sm:$0xff] %v889
                  %v891 = vld [vmem:[%s767 + $0x3d0] sm:$0xff]
                  %892 = vst [vmem:[%s768 + $0x1e8] sm:$0xff] %v891
                  %v893 = vld [vmem:[%s767 + $0x3e0] sm:$0xff]
                  %894 = vst [vmem:[%s768 + $0x1f0] sm:$0xff] %v893
                  %v895 = vld [vmem:[%s767 + $0x3f0] sm:$0xff]
                  %896 = vst [vmem:[%s768 + $0x1f8] sm:$0xff] %v895
                  %v897 = vld [vmem:[%s767 + $0x400] sm:$0xff]
                  %898 = vst [vmem:[%s768 + $0x200] sm:$0xff] %v897
                  %v899 = vld [vmem:[%s767 + $0x410] sm:$0xff]
                  %900 = vst [vmem:[%s768 + $0x208] sm:$0xff] %v899
                  %v901 = vld [vmem:[%s767 + $0x420] sm:$0xff]
                  %902 = vst [vmem:[%s768 + $0x210] sm:$0xff] %v901
                  %v903 = vld [vmem:[%s767 + $0x430] sm:$0xff]
                  %904 = vst [vmem:[%s768 + $0x218] sm:$0xff] %v903
                  %v905 = vld [vmem:[%s767 + $0x440] sm:$0xff]
                  %906 = vst [vmem:[%s768 + $0x220] sm:$0xff] %v905
                  %v907 = vld [vmem:[%s767 + $0x450] sm:$0xff]
                  %908 = vst [vmem:[%s768 + $0x228] sm:$0xff] %v907
                  %v909 = vld [vmem:[%s767 + $0x460] sm:$0xff]
                  %910 = vst [vmem:[%s768 + $0x230] sm:$0xff] %v909
                  %v911 = vld [vmem:[%s767 + $0x470] sm:$0xff]
                  %912 = vst [vmem:[%s768 + $0x238] sm:$0xff] %v911
                  %v913 = vld [vmem:[%s767 + $0x480] sm:$0xff]
                  %914 = vst [vmem:[%s768 + $0x240] sm:$0xff] %v913
                  %v915 = vld [vmem:[%s767 + $0x490] sm:$0xff]
                  %916 = vst [vmem:[%s768 + $0x248] sm:$0xff] %v915
                  %v917 = vld [vmem:[%s767 + $0x4a0] sm:$0xff]
                  %918 = vst [vmem:[%s768 + $0x250] sm:$0xff] %v917
                  %v919 = vld [vmem:[%s767 + $0x4b0] sm:$0xff]
                  %920 = vst [vmem:[%s768 + $0x258] sm:$0xff] %v919
                  %v921 = vld [vmem:[%s767 + $0x4c0] sm:$0xff]
                  %922 = vst [vmem:[%s768 + $0x260] sm:$0xff] %v921
                  %v923 = vld [vmem:[%s767 + $0x4d0] sm:$0xff]
                  %924 = vst [vmem:[%s768 + $0x268] sm:$0xff] %v923
                  %v925 = vld [vmem:[%s767 + $0x4e0] sm:$0xff]
                  %926 = vst [vmem:[%s768 + $0x270] sm:$0xff] %v925
                  %v927 = vld [vmem:[%s767 + $0x4f0] sm:$0xff]
                  %928 = vst [vmem:[%s768 + $0x278] sm:$0xff] %v927
                  %v929 = vld [vmem:[%s767 + $0x500] sm:$0xff]
                  %930 = vst [vmem:[%s768 + $0x280] sm:$0xff] %v929
                  %v931 = vld [vmem:[%s767 + $0x510] sm:$0xff]
                  %932 = vst [vmem:[%s768 + $0x288] sm:$0xff] %v931
                  %v933 = vld [vmem:[%s767 + $0x520] sm:$0xff]
                  %934 = vst [vmem:[%s768 + $0x290] sm:$0xff] %v933
                  %v935 = vld [vmem:[%s767 + $0x530] sm:$0xff]
                  %936 = vst [vmem:[%s768 + $0x298] sm:$0xff] %v935
                  %v937 = vld [vmem:[%s767 + $0x540] sm:$0xff]
                  %938 = vst [vmem:[%s768 + $0x2a0] sm:$0xff] %v937
                  %v939 = vld [vmem:[%s767 + $0x550] sm:$0xff]
                  %940 = vst [vmem:[%s768 + $0x2a8] sm:$0xff] %v939
                  %v941 = vld [vmem:[%s767 + $0x560] sm:$0xff]
                  %942 = vst [vmem:[%s768 + $0x2b0] sm:$0xff] %v941
                  %v943 = vld [vmem:[%s767 + $0x570] sm:$0xff]
                  %944 = vst [vmem:[%s768 + $0x2b8] sm:$0xff] %v943
                  %v945 = vld [vmem:[%s767 + $0x580] sm:$0xff]
                  %946 = vst [vmem:[%s768 + $0x2c0] sm:$0xff] %v945
                  %v947 = vld [vmem:[%s767 + $0x590] sm:$0xff]
                  %948 = vst [vmem:[%s768 + $0x2c8] sm:$0xff] %v947
                  %v949 = vld [vmem:[%s767 + $0x5a0] sm:$0xff]
                  %950 = vst [vmem:[%s768 + $0x2d0] sm:$0xff] %v949
                  %v951 = vld [vmem:[%s767 + $0x5b0] sm:$0xff]
                  %952 = vst [vmem:[%s768 + $0x2d8] sm:$0xff] %v951
                  %v953 = vld [vmem:[%s767 + $0x5c0] sm:$0xff]
                  %954 = vst [vmem:[%s768 + $0x2e0] sm:$0xff] %v953
                  %v955 = vld [vmem:[%s767 + $0x5d0] sm:$0xff]
                  %956 = vst [vmem:[%s768 + $0x2e8] sm:$0xff] %v955
                  %v957 = vld [vmem:[%s767 + $0x5e0] sm:$0xff]
                  %958 = vst [vmem:[%s768 + $0x2f0] sm:$0xff] %v957
                  %v959 = vld [vmem:[%s767 + $0x5f0] sm:$0xff]
                  %960 = vst [vmem:[%s768 + $0x2f8] sm:$0xff] %v959
                  %v961 = vld [vmem:[%s767 + $0x600] sm:$0xff]
                  %962 = vst [vmem:[%s768 + $0x300] sm:$0xff] %v961
                  %v963 = vld [vmem:[%s767 + $0x610] sm:$0xff]
                  %964 = vst [vmem:[%s768 + $0x308] sm:$0xff] %v963
                  %v965 = vld [vmem:[%s767 + $0x620] sm:$0xff]
                  %966 = vst [vmem:[%s768 + $0x310] sm:$0xff] %v965
                  %v967 = vld [vmem:[%s767 + $0x630] sm:$0xff]
                  %968 = vst [vmem:[%s768 + $0x318] sm:$0xff] %v967
                  %v969 = vld [vmem:[%s767 + $0x640] sm:$0xff]
                  %970 = vst [vmem:[%s768 + $0x320] sm:$0xff] %v969
                  %v971 = vld [vmem:[%s767 + $0x650] sm:$0xff]
                  %972 = vst [vmem:[%s768 + $0x328] sm:$0xff] %v971
                  %v973 = vld [vmem:[%s767 + $0x660] sm:$0xff]
                  %974 = vst [vmem:[%s768 + $0x330] sm:$0xff] %v973
                  %v975 = vld [vmem:[%s767 + $0x670] sm:$0xff]
                  %976 = vst [vmem:[%s768 + $0x338] sm:$0xff] %v975
                  %v977 = vld [vmem:[%s767 + $0x680] sm:$0xff]
                  %978 = vst [vmem:[%s768 + $0x340] sm:$0xff] %v977
                  %v979 = vld [vmem:[%s767 + $0x690] sm:$0xff]
                  %980 = vst [vmem:[%s768 + $0x348] sm:$0xff] %v979
                  %v981 = vld [vmem:[%s767 + $0x6a0] sm:$0xff]
                  %982 = vst [vmem:[%s768 + $0x350] sm:$0xff] %v981
                  %v983 = vld [vmem:[%s767 + $0x6b0] sm:$0xff]
                  %984 = vst [vmem:[%s768 + $0x358] sm:$0xff] %v983
                  %v985 = vld [vmem:[%s767 + $0x6c0] sm:$0xff]
                  %986 = vst [vmem:[%s768 + $0x360] sm:$0xff] %v985
                  %v987 = vld [vmem:[%s767 + $0x6d0] sm:$0xff]
                  %988 = vst [vmem:[%s768 + $0x368] sm:$0xff] %v987
                  %v989 = vld [vmem:[%s767 + $0x6e0] sm:$0xff]
                  %990 = vst [vmem:[%s768 + $0x370] sm:$0xff] %v989
                  %v991 = vld [vmem:[%s767 + $0x6f0] sm:$0xff]
                  %992 = vst [vmem:[%s768 + $0x378] sm:$0xff] %v991
                  %v993 = vld [vmem:[%s767 + $0x700] sm:$0xff]
                  %994 = vst [vmem:[%s768 + $0x380] sm:$0xff] %v993
                  %v995 = vld [vmem:[%s767 + $0x710] sm:$0xff]
                  %996 = vst [vmem:[%s768 + $0x388] sm:$0xff] %v995
                  %v997 = vld [vmem:[%s767 + $0x720] sm:$0xff]
                  %998 = vst [vmem:[%s768 + $0x390] sm:$0xff] %v997
                  %v999 = vld [vmem:[%s767 + $0x730] sm:$0xff]
                  %1000 = vst [vmem:[%s768 + $0x398] sm:$0xff] %v999
                  %v1001 = vld [vmem:[%s767 + $0x740] sm:$0xff]
                  %1002 = vst [vmem:[%s768 + $0x3a0] sm:$0xff] %v1001
                  %v1003 = vld [vmem:[%s767 + $0x750] sm:$0xff]
                  %1004 = vst [vmem:[%s768 + $0x3a8] sm:$0xff] %v1003
                  %v1005 = vld [vmem:[%s767 + $0x760] sm:$0xff]
                  %1006 = vst [vmem:[%s768 + $0x3b0] sm:$0xff] %v1005
                  %v1007 = vld [vmem:[%s767 + $0x770] sm:$0xff]
                  %1008 = vst [vmem:[%s768 + $0x3b8] sm:$0xff] %v1007
                  %v1009 = vld [vmem:[%s767 + $0x780] sm:$0xff]
                  %1010 = vst [vmem:[%s768 + $0x3c0] sm:$0xff] %v1009
                  %v1011 = vld [vmem:[%s767 + $0x790] sm:$0xff]
                  %1012 = vst [vmem:[%s768 + $0x3c8] sm:$0xff] %v1011
                  %v1013 = vld [vmem:[%s767 + $0x7a0] sm:$0xff]
                  %1014 = vst [vmem:[%s768 + $0x3d0] sm:$0xff] %v1013
                  %v1015 = vld [vmem:[%s767 + $0x7b0] sm:$0xff]
                  %1016 = vst [vmem:[%s768 + $0x3d8] sm:$0xff] %v1015
                  %v1017 = vld [vmem:[%s767 + $0x7c0] sm:$0xff]
                  %1018 = vst [vmem:[%s768 + $0x3e0] sm:$0xff] %v1017
                  %v1019 = vld [vmem:[%s767 + $0x7d0] sm:$0xff]
                  %1020 = vst [vmem:[%s768 + $0x3e8] sm:$0xff] %v1019
                  %v1021 = vld [vmem:[%s767 + $0x7e0] sm:$0xff]
                  %1022 = vst [vmem:[%s768 + $0x3f0] sm:$0xff] %v1021
                  %v1023 = vld [vmem:[%s767 + $0x7f0] sm:$0xff]
                  %1024 = vst [vmem:[%s768 + $0x3f8] sm:$0xff] %v1023
                $region108: #{tpu_custom_call.1} parent=102 // loop_footer
                  %s766 = sadd.s32 1, %s762
                $region109: #{tpu_custom_call.1} parent=102 // loop_footer_branch
                  %761 = sbr.rel target = $region105
                $region110: #{tpu_custom_call.1} parent=102 // loop_exit
                  _
              $region103: #{tpu_custom_call.1} parent=87 // pred_fallthru
                _
              // Predicated region
              $region111: #{tpu_custom_call.1} parent=87 // pred_check
                _
              $region112: #{tpu_custom_call.1} parent=87 // pred_check_branch
                %1026 = sbr.rel target = $region114
              $region113: #{tpu_custom_call.1} parent=87 // pred_region
                _
              $region114: #{tpu_custom_call.1} parent=87 // pred_fallthru
                _
            $region88: #{tpu_custom_call.1} parent=83 // pred_fallthru
              _
            // Predicated region
            $region89: #{tpu_custom_call.1} parent=83 // pred_check
              _
            $region90: #{tpu_custom_call.1} parent=83 // pred_check_branch
              %493 = sbr.rel target = $region92
            $region91: #{tpu_custom_call.1} parent=83 // pred_region
              loop: start=0, step=1, limit=1
              $region93: #{tpu_custom_call.1} parent=91 // loop_pre_header
                _
              $region94: #{tpu_custom_call.1} parent=91 // loop_header
                %s496 = sphi 0, %s500
                %p497 = scmp.ge.s32.totalorder %s496, 1
                %s501 = sphi %s487, %s487
                %s502 = sphi %s482, %s482
              $region95: #{tpu_custom_call.1} parent=91 // loop_header_branch
                %499 = sbr.rel (%p497) target = $region99
              $region96: #{tpu_custom_call.1} parent=91 // loop_body
                %v503 = vld [vmem:[%s501] sm:$0xff]
                %504 = vst [vmem:[%s502] sm:$0xff] %v503
                %v505 = vld [vmem:[%s501 + $0x10] sm:$0xff]
                %506 = vst [vmem:[%s502 + $0x8] sm:$0xff] %v505
                %v507 = vld [vmem:[%s501 + $0x20] sm:$0xff]
                %508 = vst [vmem:[%s502 + $0x10] sm:$0xff] %v507
                %v509 = vld [vmem:[%s501 + $0x30] sm:$0xff]
                %510 = vst [vmem:[%s502 + $0x18] sm:$0xff] %v509
                %v511 = vld [vmem:[%s501 + $0x40] sm:$0xff]
                %512 = vst [vmem:[%s502 + $0x20] sm:$0xff] %v511
                %v513 = vld [vmem:[%s501 + $0x50] sm:$0xff]
                %514 = vst [vmem:[%s502 + $0x28] sm:$0xff] %v513
                %v515 = vld [vmem:[%s501 + $0x60] sm:$0xff]
                %516 = vst [vmem:[%s502 + $0x30] sm:$0xff] %v515
                %v517 = vld [vmem:[%s501 + $0x70] sm:$0xff]
                %518 = vst [vmem:[%s502 + $0x38] sm:$0xff] %v517
                %v519 = vld [vmem:[%s501 + $0x80] sm:$0xff]
                %520 = vst [vmem:[%s502 + $0x40] sm:$0xff] %v519
                %v521 = vld [vmem:[%s501 + $0x90] sm:$0xff]
                %522 = vst [vmem:[%s502 + $0x48] sm:$0xff] %v521
                %v523 = vld [vmem:[%s501 + $0xa0] sm:$0xff]
                %524 = vst [vmem:[%s502 + $0x50] sm:$0xff] %v523
                %v525 = vld [vmem:[%s501 + $0xb0] sm:$0xff]
                %526 = vst [vmem:[%s502 + $0x58] sm:$0xff] %v525
                %v527 = vld [vmem:[%s501 + $0xc0] sm:$0xff]
                %528 = vst [vmem:[%s502 + $0x60] sm:$0xff] %v527
                %v529 = vld [vmem:[%s501 + $0xd0] sm:$0xff]
                %530 = vst [vmem:[%s502 + $0x68] sm:$0xff] %v529
                %v531 = vld [vmem:[%s501 + $0xe0] sm:$0xff]
                %532 = vst [vmem:[%s502 + $0x70] sm:$0xff] %v531
                %v533 = vld [vmem:[%s501 + $0xf0] sm:$0xff]
                %534 = vst [vmem:[%s502 + $0x78] sm:$0xff] %v533
                %v535 = vld [vmem:[%s501 + $0x100] sm:$0xff]
                %536 = vst [vmem:[%s502 + $0x80] sm:$0xff] %v535
                %v537 = vld [vmem:[%s501 + $0x110] sm:$0xff]
                %538 = vst [vmem:[%s502 + $0x88] sm:$0xff] %v537
                %v539 = vld [vmem:[%s501 + $0x120] sm:$0xff]
                %540 = vst [vmem:[%s502 + $0x90] sm:$0xff] %v539
                %v541 = vld [vmem:[%s501 + $0x130] sm:$0xff]
                %542 = vst [vmem:[%s502 + $0x98] sm:$0xff] %v541
                %v543 = vld [vmem:[%s501 + $0x140] sm:$0xff]
                %544 = vst [vmem:[%s502 + $0xa0] sm:$0xff] %v543
                %v545 = vld [vmem:[%s501 + $0x150] sm:$0xff]
                %546 = vst [vmem:[%s502 + $0xa8] sm:$0xff] %v545
                %v547 = vld [vmem:[%s501 + $0x160] sm:$0xff]
                %548 = vst [vmem:[%s502 + $0xb0] sm:$0xff] %v547
                %v549 = vld [vmem:[%s501 + $0x170] sm:$0xff]
                %550 = vst [vmem:[%s502 + $0xb8] sm:$0xff] %v549
                %v551 = vld [vmem:[%s501 + $0x180] sm:$0xff]
                %552 = vst [vmem:[%s502 + $0xc0] sm:$0xff] %v551
                %v553 = vld [vmem:[%s501 + $0x190] sm:$0xff]
                %554 = vst [vmem:[%s502 + $0xc8] sm:$0xff] %v553
                %v555 = vld [vmem:[%s501 + $0x1a0] sm:$0xff]
                %556 = vst [vmem:[%s502 + $0xd0] sm:$0xff] %v555
                %v557 = vld [vmem:[%s501 + $0x1b0] sm:$0xff]
                %558 = vst [vmem:[%s502 + $0xd8] sm:$0xff] %v557
                %v559 = vld [vmem:[%s501 + $0x1c0] sm:$0xff]
                %560 = vst [vmem:[%s502 + $0xe0] sm:$0xff] %v559
                %v561 = vld [vmem:[%s501 + $0x1d0] sm:$0xff]
                %562 = vst [vmem:[%s502 + $0xe8] sm:$0xff] %v561
                %v563 = vld [vmem:[%s501 + $0x1e0] sm:$0xff]
                %564 = vst [vmem:[%s502 + $0xf0] sm:$0xff] %v563
                %v565 = vld [vmem:[%s501 + $0x1f0] sm:$0xff]
                %566 = vst [vmem:[%s502 + $0xf8] sm:$0xff] %v565
                %v567 = vld [vmem:[%s501 + $0x200] sm:$0xff]
                %568 = vst [vmem:[%s502 + $0x100] sm:$0xff] %v567
                %v569 = vld [vmem:[%s501 + $0x210] sm:$0xff]
                %570 = vst [vmem:[%s502 + $0x108] sm:$0xff] %v569
                %v571 = vld [vmem:[%s501 + $0x220] sm:$0xff]
                %572 = vst [vmem:[%s502 + $0x110] sm:$0xff] %v571
                %v573 = vld [vmem:[%s501 + $0x230] sm:$0xff]
                %574 = vst [vmem:[%s502 + $0x118] sm:$0xff] %v573
                %v575 = vld [vmem:[%s501 + $0x240] sm:$0xff]
                %576 = vst [vmem:[%s502 + $0x120] sm:$0xff] %v575
                %v577 = vld [vmem:[%s501 + $0x250] sm:$0xff]
                %578 = vst [vmem:[%s502 + $0x128] sm:$0xff] %v577
                %v579 = vld [vmem:[%s501 + $0x260] sm:$0xff]
                %580 = vst [vmem:[%s502 + $0x130] sm:$0xff] %v579
                %v581 = vld [vmem:[%s501 + $0x270] sm:$0xff]
                %582 = vst [vmem:[%s502 + $0x138] sm:$0xff] %v581
                %v583 = vld [vmem:[%s501 + $0x280] sm:$0xff]
                %584 = vst [vmem:[%s502 + $0x140] sm:$0xff] %v583
                %v585 = vld [vmem:[%s501 + $0x290] sm:$0xff]
                %586 = vst [vmem:[%s502 + $0x148] sm:$0xff] %v585
                %v587 = vld [vmem:[%s501 + $0x2a0] sm:$0xff]
                %588 = vst [vmem:[%s502 + $0x150] sm:$0xff] %v587
                %v589 = vld [vmem:[%s501 + $0x2b0] sm:$0xff]
                %590 = vst [vmem:[%s502 + $0x158] sm:$0xff] %v589
                %v591 = vld [vmem:[%s501 + $0x2c0] sm:$0xff]
                %592 = vst [vmem:[%s502 + $0x160] sm:$0xff] %v591
                %v593 = vld [vmem:[%s501 + $0x2d0] sm:$0xff]
                %594 = vst [vmem:[%s502 + $0x168] sm:$0xff] %v593
                %v595 = vld [vmem:[%s501 + $0x2e0] sm:$0xff]
                %596 = vst [vmem:[%s502 + $0x170] sm:$0xff] %v595
                %v597 = vld [vmem:[%s501 + $0x2f0] sm:$0xff]
                %598 = vst [vmem:[%s502 + $0x178] sm:$0xff] %v597
                %v599 = vld [vmem:[%s501 + $0x300] sm:$0xff]
                %600 = vst [vmem:[%s502 + $0x180] sm:$0xff] %v599
                %v601 = vld [vmem:[%s501 + $0x310] sm:$0xff]
                %602 = vst [vmem:[%s502 + $0x188] sm:$0xff] %v601
                %v603 = vld [vmem:[%s501 + $0x320] sm:$0xff]
                %604 = vst [vmem:[%s502 + $0x190] sm:$0xff] %v603
                %v605 = vld [vmem:[%s501 + $0x330] sm:$0xff]
                %606 = vst [vmem:[%s502 + $0x198] sm:$0xff] %v605
                %v607 = vld [vmem:[%s501 + $0x340] sm:$0xff]
                %608 = vst [vmem:[%s502 + $0x1a0] sm:$0xff] %v607
                %v609 = vld [vmem:[%s501 + $0x350] sm:$0xff]
                %610 = vst [vmem:[%s502 + $0x1a8] sm:$0xff] %v609
                %v611 = vld [vmem:[%s501 + $0x360] sm:$0xff]
                %612 = vst [vmem:[%s502 + $0x1b0] sm:$0xff] %v611
                %v613 = vld [vmem:[%s501 + $0x370] sm:$0xff]
                %614 = vst [vmem:[%s502 + $0x1b8] sm:$0xff] %v613
                %v615 = vld [vmem:[%s501 + $0x380] sm:$0xff]
                %616 = vst [vmem:[%s502 + $0x1c0] sm:$0xff] %v615
                %v617 = vld [vmem:[%s501 + $0x390] sm:$0xff]
                %618 = vst [vmem:[%s502 + $0x1c8] sm:$0xff] %v617
                %v619 = vld [vmem:[%s501 + $0x3a0] sm:$0xff]
                %620 = vst [vmem:[%s502 + $0x1d0] sm:$0xff] %v619
                %v621 = vld [vmem:[%s501 + $0x3b0] sm:$0xff]
                %622 = vst [vmem:[%s502 + $0x1d8] sm:$0xff] %v621
                %v623 = vld [vmem:[%s501 + $0x3c0] sm:$0xff]
                %624 = vst [vmem:[%s502 + $0x1e0] sm:$0xff] %v623
                %v625 = vld [vmem:[%s501 + $0x3d0] sm:$0xff]
                %626 = vst [vmem:[%s502 + $0x1e8] sm:$0xff] %v625
                %v627 = vld [vmem:[%s501 + $0x3e0] sm:$0xff]
                %628 = vst [vmem:[%s502 + $0x1f0] sm:$0xff] %v627
                %v629 = vld [vmem:[%s501 + $0x3f0] sm:$0xff]
                %630 = vst [vmem:[%s502 + $0x1f8] sm:$0xff] %v629
                %v631 = vld [vmem:[%s501 + $0x400] sm:$0xff]
                %632 = vst [vmem:[%s502 + $0x200] sm:$0xff] %v631
                %v633 = vld [vmem:[%s501 + $0x410] sm:$0xff]
                %634 = vst [vmem:[%s502 + $0x208] sm:$0xff] %v633
                %v635 = vld [vmem:[%s501 + $0x420] sm:$0xff]
                %636 = vst [vmem:[%s502 + $0x210] sm:$0xff] %v635
                %v637 = vld [vmem:[%s501 + $0x430] sm:$0xff]
                %638 = vst [vmem:[%s502 + $0x218] sm:$0xff] %v637
                %v639 = vld [vmem:[%s501 + $0x440] sm:$0xff]
                %640 = vst [vmem:[%s502 + $0x220] sm:$0xff] %v639
                %v641 = vld [vmem:[%s501 + $0x450] sm:$0xff]
                %642 = vst [vmem:[%s502 + $0x228] sm:$0xff] %v641
                %v643 = vld [vmem:[%s501 + $0x460] sm:$0xff]
                %644 = vst [vmem:[%s502 + $0x230] sm:$0xff] %v643
                %v645 = vld [vmem:[%s501 + $0x470] sm:$0xff]
                %646 = vst [vmem:[%s502 + $0x238] sm:$0xff] %v645
                %v647 = vld [vmem:[%s501 + $0x480] sm:$0xff]
                %648 = vst [vmem:[%s502 + $0x240] sm:$0xff] %v647
                %v649 = vld [vmem:[%s501 + $0x490] sm:$0xff]
                %650 = vst [vmem:[%s502 + $0x248] sm:$0xff] %v649
                %v651 = vld [vmem:[%s501 + $0x4a0] sm:$0xff]
                %652 = vst [vmem:[%s502 + $0x250] sm:$0xff] %v651
                %v653 = vld [vmem:[%s501 + $0x4b0] sm:$0xff]
                %654 = vst [vmem:[%s502 + $0x258] sm:$0xff] %v653
                %v655 = vld [vmem:[%s501 + $0x4c0] sm:$0xff]
                %656 = vst [vmem:[%s502 + $0x260] sm:$0xff] %v655
                %v657 = vld [vmem:[%s501 + $0x4d0] sm:$0xff]
                %658 = vst [vmem:[%s502 + $0x268] sm:$0xff] %v657
                %v659 = vld [vmem:[%s501 + $0x4e0] sm:$0xff]
                %660 = vst [vmem:[%s502 + $0x270] sm:$0xff] %v659
                %v661 = vld [vmem:[%s501 + $0x4f0] sm:$0xff]
                %662 = vst [vmem:[%s502 + $0x278] sm:$0xff] %v661
                %v663 = vld [vmem:[%s501 + $0x500] sm:$0xff]
                %664 = vst [vmem:[%s502 + $0x280] sm:$0xff] %v663
                %v665 = vld [vmem:[%s501 + $0x510] sm:$0xff]
                %666 = vst [vmem:[%s502 + $0x288] sm:$0xff] %v665
                %v667 = vld [vmem:[%s501 + $0x520] sm:$0xff]
                %668 = vst [vmem:[%s502 + $0x290] sm:$0xff] %v667
                %v669 = vld [vmem:[%s501 + $0x530] sm:$0xff]
                %670 = vst [vmem:[%s502 + $0x298] sm:$0xff] %v669
                %v671 = vld [vmem:[%s501 + $0x540] sm:$0xff]
                %672 = vst [vmem:[%s502 + $0x2a0] sm:$0xff] %v671
                %v673 = vld [vmem:[%s501 + $0x550] sm:$0xff]
                %674 = vst [vmem:[%s502 + $0x2a8] sm:$0xff] %v673
                %v675 = vld [vmem:[%s501 + $0x560] sm:$0xff]
                %676 = vst [vmem:[%s502 + $0x2b0] sm:$0xff] %v675
                %v677 = vld [vmem:[%s501 + $0x570] sm:$0xff]
                %678 = vst [vmem:[%s502 + $0x2b8] sm:$0xff] %v677
                %v679 = vld [vmem:[%s501 + $0x580] sm:$0xff]
                %680 = vst [vmem:[%s502 + $0x2c0] sm:$0xff] %v679
                %v681 = vld [vmem:[%s501 + $0x590] sm:$0xff]
                %682 = vst [vmem:[%s502 + $0x2c8] sm:$0xff] %v681
                %v683 = vld [vmem:[%s501 + $0x5a0] sm:$0xff]
                %684 = vst [vmem:[%s502 + $0x2d0] sm:$0xff] %v683
                %v685 = vld [vmem:[%s501 + $0x5b0] sm:$0xff]
                %686 = vst [vmem:[%s502 + $0x2d8] sm:$0xff] %v685
                %v687 = vld [vmem:[%s501 + $0x5c0] sm:$0xff]
                %688 = vst [vmem:[%s502 + $0x2e0] sm:$0xff] %v687
                %v689 = vld [vmem:[%s501 + $0x5d0] sm:$0xff]
                %690 = vst [vmem:[%s502 + $0x2e8] sm:$0xff] %v689
                %v691 = vld [vmem:[%s501 + $0x5e0] sm:$0xff]
                %692 = vst [vmem:[%s502 + $0x2f0] sm:$0xff] %v691
                %v693 = vld [vmem:[%s501 + $0x5f0] sm:$0xff]
                %694 = vst [vmem:[%s502 + $0x2f8] sm:$0xff] %v693
                %v695 = vld [vmem:[%s501 + $0x600] sm:$0xff]
                %696 = vst [vmem:[%s502 + $0x300] sm:$0xff] %v695
                %v697 = vld [vmem:[%s501 + $0x610] sm:$0xff]
                %698 = vst [vmem:[%s502 + $0x308] sm:$0xff] %v697
                %v699 = vld [vmem:[%s501 + $0x620] sm:$0xff]
                %700 = vst [vmem:[%s502 + $0x310] sm:$0xff] %v699
                %v701 = vld [vmem:[%s501 + $0x630] sm:$0xff]
                %702 = vst [vmem:[%s502 + $0x318] sm:$0xff] %v701
                %v703 = vld [vmem:[%s501 + $0x640] sm:$0xff]
                %704 = vst [vmem:[%s502 + $0x320] sm:$0xff] %v703
                %v705 = vld [vmem:[%s501 + $0x650] sm:$0xff]
                %706 = vst [vmem:[%s502 + $0x328] sm:$0xff] %v705
                %v707 = vld [vmem:[%s501 + $0x660] sm:$0xff]
                %708 = vst [vmem:[%s502 + $0x330] sm:$0xff] %v707
                %v709 = vld [vmem:[%s501 + $0x670] sm:$0xff]
                %710 = vst [vmem:[%s502 + $0x338] sm:$0xff] %v709
                %v711 = vld [vmem:[%s501 + $0x680] sm:$0xff]
                %712 = vst [vmem:[%s502 + $0x340] sm:$0xff] %v711
                %v713 = vld [vmem:[%s501 + $0x690] sm:$0xff]
                %714 = vst [vmem:[%s502 + $0x348] sm:$0xff] %v713
                %v715 = vld [vmem:[%s501 + $0x6a0] sm:$0xff]
                %716 = vst [vmem:[%s502 + $0x350] sm:$0xff] %v715
                %v717 = vld [vmem:[%s501 + $0x6b0] sm:$0xff]
                %718 = vst [vmem:[%s502 + $0x358] sm:$0xff] %v717
                %v719 = vld [vmem:[%s501 + $0x6c0] sm:$0xff]
                %720 = vst [vmem:[%s502 + $0x360] sm:$0xff] %v719
                %v721 = vld [vmem:[%s501 + $0x6d0] sm:$0xff]
                %722 = vst [vmem:[%s502 + $0x368] sm:$0xff] %v721
                %v723 = vld [vmem:[%s501 + $0x6e0] sm:$0xff]
                %724 = vst [vmem:[%s502 + $0x370] sm:$0xff] %v723
                %v725 = vld [vmem:[%s501 + $0x6f0] sm:$0xff]
                %726 = vst [vmem:[%s502 + $0x378] sm:$0xff] %v725
                %v727 = vld [vmem:[%s501 + $0x700] sm:$0xff]
                %728 = vst [vmem:[%s502 + $0x380] sm:$0xff] %v727
                %v729 = vld [vmem:[%s501 + $0x710] sm:$0xff]
                %730 = vst [vmem:[%s502 + $0x388] sm:$0xff] %v729
                %v731 = vld [vmem:[%s501 + $0x720] sm:$0xff]
                %732 = vst [vmem:[%s502 + $0x390] sm:$0xff] %v731
                %v733 = vld [vmem:[%s501 + $0x730] sm:$0xff]
                %734 = vst [vmem:[%s502 + $0x398] sm:$0xff] %v733
                %v735 = vld [vmem:[%s501 + $0x740] sm:$0xff]
                %736 = vst [vmem:[%s502 + $0x3a0] sm:$0xff] %v735
                %v737 = vld [vmem:[%s501 + $0x750] sm:$0xff]
                %738 = vst [vmem:[%s502 + $0x3a8] sm:$0xff] %v737
                %v739 = vld [vmem:[%s501 + $0x760] sm:$0xff]
                %740 = vst [vmem:[%s502 + $0x3b0] sm:$0xff] %v739
                %v741 = vld [vmem:[%s501 + $0x770] sm:$0xff]
                %742 = vst [vmem:[%s502 + $0x3b8] sm:$0xff] %v741
                %v743 = vld [vmem:[%s501 + $0x780] sm:$0xff]
                %744 = vst [vmem:[%s502 + $0x3c0] sm:$0xff] %v743
                %v745 = vld [vmem:[%s501 + $0x790] sm:$0xff]
                %746 = vst [vmem:[%s502 + $0x3c8] sm:$0xff] %v745
                %v747 = vld [vmem:[%s501 + $0x7a0] sm:$0xff]
                %748 = vst [vmem:[%s502 + $0x3d0] sm:$0xff] %v747
                %v749 = vld [vmem:[%s501 + $0x7b0] sm:$0xff]
                %750 = vst [vmem:[%s502 + $0x3d8] sm:$0xff] %v749
                %v751 = vld [vmem:[%s501 + $0x7c0] sm:$0xff]
                %752 = vst [vmem:[%s502 + $0x3e0] sm:$0xff] %v751
                %v753 = vld [vmem:[%s501 + $0x7d0] sm:$0xff]
                %754 = vst [vmem:[%s502 + $0x3e8] sm:$0xff] %v753
                %v755 = vld [vmem:[%s501 + $0x7e0] sm:$0xff]
                %756 = vst [vmem:[%s502 + $0x3f0] sm:$0xff] %v755
                %v757 = vld [vmem:[%s501 + $0x7f0] sm:$0xff]
                %758 = vst [vmem:[%s502 + $0x3f8] sm:$0xff] %v757
              $region97: #{tpu_custom_call.1} parent=91 // loop_footer
                %s500 = sadd.s32 1, %s496
              $region98: #{tpu_custom_call.1} parent=91 // loop_footer_branch
                %495 = sbr.rel target = $region94
              $region99: #{tpu_custom_call.1} parent=91 // loop_exit
                _
            $region92: #{tpu_custom_call.1} parent=83 // pred_fallthru
              _
          $region84: #{tpu_custom_call.1} parent=79 // pred_fallthru
            _
          %1027 = vnop
        $region80: #{tpu_custom_call.1} parent=71 // pred_fallthru
          _
      $region72: #{tpu_custom_call.1} parent=5 // pred_fallthru
        _
      %p1028 = scmp.le.s32.totalorder 1, %s22
      %p1029 = scmp.lt.s32.totalorder %s22, 7
      %p1030 = pnand %p1028, %p1029
      %p1031 = pneg %p1030
      // Predicated region
      $region115: #{tpu_custom_call.1} parent=5 // pred_check
        _
      $region116: #{tpu_custom_call.1} parent=5 // pred_check_branch
        %1033 = sbr.rel (%p1030) target = $region118
      $region117: #{tpu_custom_call.1} parent=5 // pred_region
        %s1034 = ssub.s32 %s22, 1
        %s1035 = sand.u32 %s75, 1
        %s1036 = sand.u32 %s75, 1
        %s1037 = smul.addr %s1036, 1024
        %s1038 = scalar_lea.vmem [#allocation3], %s1037
        // Predicated region
        $region119: #{tpu_custom_call.1} parent=117 // pred_check
          %p1039 = pneg %p88
        $region120: #{tpu_custom_call.1} parent=117 // pred_check_branch
          %1041 = sbr.rel (%p1039) target = $region122
        $region121: #{tpu_custom_call.1} parent=117 // pred_region
          _
        $region122: #{tpu_custom_call.1} parent=117 // pred_fallthru
          _
        %p1042 = scmp.lt.s32.totalorder %s31, 1
        %s1043 = scalar_select %p1042, %s31, 1
        %s1044 = smul.addr %s1043, 8
        %s1045 = scalar_lea.vmem %s0, %s1044
        %p1046 = pneg %p60
        %p1047 = pneg %p57
        %s1048 = sand.u32 %s75, 1
        %s1049 = sand.u32 %s75, 1
        %s1050 = smul.addr %s1049, 1024
        %s1051 = scalar_lea.vmem [#allocation3], %s1050
        %p1052 = pneg %p88
        %p1053 = pneg %p85
        %p1054 = pneg %p109
        %p1055 = pneg %p106
        %p1056 = pneg %p130
        %p1057 = pneg %p127
        %p1058 = pneg %p151
        %p1059 = pneg %p148
        %p1060 = pneg %p172
        %p1061 = pneg %p169
        %p1062 = pneg %p193
        %p1063 = pneg %p190
        %p1064 = pneg %p214
        %p1065 = pneg %p211
        %p1066 = pneg %p235
        %p1067 = pneg %p232
        %p1068 = pneg %p256
        %p1069 = pneg %p253
        %p1070 = pneg %p277
        %p1071 = pneg %p274
        %p1072 = pneg %p298
        %p1073 = pneg %p295
        %p1074 = pneg %p319
        %p1075 = pneg %p316
        %p1076 = pneg %p340
        %p1077 = pneg %p337
        %p1078 = pneg %p361
        %p1079 = pneg %p358
        %p1080 = pneg %p382
        %p1081 = pneg %p379
        %p1082 = pneg %p408
        %p1083 = pneg %p405
        %p1084 = scmp.lt.s32.totalorder %s31, 1
        %s1085 = scalar_select %p1084, %s31, 1
        %s1086 = smul.addr %s1085, 8
        %s1087 = scalar_lea.vmem %s16, %s1086
        %p1088 = scmp.lt.s32.totalorder %s31, 1
        %s1089 = scalar_select %p1088, %s31, 1
        %s1090 = smul.addr %s1089, 8
        %s1091 = scalar_lea.vmem %s0, %s1090
        %s1092 = smul.u32 128, %s32
        %p1093 = scmp.lt.s32.totalorder %s31, 1
        %s1094 = scalar_select %p1093, %s31, 1
        %s1095 = smul.addr %s1094, 8
        %s1096 = scalar_lea.vmem %s16, %s1095
        %p1097 = scmp.eq.s32.totalorder %s32, 0
        // Predicated region
        $region123: #{tpu_custom_call.1} parent=117 // pred_check
          %p1098 = pneg %p1097
        $region124: #{tpu_custom_call.1} parent=117 // pred_check_branch
          %1100 = sbr.rel (%p1098) target = $region126
        $region125: #{tpu_custom_call.1} parent=117 // pred_region
          %v1101 = vld [vmem:[%s1091] sm:$0xff]
          %v1102 = vld [vmem:[%s2] sm:$0xf]
          %v1103 = vld [vmem:[%s3] sm:$0x1]
          %v1105 = vlaneseq
          %v1106 = vshrl.u32 %v1105, 7
          %v1107 = vsub.s32 0, %v1106
          %v1108 = vrot.slane %v1103, %v1107
          %vm1110 = vcmask 31744
          %v1112 = vsel %vm1110, %v1101, 0
          %vm1114 = vcmask 1043456
          %v1116 = vsel %vm1114, %v1102, 0
          %1118 = vmatprep.subr.mxu0 0.0
          %1119 = vmatpush1.msra.mxu0 %v1116
          %1120 = vmatprep.subr.mxu0 0.0
          %1121 = vmatpush1.msra.mxu0 0.0
          %1122 = vmatprep.subr.mxu0 0.0
          %1123 = vmatpush1.msra.mxu0 0.0
          %1124 = vmatprep.subr.mxu0 0.0
          %1125 = vmatpush1.msra.mxu0 0.0
          %1126 = vmatprep.subr.mxu0 0.0
          %1127 = vmatpush1.msra.mxu0 0.0
          %1128 = vmatprep.subr.mxu0 0.0
          %1129 = vmatpush1.msra.mxu0 0.0
          %1130 = vmatprep.subr.mxu0 0.0
          %1131 = vmatpush1.msra.mxu0 0.0
          %1132 = vmatprep.subr.mxu0 0.0
          %1133 = vmatpush1.msra.mxu0 0.0
          %1134 = vmatprep.subr.mxu0 0.0
          %1135 = vmatpush1.msra.mxu0 0.0
          %1136 = vmatprep.subr.mxu0 0.0
          %1137 = vmatpush1.msra.mxu0 0.0
          %1138 = vmatprep.subr.mxu0 0.0
          %1139 = vmatpush1.msra.mxu0 0.0
          %1140 = vmatprep.subr.mxu0 0.0
          %1141 = vmatpush1.msra.mxu0 0.0
          %1142 = vmatprep.subr.mxu0 0.0
          %1143 = vmatpush1.msra.mxu0 0.0
          %1144 = vmatprep.subr.mxu0 0.0
          %1145 = vmatpush1.msra.mxu0 0.0
          %1146 = vmatprep.subr.mxu0 0.0
          %1147 = vmatpush1.msra.mxu0 0.0
          %1148 = vmatprep.subr.mxu0 0.0
          %1149 = vmatpush1.msra.mxu0 0.0
          %1150 = vmatprep.subr.mxu0 0.0
          %1151 = vmatpush1.msra.mxu0 0.0
          %1152 = vmatprep.subr.mxu0 0.0
          %1153 = vmatpush1.msra.mxu0 0.0
          %1154 = vmatprep.subr.mxu0 0.0
          %1155 = vmatpush1.msra.mxu0 0.0
          %1156 = vmatprep.subr.mxu0 0.0
          %1157 = vmatpush1.msra.mxu0 0.0
          %1158 = vmatprep.subr.mxu0 0.0
          %1159 = vmatpush1.msra.mxu0 0.0
          %1160 = vmatprep.subr.mxu0 0.0
          %1161 = vmatpush1.msra.mxu0 0.0
          %1162 = vmatprep.subr.mxu0 0.0
          %1163 = vmatpush1.msra.mxu0 0.0
          %1164 = vmatprep.subr.mxu0 0.0
          %1165 = vmatpush1.msra.mxu0 0.0
          %1166 = vmatprep.subr.mxu0 0.0
          %1167 = vmatpush1.msra.mxu0 0.0
          %1168 = vmatprep.subr.mxu0 0.0
          %1169 = vmatpush1.msra.mxu0 0.0
          %1170 = vmatprep.subr.mxu0 0.0
          %1171 = vmatpush1.msra.mxu0 0.0
          %1172 = vmatprep.subr.mxu0 0.0
          %1173 = vmatpush1.msra.mxu0 0.0
          %1174 = vmatprep.subr.mxu0 0.0
          %1175 = vmatpush1.msra.mxu0 0.0
          %1176 = vmatprep.subr.mxu0 0.0
          %1177 = vmatpush1.msra.mxu0 0.0
          %1178 = vmatprep.subr.mxu0 0.0
          %1179 = vmatpush1.msra.mxu0 0.0
          %1180 = vmatprep.subr.mxu0 0.0
          %1181 = vmatpush1.msra.mxu0 0.0
          %1182 = vmatprep.mubr.f32.mxu0 0.0
          %1183 = vmatmul.mubr.f32.gmra.mrb[0].mxu0 %v1112
          %v1184 = vpop.f32.mrb[0].mxu0
          %v1185 = vadd.f32 %v1108, %v1184
          %v1186 = vpop.f32.mrb[0].mxu0
          %1187 = vdwg.mxu0
          %vm1188 = vcmask 261120
          %1189 = vst.msk [vmem:[#allocation2] sm:$0xff] %vm1188, %v1185
        $region126: #{tpu_custom_call.1} parent=117 // pred_fallthru
          _
        %v1190 = vld [vmem:[%s5] sm:$0x1]
        %v1192 = vlaneseq
        %v1193 = vshrl.u32 %v1192, 7
        %v1194 = vsub.s32 0, %v1193
        %v1195 = vrot.slane %v1190, %v1194
        %v1197 = vld [vmem:[%s7] sm:$0x1]
        %v1199 = vlaneseq
        %v1200 = vshrl.u32 %v1199, 7
        %v1201 = vsub.s32 0, %v1200
        %v1202 = vrot.slane %v1197, %v1201
        %v1204 = vld [vmem:[%s9] sm:$0x1]
        %v1206 = vlaneseq
        %v1207 = vshrl.u32 %v1206, 7
        %v1208 = vsub.s32 0, %v1207
        %v1209 = vrot.slane %v1204, %v1208
        %v1211 = vld [vmem:[%s11] sm:$0x1]
        %v1213 = vlaneseq
        %v1214 = vshrl.u32 %v1213, 7
        %v1215 = vsub.s32 0, %v1214
        %v1216 = vrot.slane %v1211, %v1215
        %s1218 = smul.u32 %s32, 32
        %s1219 = ssub.s32 70, %s1218
        %p1220 = scmp.lt.s32.totalorder %s1219, 32
        %s1221 = scalar_select %p1220, %s1219, 32
        %v1222 = vld [vmem:[#allocation2] sm:$0xff]
        // While loop
        $region127: #{tpu_custom_call.1} parent=117 // loop_pre_header
          _
        $region128: #{tpu_custom_call.1} parent=117 // loop_header
          %s1224 = sphi 0, %s1226
          %p1225 = scmp.ge.s32.totalorder %s1224, %s1221
          %v1229 = vphi %v1222, %v3053
        $region129: #{tpu_custom_call.1} parent=117 // loop_header_branch
          %1228 = sbr.rel (%p1225) target = $region133
        $region130: #{tpu_custom_call.1} parent=117 // loop_body
          %s1230 = smul.u32 %s1224, 4
          %s1231 = smul.u32 %s1230, 8
          %s1232 = scalar_lea.vmem %s1038, %s1231 [#allocation3]
          %v1233 = vld [vmem:[%s1232] sm:$0xff]
          %v1234 = vld [vmem:[%s12] sm:$0xf]
          %vm1235 = vcmask 31744
          %v1237 = vsel %vm1235, %v1233, 0
          %vm1239 = vcmask 1043456
          %v1241 = vsel %vm1239, %v1234, 0
          %1243 = vmatprep.subr.mxu0 0.0
          %1244 = vmatpush1.msra.mxu0 %v1241
          %1245 = vmatprep.subr.mxu0 0.0
          %1246 = vmatpush1.msra.mxu0 0.0
          %1247 = vmatprep.subr.mxu0 0.0
          %1248 = vmatpush1.msra.mxu0 0.0
          %1249 = vmatprep.subr.mxu0 0.0
          %1250 = vmatpush1.msra.mxu0 0.0
          %1251 = vmatprep.subr.mxu0 0.0
          %1252 = vmatpush1.msra.mxu0 0.0
          %1253 = vmatprep.subr.mxu0 0.0
          %1254 = vmatpush1.msra.mxu0 0.0
          %1255 = vmatprep.subr.mxu0 0.0
          %1256 = vmatpush1.msra.mxu0 0.0
          %1257 = vmatprep.subr.mxu0 0.0
          %1258 = vmatpush1.msra.mxu0 0.0
          %1259 = vmatprep.subr.mxu0 0.0
          %1260 = vmatpush1.msra.mxu0 0.0
          %1261 = vmatprep.subr.mxu0 0.0
          %1262 = vmatpush1.msra.mxu0 0.0
          %1263 = vmatprep.subr.mxu0 0.0
          %1264 = vmatpush1.msra.mxu0 0.0
          %1265 = vmatprep.subr.mxu0 0.0
          %1266 = vmatpush1.msra.mxu0 0.0
          %1267 = vmatprep.subr.mxu0 0.0
          %1268 = vmatpush1.msra.mxu0 0.0
          %1269 = vmatprep.subr.mxu0 0.0
          %1270 = vmatpush1.msra.mxu0 0.0
          %1271 = vmatprep.subr.mxu0 0.0
          %1272 = vmatpush1.msra.mxu0 0.0
          %1273 = vmatprep.subr.mxu0 0.0
          %1274 = vmatpush1.msra.mxu0 0.0
          %1275 = vmatprep.subr.mxu0 0.0
          %1276 = vmatpush1.msra.mxu0 0.0
          %1277 = vmatprep.subr.mxu0 0.0
          %1278 = vmatpush1.msra.mxu0 0.0
          %1279 = vmatprep.subr.mxu0 0.0
          %1280 = vmatpush1.msra.mxu0 0.0
          %1281 = vmatprep.subr.mxu0 0.0
          %1282 = vmatpush1.msra.mxu0 0.0
          %1283 = vmatprep.subr.mxu0 0.0
          %1284 = vmatpush1.msra.mxu0 0.0
          %1285 = vmatprep.subr.mxu0 0.0
          %1286 = vmatpush1.msra.mxu0 0.0
          %1287 = vmatprep.subr.mxu0 0.0
          %1288 = vmatpush1.msra.mxu0 0.0
          %1289 = vmatprep.subr.mxu0 0.0
          %1290 = vmatpush1.msra.mxu0 0.0
          %1291 = vmatprep.subr.mxu0 0.0
          %1292 = vmatpush1.msra.mxu0 0.0
          %1293 = vmatprep.subr.mxu0 0.0
          %1294 = vmatpush1.msra.mxu0 0.0
          %1295 = vmatprep.subr.mxu0 0.0
          %1296 = vmatpush1.msra.mxu0 0.0
          %1297 = vmatprep.subr.mxu0 0.0
          %1298 = vmatpush1.msra.mxu0 0.0
          %1299 = vmatprep.subr.mxu0 0.0
          %1300 = vmatpush1.msra.mxu0 0.0
          %1301 = vmatprep.subr.mxu0 0.0
          %1302 = vmatpush1.msra.mxu0 0.0
          %1303 = vmatprep.subr.mxu0 0.0
          %1304 = vmatpush1.msra.mxu0 0.0
          %1305 = vmatprep.subr.mxu0 0.0
          %1306 = vmatpush1.msra.mxu0 0.0
          %1307 = vmatprep.mubr.f32.mxu0 0.0
          %1308 = vmatmul.mubr.f32.gmra.mrb[0].mxu0 %v1237
          %v1309 = vpop.f32.mrb[0].mxu0
          %v1310 = vadd.f32 0.0, %v1309
          %v1311 = vpop.f32.mrb[0].mxu0
          %1312 = vdwg.mxu0
          %v1313 = vld [vmem:[%s4] sm:$0xff]
          %v1314 = vld [vmem:[%s4 + $0x8] sm:$0xff]
          %v1315 = vld [vmem:[%s4 + $0x10] sm:$0xff]
          %v1316 = vld [vmem:[%s4 + $0x18] sm:$0xff]
          %vm1317 = vcmask 261120
          %v1319 = vsel %vm1317, %v1229, 0
          %1321 = vmatprep.subr.mxu0 0.0
          %1322 = vmatpush1.msra.mxu0 %v1313
          %1323 = vmatprep.subr.mxu0 0.0
          %1324 = vmatpush1.msra.mxu0 %v1314
          %1325 = vmatprep.subr.mxu0 0.0
          %1326 = vmatpush1.msra.mxu0 %v1315
          %1327 = vmatprep.subr.mxu0 0.0
          %1328 = vmatpush1.msra.mxu0 %v1316
          %1329 = vmatprep.subr.mxu0 0.0
          %1330 = vmatpush1.msra.mxu0 0.0
          %1331 = vmatprep.subr.mxu0 0.0
          %1332 = vmatpush1.msra.mxu0 0.0
          %1333 = vmatprep.subr.mxu0 0.0
          %1334 = vmatpush1.msra.mxu0 0.0
          %1335 = vmatprep.subr.mxu0 0.0
          %1336 = vmatpush1.msra.mxu0 0.0
          %1337 = vmatprep.subr.mxu0 0.0
          %1338 = vmatpush1.msra.mxu0 0.0
          %1339 = vmatprep.subr.mxu0 0.0
          %1340 = vmatpush1.msra.mxu0 0.0
          %1341 = vmatprep.subr.mxu0 0.0
          %1342 = vmatpush1.msra.mxu0 0.0
          %1343 = vmatprep.subr.mxu0 0.0
          %1344 = vmatpush1.msra.mxu0 0.0
          %1345 = vmatprep.subr.mxu0 0.0
          %1346 = vmatpush1.msra.mxu0 0.0
          %1347 = vmatprep.subr.mxu0 0.0
          %1348 = vmatpush1.msra.mxu0 0.0
          %1349 = vmatprep.subr.mxu0 0.0
          %1350 = vmatpush1.msra.mxu0 0.0
          %1351 = vmatprep.subr.mxu0 0.0
          %1352 = vmatpush1.msra.mxu0 0.0
          %1353 = vmatprep.subr.mxu0 0.0
          %1354 = vmatpush1.msra.mxu0 0.0
          %1355 = vmatprep.subr.mxu0 0.0
          %1356 = vmatpush1.msra.mxu0 0.0
          %1357 = vmatprep.subr.mxu0 0.0
          %1358 = vmatpush1.msra.mxu0 0.0
          %1359 = vmatprep.subr.mxu0 0.0
          %1360 = vmatpush1.msra.mxu0 0.0
          %1361 = vmatprep.subr.mxu0 0.0
          %1362 = vmatpush1.msra.mxu0 0.0
          %1363 = vmatprep.subr.mxu0 0.0
          %1364 = vmatpush1.msra.mxu0 0.0
          %1365 = vmatprep.subr.mxu0 0.0
          %1366 = vmatpush1.msra.mxu0 0.0
          %1367 = vmatprep.subr.mxu0 0.0
          %1368 = vmatpush1.msra.mxu0 0.0
          %1369 = vmatprep.subr.mxu0 0.0
          %1370 = vmatpush1.msra.mxu0 0.0
          %1371 = vmatprep.subr.mxu0 0.0
          %1372 = vmatpush1.msra.mxu0 0.0
          %1373 = vmatprep.subr.mxu0 0.0
          %1374 = vmatpush1.msra.mxu0 0.0
          %1375 = vmatprep.subr.mxu0 0.0
          %1376 = vmatpush1.msra.mxu0 0.0
          %1377 = vmatprep.subr.mxu0 0.0
          %1378 = vmatpush1.msra.mxu0 0.0
          %1379 = vmatprep.subr.mxu0 0.0
          %1380 = vmatpush1.msra.mxu0 0.0
          %1381 = vmatprep.subr.mxu0 0.0
          %1382 = vmatpush1.msra.mxu0 0.0
          %1383 = vmatprep.subr.mxu0 0.0
          %1384 = vmatpush1.msra.mxu0 0.0
          %1385 = vmatprep.mubr.f32.mxu0 0.0
          %1386 = vmatmul.mubr.f32.gmra.mrb[0].mxu0 %v1319
          %v1387 = vpop.f32.mrb[0].mxu0
          %v1388 = vadd.f32 %v1195, %v1387
          %v1389 = vpop.f32.mrb[0].mxu0
          %1390 = vdwg.mxu0
          %v1391 = vtanh.pop %v1388
          %v1392 = vld [vmem:[%s6] sm:$0xff]
          %v1393 = vld [vmem:[%s6 + $0x8] sm:$0xff]
          %v1394 = vld [vmem:[%s6 + $0x10] sm:$0xff]
          %v1395 = vld [vmem:[%s6 + $0x18] sm:$0xff]
          %v1396 = vld [vmem:[%s6 + $0x20] sm:$0xff]
          %v1397 = vld [vmem:[%s6 + $0x28] sm:$0xff]
          %v1398 = vld [vmem:[%s6 + $0x30] sm:$0xff]
          %v1399 = vld [vmem:[%s6 + $0x38] sm:$0xff]
          %v1400 = vld [vmem:[%s6 + $0x40] sm:$0xff]
          %v1401 = vld [vmem:[%s6 + $0x48] sm:$0xff]
          %v1402 = vld [vmem:[%s6 + $0x50] sm:$0xff]
          %v1403 = vld [vmem:[%s6 + $0x58] sm:$0xff]
          %v1404 = vld [vmem:[%s6 + $0x60] sm:$0xff]
          %v1405 = vld [vmem:[%s6 + $0x68] sm:$0xff]
          %v1406 = vld [vmem:[%s6 + $0x70] sm:$0xff]
          %v1407 = vld [vmem:[%s6 + $0x78] sm:$0xff]
          %1408 = vmatprep.subr.mxu0 0.0
          %1409 = vmatpush1.msra.mxu0 %v1392
          %1410 = vmatprep.subr.mxu0 0.0
          %1411 = vmatpush1.msra.mxu0 %v1393
          %1412 = vmatprep.subr.mxu0 0.0
          %1413 = vmatpush1.msra.mxu0 %v1394
          %1414 = vmatprep.subr.mxu0 0.0
          %1415 = vmatpush1.msra.mxu0 %v1395
          %1416 = vmatprep.subr.mxu0 0.0
          %1417 = vmatpush1.msra.mxu0 %v1396
          %1418 = vmatprep.subr.mxu0 0.0
          %1419 = vmatpush1.msra.mxu0 %v1397
          %1420 = vmatprep.subr.mxu0 0.0
          %1421 = vmatpush1.msra.mxu0 %v1398
          %1422 = vmatprep.subr.mxu0 0.0
          %1423 = vmatpush1.msra.mxu0 %v1399
          %1424 = vmatprep.subr.mxu0 0.0
          %1425 = vmatpush1.msra.mxu0 %v1400
          %1426 = vmatprep.subr.mxu0 0.0
          %1427 = vmatpush1.msra.mxu0 %v1401
          %1428 = vmatprep.subr.mxu0 0.0
          %1429 = vmatpush1.msra.mxu0 %v1402
          %1430 = vmatprep.subr.mxu0 0.0
          %1431 = vmatpush1.msra.mxu0 %v1403
          %1432 = vmatprep.subr.mxu0 0.0
          %1433 = vmatpush1.msra.mxu0 %v1404
          %1434 = vmatprep.subr.mxu0 0.0
          %1435 = vmatpush1.msra.mxu0 %v1405
          %1436 = vmatprep.subr.mxu0 0.0
          %1437 = vmatpush1.msra.mxu0 %v1406
          %1438 = vmatprep.subr.mxu0 0.0
          %1439 = vmatpush1.msra.mxu0 %v1407
          %1440 = vmatprep.subr.mxu0 0.0
          %1441 = vmatpush1.msra.mxu0 0.0
          %1442 = vmatprep.subr.mxu0 0.0
          %1443 = vmatpush1.msra.mxu0 0.0
          %1444 = vmatprep.subr.mxu0 0.0
          %1445 = vmatpush1.msra.mxu0 0.0
          %1446 = vmatprep.subr.mxu0 0.0
          %1447 = vmatpush1.msra.mxu0 0.0
          %1448 = vmatprep.subr.mxu0 0.0
          %1449 = vmatpush1.msra.mxu0 0.0
          %1450 = vmatprep.subr.mxu0 0.0
          %1451 = vmatpush1.msra.mxu0 0.0
          %1452 = vmatprep.subr.mxu0 0.0
          %1453 = vmatpush1.msra.mxu0 0.0
          %1454 = vmatprep.subr.mxu0 0.0
          %1455 = vmatpush1.msra.mxu0 0.0
          %1456 = vmatprep.subr.mxu0 0.0
          %1457 = vmatpush1.msra.mxu0 0.0
          %1458 = vmatprep.subr.mxu0 0.0
          %1459 = vmatpush1.msra.mxu0 0.0
          %1460 = vmatprep.subr.mxu0 0.0
          %1461 = vmatpush1.msra.mxu0 0.0
          %1462 = vmatprep.subr.mxu0 0.0
          %1463 = vmatpush1.msra.mxu0 0.0
          %1464 = vmatprep.subr.mxu0 0.0
          %1465 = vmatpush1.msra.mxu0 0.0
          %1466 = vmatprep.subr.mxu0 0.0
          %1467 = vmatpush1.msra.mxu0 0.0
          %1468 = vmatprep.subr.mxu0 0.0
          %1469 = vmatpush1.msra.mxu0 0.0
          %1470 = vmatprep.subr.mxu0 0.0
          %1471 = vmatpush1.msra.mxu0 0.0
          %1472 = vmatprep.mubr.f32.mxu0 0.0
          %1473 = vmatmul.mubr.f32.gmra.mrb[0].mxu0 %v1391
          %v1474 = vpop.f32.mrb[0].mxu0
          %v1475 = vadd.f32 %v1202, %v1474
          %v1476 = vpop.f32.mrb[0].mxu0
          %1477 = vdwg.mxu0
          %v1478 = vtanh.pop %v1475
          %v1479 = vld [vmem:[%s8] sm:$0xff]
          %v1480 = vld [vmem:[%s8 + $0x8] sm:$0xff]
          %v1481 = vld [vmem:[%s8 + $0x10] sm:$0xff]
          %v1482 = vld [vmem:[%s8 + $0x18] sm:$0xff]
          %v1483 = vld [vmem:[%s8 + $0x20] sm:$0xff]
          %v1484 = vld [vmem:[%s8 + $0x28] sm:$0xff]
          %v1485 = vld [vmem:[%s8 + $0x30] sm:$0xff]
          %v1486 = vld [vmem:[%s8 + $0x38] sm:$0xff]
          %v1487 = vld [vmem:[%s8 + $0x40] sm:$0xff]
          %v1488 = vld [vmem:[%s8 + $0x48] sm:$0xff]
          %v1489 = vld [vmem:[%s8 + $0x50] sm:$0xff]
          %v1490 = vld [vmem:[%s8 + $0x58] sm:$0xff]
          %v1491 = vld [vmem:[%s8 + $0x60] sm:$0xff]
          %v1492 = vld [vmem:[%s8 + $0x68] sm:$0xff]
          %v1493 = vld [vmem:[%s8 + $0x70] sm:$0xff]
          %v1494 = vld [vmem:[%s8 + $0x78] sm:$0xff]
          %1495 = vmatprep.subr.mxu0 0.0
          %1496 = vmatpush1.msra.mxu0 %v1479
          %1497 = vmatprep.subr.mxu0 0.0
          %1498 = vmatpush1.msra.mxu0 %v1480
          %1499 = vmatprep.subr.mxu0 0.0
          %1500 = vmatpush1.msra.mxu0 %v1481
          %1501 = vmatprep.subr.mxu0 0.0
          %1502 = vmatpush1.msra.mxu0 %v1482
          %1503 = vmatprep.subr.mxu0 0.0
          %1504 = vmatpush1.msra.mxu0 %v1483
          %1505 = vmatprep.subr.mxu0 0.0
          %1506 = vmatpush1.msra.mxu0 %v1484
          %1507 = vmatprep.subr.mxu0 0.0
          %1508 = vmatpush1.msra.mxu0 %v1485
          %1509 = vmatprep.subr.mxu0 0.0
          %1510 = vmatpush1.msra.mxu0 %v1486
          %1511 = vmatprep.subr.mxu0 0.0
          %1512 = vmatpush1.msra.mxu0 %v1487
          %1513 = vmatprep.subr.mxu0 0.0
          %1514 = vmatpush1.msra.mxu0 %v1488
          %1515 = vmatprep.subr.mxu0 0.0
          %1516 = vmatpush1.msra.mxu0 %v1489
          %1517 = vmatprep.subr.mxu0 0.0
          %1518 = vmatpush1.msra.mxu0 %v1490
          %1519 = vmatprep.subr.mxu0 0.0
          %1520 = vmatpush1.msra.mxu0 %v1491
          %1521 = vmatprep.subr.mxu0 0.0
          %1522 = vmatpush1.msra.mxu0 %v1492
          %1523 = vmatprep.subr.mxu0 0.0
          %1524 = vmatpush1.msra.mxu0 %v1493
          %1525 = vmatprep.subr.mxu0 0.0
          %1526 = vmatpush1.msra.mxu0 %v1494
          %1527 = vmatprep.subr.mxu0 0.0
          %1528 = vmatpush1.msra.mxu0 0.0
          %1529 = vmatprep.subr.mxu0 0.0
          %1530 = vmatpush1.msra.mxu0 0.0
          %1531 = vmatprep.subr.mxu0 0.0
          %1532 = vmatpush1.msra.mxu0 0.0
          %1533 = vmatprep.subr.mxu0 0.0
          %1534 = vmatpush1.msra.mxu0 0.0
          %1535 = vmatprep.subr.mxu0 0.0
          %1536 = vmatpush1.msra.mxu0 0.0
          %1537 = vmatprep.subr.mxu0 0.0
          %1538 = vmatpush1.msra.mxu0 0.0
          %1539 = vmatprep.subr.mxu0 0.0
          %1540 = vmatpush1.msra.mxu0 0.0
          %1541 = vmatprep.subr.mxu0 0.0
          %1542 = vmatpush1.msra.mxu0 0.0
          %1543 = vmatprep.subr.mxu0 0.0
          %1544 = vmatpush1.msra.mxu0 0.0
          %1545 = vmatprep.subr.mxu0 0.0
          %1546 = vmatpush1.msra.mxu0 0.0
          %1547 = vmatprep.subr.mxu0 0.0
          %1548 = vmatpush1.msra.mxu0 0.0
          %1549 = vmatprep.subr.mxu0 0.0
          %1550 = vmatpush1.msra.mxu0 0.0
          %1551 = vmatprep.subr.mxu0 0.0
          %1552 = vmatpush1.msra.mxu0 0.0
          %1553 = vmatprep.subr.mxu0 0.0
          %1554 = vmatpush1.msra.mxu0 0.0
          %1555 = vmatprep.subr.mxu0 0.0
          %1556 = vmatpush1.msra.mxu0 0.0
          %1557 = vmatprep.subr.mxu0 0.0
          %1558 = vmatpush1.msra.mxu0 0.0
          %1559 = vmatprep.mubr.f32.mxu0 0.0
          %1560 = vmatmul.mubr.f32.gmra.mrb[0].mxu0 %v1478
          %v1561 = vpop.f32.mrb[0].mxu0
          %v1562 = vadd.f32 %v1209, %v1561
          %v1563 = vpop.f32.mrb[0].mxu0
          %1564 = vdwg.mxu0
          %v1565 = vtanh.pop %v1562
          %v1566 = vld [vmem:[%s10] sm:$0xff]
          %v1567 = vld [vmem:[%s10 + $0x8] sm:$0xff]
          %v1568 = vld [vmem:[%s10 + $0x10] sm:$0xff]
          %v1569 = vld [vmem:[%s10 + $0x18] sm:$0xff]
          %v1570 = vld [vmem:[%s10 + $0x20] sm:$0xff]
          %v1571 = vld [vmem:[%s10 + $0x28] sm:$0xff]
          %v1572 = vld [vmem:[%s10 + $0x30] sm:$0xff]
          %v1573 = vld [vmem:[%s10 + $0x38] sm:$0xff]
          %v1574 = vld [vmem:[%s10 + $0x40] sm:$0xff]
          %v1575 = vld [vmem:[%s10 + $0x48] sm:$0xff]
          %v1576 = vld [vmem:[%s10 + $0x50] sm:$0xff]
          %v1577 = vld [vmem:[%s10 + $0x58] sm:$0xff]
          %v1578 = vld [vmem:[%s10 + $0x60] sm:$0xff]
          %v1579 = vld [vmem:[%s10 + $0x68] sm:$0xff]
          %v1580 = vld [vmem:[%s10 + $0x70] sm:$0xff]
          %v1581 = vld [vmem:[%s10 + $0x78] sm:$0xff]
          %1582 = vmatprep.subr.mxu0 0.0
          %1583 = vmatpush1.msra.mxu0 %v1566
          %1584 = vmatprep.subr.mxu0 0.0
          %1585 = vmatpush1.msra.mxu0 %v1567
          %1586 = vmatprep.subr.mxu0 0.0
          %1587 = vmatpush1.msra.mxu0 %v1568
          %1588 = vmatprep.subr.mxu0 0.0
          %1589 = vmatpush1.msra.mxu0 %v1569
          %1590 = vmatprep.subr.mxu0 0.0
          %1591 = vmatpush1.msra.mxu0 %v1570
          %1592 = vmatprep.subr.mxu0 0.0
          %1593 = vmatpush1.msra.mxu0 %v1571
          %1594 = vmatprep.subr.mxu0 0.0
          %1595 = vmatpush1.msra.mxu0 %v1572
          %1596 = vmatprep.subr.mxu0 0.0
          %1597 = vmatpush1.msra.mxu0 %v1573
          %1598 = vmatprep.subr.mxu0 0.0
          %1599 = vmatpush1.msra.mxu0 %v1574
          %1600 = vmatprep.subr.mxu0 0.0
          %1601 = vmatpush1.msra.mxu0 %v1575
          %1602 = vmatprep.subr.mxu0 0.0
          %1603 = vmatpush1.msra.mxu0 %v1576
          %1604 = vmatprep.subr.mxu0 0.0
          %1605 = vmatpush1.msra.mxu0 %v1577
          %1606 = vmatprep.subr.mxu0 0.0
          %1607 = vmatpush1.msra.mxu0 %v1578
          %1608 = vmatprep.subr.mxu0 0.0
          %1609 = vmatpush1.msra.mxu0 %v1579
          %1610 = vmatprep.subr.mxu0 0.0
          %1611 = vmatpush1.msra.mxu0 %v1580
          %1612 = vmatprep.subr.mxu0 0.0
          %1613 = vmatpush1.msra.mxu0 %v1581
          %1614 = vmatprep.subr.mxu0 0.0
          %1615 = vmatpush1.msra.mxu0 0.0
          %1616 = vmatprep.subr.mxu0 0.0
          %1617 = vmatpush1.msra.mxu0 0.0
          %1618 = vmatprep.subr.mxu0 0.0
          %1619 = vmatpush1.msra.mxu0 0.0
          %1620 = vmatprep.subr.mxu0 0.0
          %1621 = vmatpush1.msra.mxu0 0.0
          %1622 = vmatprep.subr.mxu0 0.0
          %1623 = vmatpush1.msra.mxu0 0.0
          %1624 = vmatprep.subr.mxu0 0.0
          %1625 = vmatpush1.msra.mxu0 0.0
          %1626 = vmatprep.subr.mxu0 0.0
          %1627 = vmatpush1.msra.mxu0 0.0
          %1628 = vmatprep.subr.mxu0 0.0
          %1629 = vmatpush1.msra.mxu0 0.0
          %1630 = vmatprep.subr.mxu0 0.0
          %1631 = vmatpush1.msra.mxu0 0.0
          %1632 = vmatprep.subr.mxu0 0.0
          %1633 = vmatpush1.msra.mxu0 0.0
          %1634 = vmatprep.subr.mxu0 0.0
          %1635 = vmatpush1.msra.mxu0 0.0
          %1636 = vmatprep.subr.mxu0 0.0
          %1637 = vmatpush1.msra.mxu0 0.0
          %1638 = vmatprep.subr.mxu0 0.0
          %1639 = vmatpush1.msra.mxu0 0.0
          %1640 = vmatprep.subr.mxu0 0.0
          %1641 = vmatpush1.msra.mxu0 0.0
          %1642 = vmatprep.subr.mxu0 0.0
          %1643 = vmatpush1.msra.mxu0 0.0
          %1644 = vmatprep.subr.mxu0 0.0
          %1645 = vmatpush1.msra.mxu0 0.0
          %1646 = vmatprep.mubr.f32.mxu0 0.0
          %1647 = vmatmul.mubr.f32.gmra.mrb[0].mxu0 %v1565
          %v1648 = vpop.f32.mrb[0].mxu0
          %v1649 = vadd.f32 %v1216, %v1648
          %v1650 = vpop.f32.mrb[0].mxu0
          %1651 = vdwg.mxu0
          %v1652 = vmul.f32 %v1649, %v1310
          %v1653 = vld [vmem:[%s13] sm:$0xff]
          %v1654 = vld [vmem:[%s13 + $0x8] sm:$0xff]
          %v1655 = vld [vmem:[%s13 + $0x10] sm:$0xff]
          %v1656 = vld [vmem:[%s13 + $0x18] sm:$0xff]
          %v1657 = vld [vmem:[%s13 + $0x20] sm:$0xff]
          %v1658 = vld [vmem:[%s13 + $0x28] sm:$0xff]
          %v1659 = vld [vmem:[%s13 + $0x30] sm:$0xff]
          %v1660 = vld [vmem:[%s13 + $0x38] sm:$0xff]
          %v1661 = vld [vmem:[%s13 + $0x40] sm:$0xff]
          %v1662 = vld [vmem:[%s13 + $0x48] sm:$0xff]
          %v1663 = vld [vmem:[%s13 + $0x50] sm:$0xff]
          %v1664 = vld [vmem:[%s13 + $0x58] sm:$0xff]
          %v1665 = vld [vmem:[%s13 + $0x60] sm:$0xff]
          %v1666 = vld [vmem:[%s13 + $0x68] sm:$0xff]
          %v1667 = vld [vmem:[%s13 + $0x70] sm:$0xff]
          %v1668 = vld [vmem:[%s13 + $0x78] sm:$0xff]
          %1669 = vmatprep.subr.mxu0 0.0
          %1670 = vmatpush1.msra.mxu0 %v1653
          %1671 = vmatprep.subr.mxu0 0.0
          %1672 = vmatpush1.msra.mxu0 %v1654
          %1673 = vmatprep.subr.mxu0 0.0
          %1674 = vmatpush1.msra.mxu0 %v1655
          %1675 = vmatprep.subr.mxu0 0.0
          %1676 = vmatpush1.msra.mxu0 %v1656
          %1677 = vmatprep.subr.mxu0 0.0
          %1678 = vmatpush1.msra.mxu0 %v1657
          %1679 = vmatprep.subr.mxu0 0.0
          %1680 = vmatpush1.msra.mxu0 %v1658
          %1681 = vmatprep.subr.mxu0 0.0
          %1682 = vmatpush1.msra.mxu0 %v1659
          %1683 = vmatprep.subr.mxu0 0.0
          %1684 = vmatpush1.msra.mxu0 %v1660
          %1685 = vmatprep.subr.mxu0 0.0
          %1686 = vmatpush1.msra.mxu0 %v1661
          %1687 = vmatprep.subr.mxu0 0.0
          %1688 = vmatpush1.msra.mxu0 %v1662
          %1689 = vmatprep.subr.mxu0 0.0
          %1690 = vmatpush1.msra.mxu0 %v1663
          %1691 = vmatprep.subr.mxu0 0.0
          %1692 = vmatpush1.msra.mxu0 %v1664
          %1693 = vmatprep.subr.mxu0 0.0
          %1694 = vmatpush1.msra.mxu0 %v1665
          %1695 = vmatprep.subr.mxu0 0.0
          %1696 = vmatpush1.msra.mxu0 %v1666
          %1697 = vmatprep.subr.mxu0 0.0
          %1698 = vmatpush1.msra.mxu0 %v1667
          %1699 = vmatprep.subr.mxu0 0.0
          %1700 = vmatpush1.msra.mxu0 %v1668
          %1701 = vmatprep.subr.mxu0 0.0
          %1702 = vmatpush1.msra.mxu0 0.0
          %1703 = vmatprep.subr.mxu0 0.0
          %1704 = vmatpush1.msra.mxu0 0.0
          %1705 = vmatprep.subr.mxu0 0.0
          %1706 = vmatpush1.msra.mxu0 0.0
          %1707 = vmatprep.subr.mxu0 0.0
          %1708 = vmatpush1.msra.mxu0 0.0
          %1709 = vmatprep.subr.mxu0 0.0
          %1710 = vmatpush1.msra.mxu0 0.0
          %1711 = vmatprep.subr.mxu0 0.0
          %1712 = vmatpush1.msra.mxu0 0.0
          %1713 = vmatprep.subr.mxu0 0.0
          %1714 = vmatpush1.msra.mxu0 0.0
          %1715 = vmatprep.subr.mxu0 0.0
          %1716 = vmatpush1.msra.mxu0 0.0
          %1717 = vmatprep.subr.mxu0 0.0
          %1718 = vmatpush1.msra.mxu0 0.0
          %1719 = vmatprep.subr.mxu0 0.0
          %1720 = vmatpush1.msra.mxu0 0.0
          %1721 = vmatprep.subr.mxu0 0.0
          %1722 = vmatpush1.msra.mxu0 0.0
          %1723 = vmatprep.subr.mxu0 0.0
          %1724 = vmatpush1.msra.mxu0 0.0
          %1725 = vmatprep.subr.mxu0 0.0
          %1726 = vmatpush1.msra.mxu0 0.0
          %1727 = vmatprep.subr.mxu0 0.0
          %1728 = vmatpush1.msra.mxu0 0.0
          %1729 = vmatprep.subr.mxu0 0.0
          %1730 = vmatpush1.msra.mxu0 0.0
          %1731 = vmatprep.subr.mxu0 0.0
          %1732 = vmatpush1.msra.mxu0 0.0
          %1733 = vmatprep.mubr.f32.mxu0 0.0
          %1734 = vmatmul.mubr.f32.gmra.mrb[0].mxu0 %v1652
          %v1735 = vpop.f32.mrb[0].mxu0
          %v1736 = vadd.f32 0.0, %v1735
          %v1737 = vpop.f32.mrb[0].mxu0
          %1738 = vdwg.mxu0
          %v1739 = vmul.f32 %v1736, 0.33333334
          %v1740 = vadd.f32 %v1229, %v1739
          %s1741 = sadd.s32 %s1230, 1
          %s1742 = smul.u32 %s1741, 8
          %s1743 = scalar_lea.vmem %s1038, %s1742 [#allocation3]
          %v1744 = vld [vmem:[%s1743] sm:$0xff]
          %v1746 = vsel %vm1235, %v1744, 0
          %1748 = vmatprep.subr.mxu0 0.0
          %1749 = vmatpush1.msra.mxu0 %v1241
          %1750 = vmatprep.subr.mxu0 0.0
          %1751 = vmatpush1.msra.mxu0 0.0
          %1752 = vmatprep.subr.mxu0 0.0
          %1753 = vmatpush1.msra.mxu0 0.0
          %1754 = vmatprep.subr.mxu0 0.0
          %1755 = vmatpush1.msra.mxu0 0.0
          %1756 = vmatprep.subr.mxu0 0.0
          %1757 = vmatpush1.msra.mxu0 0.0
          %1758 = vmatprep.subr.mxu0 0.0
          %1759 = vmatpush1.msra.mxu0 0.0
          %1760 = vmatprep.subr.mxu0 0.0
          %1761 = vmatpush1.msra.mxu0 0.0
          %1762 = vmatprep.subr.mxu0 0.0
          %1763 = vmatpush1.msra.mxu0 0.0
          %1764 = vmatprep.subr.mxu0 0.0
          %1765 = vmatpush1.msra.mxu0 0.0
          %1766 = vmatprep.subr.mxu0 0.0
          %1767 = vmatpush1.msra.mxu0 0.0
          %1768 = vmatprep.subr.mxu0 0.0
          %1769 = vmatpush1.msra.mxu0 0.0
          %1770 = vmatprep.subr.mxu0 0.0
          %1771 = vmatpush1.msra.mxu0 0.0
          %1772 = vmatprep.subr.mxu0 0.0
          %1773 = vmatpush1.msra.mxu0 0.0
          %1774 = vmatprep.subr.mxu0 0.0
          %1775 = vmatpush1.msra.mxu0 0.0
          %1776 = vmatprep.subr.mxu0 0.0
          %1777 = vmatpush1.msra.mxu0 0.0
          %1778 = vmatprep.subr.mxu0 0.0
          %1779 = vmatpush1.msra.mxu0 0.0
          %1780 = vmatprep.subr.mxu0 0.0
          %1781 = vmatpush1.msra.mxu0 0.0
          %1782 = vmatprep.subr.mxu0 0.0
          %1783 = vmatpush1.msra.mxu0 0.0
          %1784 = vmatprep.subr.mxu0 0.0
          %1785 = vmatpush1.msra.mxu0 0.0
          %1786 = vmatprep.subr.mxu0 0.0
          %1787 = vmatpush1.msra.mxu0 0.0
          %1788 = vmatprep.subr.mxu0 0.0
          %1789 = vmatpush1.msra.mxu0 0.0
          %1790 = vmatprep.subr.mxu0 0.0
          %1791 = vmatpush1.msra.mxu0 0.0
          %1792 = vmatprep.subr.mxu0 0.0
          %1793 = vmatpush1.msra.mxu0 0.0
          %1794 = vmatprep.subr.mxu0 0.0
          %1795 = vmatpush1.msra.mxu0 0.0
          %1796 = vmatprep.subr.mxu0 0.0
          %1797 = vmatpush1.msra.mxu0 0.0
          %1798 = vmatprep.subr.mxu0 0.0
          %1799 = vmatpush1.msra.mxu0 0.0
          %1800 = vmatprep.subr.mxu0 0.0
          %1801 = vmatpush1.msra.mxu0 0.0
          %1802 = vmatprep.subr.mxu0 0.0
          %1803 = vmatpush1.msra.mxu0 0.0
          %1804 = vmatprep.subr.mxu0 0.0
          %1805 = vmatpush1.msra.mxu0 0.0
          %1806 = vmatprep.subr.mxu0 0.0
          %1807 = vmatpush1.msra.mxu0 0.0
          %1808 = vmatprep.subr.mxu0 0.0
          %1809 = vmatpush1.msra.mxu0 0.0
          %1810 = vmatprep.subr.mxu0 0.0
          %1811 = vmatpush1.msra.mxu0 0.0
          %1812 = vmatprep.mubr.f32.mxu0 0.0
          %1813 = vmatmul.mubr.f32.gmra.mrb[0].mxu0 %v1746
          %v1814 = vpop.f32.mrb[0].mxu0
          %v1815 = vadd.f32 0.0, %v1814
          %v1816 = vpop.f32.mrb[0].mxu0
          %1817 = vdwg.mxu0
          %v1819 = vsel %vm1317, %v1740, 0
          %1821 = vmatprep.subr.mxu0 0.0
          %1822 = vmatpush1.msra.mxu0 %v1313
          %1823 = vmatprep.subr.mxu0 0.0
          %1824 = vmatpush1.msra.mxu0 %v1314
          %1825 = vmatprep.subr.mxu0 0.0
          %1826 = vmatpush1.msra.mxu0 %v1315
          %1827 = vmatprep.subr.mxu0 0.0
          %1828 = vmatpush1.msra.mxu0 %v1316
          %1829 = vmatprep.subr.mxu0 0.0
          %1830 = vmatpush1.msra.mxu0 0.0
          %1831 = vmatprep.subr.mxu0 0.0
          %1832 = vmatpush1.msra.mxu0 0.0
          %1833 = vmatprep.subr.mxu0 0.0
          %1834 = vmatpush1.msra.mxu0 0.0
          %1835 = vmatprep.subr.mxu0 0.0
          %1836 = vmatpush1.msra.mxu0 0.0
          %1837 = vmatprep.subr.mxu0 0.0
          %1838 = vmatpush1.msra.mxu0 0.0
          %1839 = vmatprep.subr.mxu0 0.0
          %1840 = vmatpush1.msra.mxu0 0.0
          %1841 = vmatprep.subr.mxu0 0.0
          %1842 = vmatpush1.msra.mxu0 0.0
          %1843 = vmatprep.subr.mxu0 0.0
          %1844 = vmatpush1.msra.mxu0 0.0
          %1845 = vmatprep.subr.mxu0 0.0
          %1846 = vmatpush1.msra.mxu0 0.0
          %1847 = vmatprep.subr.mxu0 0.0
          %1848 = vmatpush1.msra.mxu0 0.0
          %1849 = vmatprep.subr.mxu0 0.0
          %1850 = vmatpush1.msra.mxu0 0.0
          %1851 = vmatprep.subr.mxu0 0.0
          %1852 = vmatpush1.msra.mxu0 0.0
          %1853 = vmatprep.subr.mxu0 0.0
          %1854 = vmatpush1.msra.mxu0 0.0
          %1855 = vmatprep.subr.mxu0 0.0
          %1856 = vmatpush1.msra.mxu0 0.0
          %1857 = vmatprep.subr.mxu0 0.0
          %1858 = vmatpush1.msra.mxu0 0.0
          %1859 = vmatprep.subr.mxu0 0.0
          %1860 = vmatpush1.msra.mxu0 0.0
          %1861 = vmatprep.subr.mxu0 0.0
          %1862 = vmatpush1.msra.mxu0 0.0
          %1863 = vmatprep.subr.mxu0 0.0
          %1864 = vmatpush1.msra.mxu0 0.0
          %1865 = vmatprep.subr.mxu0 0.0
          %1866 = vmatpush1.msra.mxu0 0.0
          %1867 = vmatprep.subr.mxu0 0.0
          %1868 = vmatpush1.msra.mxu0 0.0
          %1869 = vmatprep.subr.mxu0 0.0
          %1870 = vmatpush1.msra.mxu0 0.0
          %1871 = vmatprep.subr.mxu0 0.0
          %1872 = vmatpush1.msra.mxu0 0.0
          %1873 = vmatprep.subr.mxu0 0.0
          %1874 = vmatpush1.msra.mxu0 0.0
          %1875 = vmatprep.subr.mxu0 0.0
          %1876 = vmatpush1.msra.mxu0 0.0
          %1877 = vmatprep.subr.mxu0 0.0
          %1878 = vmatpush1.msra.mxu0 0.0
          %1879 = vmatprep.subr.mxu0 0.0
          %1880 = vmatpush1.msra.mxu0 0.0
          %1881 = vmatprep.subr.mxu0 0.0
          %1882 = vmatpush1.msra.mxu0 0.0
          %1883 = vmatprep.subr.mxu0 0.0
          %1884 = vmatpush1.msra.mxu0 0.0
          %1885 = vmatprep.mubr.f32.mxu0 0.0
          %1886 = vmatmul.mubr.f32.gmra.mrb[0].mxu0 %v1819
          %v1887 = vpop.f32.mrb[0].mxu0
          %v1888 = vadd.f32 %v1195, %v1887
          %v1889 = vpop.f32.mrb[0].mxu0
          %1890 = vdwg.mxu0
          %v1891 = vtanh.pop %v1888
          %1892 = vmatprep.subr.mxu0 0.0
          %1893 = vmatpush1.msra.mxu0 %v1392
          %1894 = vmatprep.subr.mxu0 0.0
          %1895 = vmatpush1.msra.mxu0 %v1393
          %1896 = vmatprep.subr.mxu0 0.0
          %1897 = vmatpush1.msra.mxu0 %v1394
          %1898 = vmatprep.subr.mxu0 0.0
          %1899 = vmatpush1.msra.mxu0 %v1395
          %1900 = vmatprep.subr.mxu0 0.0
          %1901 = vmatpush1.msra.mxu0 %v1396
          %1902 = vmatprep.subr.mxu0 0.0
          %1903 = vmatpush1.msra.mxu0 %v1397
          %1904 = vmatprep.subr.mxu0 0.0
          %1905 = vmatpush1.msra.mxu0 %v1398
          %1906 = vmatprep.subr.mxu0 0.0
          %1907 = vmatpush1.msra.mxu0 %v1399
          %1908 = vmatprep.subr.mxu0 0.0
          %1909 = vmatpush1.msra.mxu0 %v1400
          %1910 = vmatprep.subr.mxu0 0.0
          %1911 = vmatpush1.msra.mxu0 %v1401
          %1912 = vmatprep.subr.mxu0 0.0
          %1913 = vmatpush1.msra.mxu0 %v1402
          %1914 = vmatprep.subr.mxu0 0.0
          %1915 = vmatpush1.msra.mxu0 %v1403
          %1916 = vmatprep.subr.mxu0 0.0
          %1917 = vmatpush1.msra.mxu0 %v1404
          %1918 = vmatprep.subr.mxu0 0.0
          %1919 = vmatpush1.msra.mxu0 %v1405
          %1920 = vmatprep.subr.mxu0 0.0
          %1921 = vmatpush1.msra.mxu0 %v1406
          %1922 = vmatprep.subr.mxu0 0.0
          %1923 = vmatpush1.msra.mxu0 %v1407
          %1924 = vmatprep.subr.mxu0 0.0
          %1925 = vmatpush1.msra.mxu0 0.0
          %1926 = vmatprep.subr.mxu0 0.0
          %1927 = vmatpush1.msra.mxu0 0.0
          %1928 = vmatprep.subr.mxu0 0.0
          %1929 = vmatpush1.msra.mxu0 0.0
          %1930 = vmatprep.subr.mxu0 0.0
          %1931 = vmatpush1.msra.mxu0 0.0
          %1932 = vmatprep.subr.mxu0 0.0
          %1933 = vmatpush1.msra.mxu0 0.0
          %1934 = vmatprep.subr.mxu0 0.0
          %1935 = vmatpush1.msra.mxu0 0.0
          %1936 = vmatprep.subr.mxu0 0.0
          %1937 = vmatpush1.msra.mxu0 0.0
          %1938 = vmatprep.subr.mxu0 0.0
          %1939 = vmatpush1.msra.mxu0 0.0
          %1940 = vmatprep.subr.mxu0 0.0
          %1941 = vmatpush1.msra.mxu0 0.0
          %1942 = vmatprep.subr.mxu0 0.0
          %1943 = vmatpush1.msra.mxu0 0.0
          %1944 = vmatprep.subr.mxu0 0.0
          %1945 = vmatpush1.msra.mxu0 0.0
          %1946 = vmatprep.subr.mxu0 0.0
          %1947 = vmatpush1.msra.mxu0 0.0
          %1948 = vmatprep.subr.mxu0 0.0
          %1949 = vmatpush1.msra.mxu0 0.0
          %1950 = vmatprep.subr.mxu0 0.0
          %1951 = vmatpush1.msra.mxu0 0.0
          %1952 = vmatprep.subr.mxu0 0.0
          %1953 = vmatpush1.msra.mxu0 0.0
          %1954 = vmatprep.subr.mxu0 0.0
          %1955 = vmatpush1.msra.mxu0 0.0
          %1956 = vmatprep.mubr.f32.mxu0 0.0
          %1957 = vmatmul.mubr.f32.gmra.mrb[0].mxu0 %v1891
          %v1958 = vpop.f32.mrb[0].mxu0
          %v1959 = vadd.f32 %v1202, %v1958
          %v1960 = vpop.f32.mrb[0].mxu0
          %1961 = vdwg.mxu0
          %v1962 = vtanh.pop %v1959
          %1963 = vmatprep.subr.mxu0 0.0
          %1964 = vmatpush1.msra.mxu0 %v1479
          %1965 = vmatprep.subr.mxu0 0.0
          %1966 = vmatpush1.msra.mxu0 %v1480
          %1967 = vmatprep.subr.mxu0 0.0
          %1968 = vmatpush1.msra.mxu0 %v1481
          %1969 = vmatprep.subr.mxu0 0.0
          %1970 = vmatpush1.msra.mxu0 %v1482
          %1971 = vmatprep.subr.mxu0 0.0
          %1972 = vmatpush1.msra.mxu0 %v1483
          %1973 = vmatprep.subr.mxu0 0.0
          %1974 = vmatpush1.msra.mxu0 %v1484
          %1975 = vmatprep.subr.mxu0 0.0
          %1976 = vmatpush1.msra.mxu0 %v1485
          %1977 = vmatprep.subr.mxu0 0.0
          %1978 = vmatpush1.msra.mxu0 %v1486
          %1979 = vmatprep.subr.mxu0 0.0
          %1980 = vmatpush1.msra.mxu0 %v1487
          %1981 = vmatprep.subr.mxu0 0.0
          %1982 = vmatpush1.msra.mxu0 %v1488
          %1983 = vmatprep.subr.mxu0 0.0
          %1984 = vmatpush1.msra.mxu0 %v1489
          %1985 = vmatprep.subr.mxu0 0.0
          %1986 = vmatpush1.msra.mxu0 %v1490
          %1987 = vmatprep.subr.mxu0 0.0
          %1988 = vmatpush1.msra.mxu0 %v1491
          %1989 = vmatprep.subr.mxu0 0.0
          %1990 = vmatpush1.msra.mxu0 %v1492
          %1991 = vmatprep.subr.mxu0 0.0
          %1992 = vmatpush1.msra.mxu0 %v1493
          %1993 = vmatprep.subr.mxu0 0.0
          %1994 = vmatpush1.msra.mxu0 %v1494
          %1995 = vmatprep.subr.mxu0 0.0
          %1996 = vmatpush1.msra.mxu0 0.0
          %1997 = vmatprep.subr.mxu0 0.0
          %1998 = vmatpush1.msra.mxu0 0.0
          %1999 = vmatprep.subr.mxu0 0.0
          %2000 = vmatpush1.msra.mxu0 0.0
          %2001 = vmatprep.subr.mxu0 0.0
          %2002 = vmatpush1.msra.mxu0 0.0
          %2003 = vmatprep.subr.mxu0 0.0
          %2004 = vmatpush1.msra.mxu0 0.0
          %2005 = vmatprep.subr.mxu0 0.0
          %2006 = vmatpush1.msra.mxu0 0.0
          %2007 = vmatprep.subr.mxu0 0.0
          %2008 = vmatpush1.msra.mxu0 0.0
          %2009 = vmatprep.subr.mxu0 0.0
          %2010 = vmatpush1.msra.mxu0 0.0
          %2011 = vmatprep.subr.mxu0 0.0
          %2012 = vmatpush1.msra.mxu0 0.0
          %2013 = vmatprep.subr.mxu0 0.0
          %2014 = vmatpush1.msra.mxu0 0.0
          %2015 = vmatprep.subr.mxu0 0.0
          %2016 = vmatpush1.msra.mxu0 0.0
          %2017 = vmatprep.subr.mxu0 0.0
          %2018 = vmatpush1.msra.mxu0 0.0
          %2019 = vmatprep.subr.mxu0 0.0
          %2020 = vmatpush1.msra.mxu0 0.0
          %2021 = vmatprep.subr.mxu0 0.0
          %2022 = vmatpush1.msra.mxu0 0.0
          %2023 = vmatprep.subr.mxu0 0.0
          %2024 = vmatpush1.msra.mxu0 0.0
          %2025 = vmatprep.subr.mxu0 0.0
          %2026 = vmatpush1.msra.mxu0 0.0
          %2027 = vmatprep.mubr.f32.mxu0 0.0
          %2028 = vmatmul.mubr.f32.gmra.mrb[0].mxu0 %v1962
          %v2029 = vpop.f32.mrb[0].mxu0
          %v2030 = vadd.f32 %v1209, %v2029
          %v2031 = vpop.f32.mrb[0].mxu0
          %2032 = vdwg.mxu0
          %v2033 = vtanh.pop %v2030
          %2034 = vmatprep.subr.mxu0 0.0
          %2035 = vmatpush1.msra.mxu0 %v1566
          %2036 = vmatprep.subr.mxu0 0.0
          %2037 = vmatpush1.msra.mxu0 %v1567
          %2038 = vmatprep.subr.mxu0 0.0
          %2039 = vmatpush1.msra.mxu0 %v1568
          %2040 = vmatprep.subr.mxu0 0.0
          %2041 = vmatpush1.msra.mxu0 %v1569
          %2042 = vmatprep.subr.mxu0 0.0
          %2043 = vmatpush1.msra.mxu0 %v1570
          %2044 = vmatprep.subr.mxu0 0.0
          %2045 = vmatpush1.msra.mxu0 %v1571
          %2046 = vmatprep.subr.mxu0 0.0
          %2047 = vmatpush1.msra.mxu0 %v1572
          %2048 = vmatprep.subr.mxu0 0.0
          %2049 = vmatpush1.msra.mxu0 %v1573
          %2050 = vmatprep.subr.mxu0 0.0
          %2051 = vmatpush1.msra.mxu0 %v1574
          %2052 = vmatprep.subr.mxu0 0.0
          %2053 = vmatpush1.msra.mxu0 %v1575
          %2054 = vmatprep.subr.mxu0 0.0
          %2055 = vmatpush1.msra.mxu0 %v1576
          %2056 = vmatprep.subr.mxu0 0.0
          %2057 = vmatpush1.msra.mxu0 %v1577
          %2058 = vmatprep.subr.mxu0 0.0
          %2059 = vmatpush1.msra.mxu0 %v1578
          %2060 = vmatprep.subr.mxu0 0.0
          %2061 = vmatpush1.msra.mxu0 %v1579
          %2062 = vmatprep.subr.mxu0 0.0
          %2063 = vmatpush1.msra.mxu0 %v1580
          %2064 = vmatprep.subr.mxu0 0.0
          %2065 = vmatpush1.msra.mxu0 %v1581
          %2066 = vmatprep.subr.mxu0 0.0
          %2067 = vmatpush1.msra.mxu0 0.0
          %2068 = vmatprep.subr.mxu0 0.0
          %2069 = vmatpush1.msra.mxu0 0.0
          %2070 = vmatprep.subr.mxu0 0.0
          %2071 = vmatpush1.msra.mxu0 0.0
          %2072 = vmatprep.subr.mxu0 0.0
          %2073 = vmatpush1.msra.mxu0 0.0
          %2074 = vmatprep.subr.mxu0 0.0
          %2075 = vmatpush1.msra.mxu0 0.0
          %2076 = vmatprep.subr.mxu0 0.0
          %2077 = vmatpush1.msra.mxu0 0.0
          %2078 = vmatprep.subr.mxu0 0.0
          %2079 = vmatpush1.msra.mxu0 0.0
          %2080 = vmatprep.subr.mxu0 0.0
          %2081 = vmatpush1.msra.mxu0 0.0
          %2082 = vmatprep.subr.mxu0 0.0
          %2083 = vmatpush1.msra.mxu0 0.0
          %2084 = vmatprep.subr.mxu0 0.0
          %2085 = vmatpush1.msra.mxu0 0.0
          %2086 = vmatprep.subr.mxu0 0.0
          %2087 = vmatpush1.msra.mxu0 0.0
          %2088 = vmatprep.subr.mxu0 0.0
          %2089 = vmatpush1.msra.mxu0 0.0
          %2090 = vmatprep.subr.mxu0 0.0
          %2091 = vmatpush1.msra.mxu0 0.0
          %2092 = vmatprep.subr.mxu0 0.0
          %2093 = vmatpush1.msra.mxu0 0.0
          %2094 = vmatprep.subr.mxu0 0.0
          %2095 = vmatpush1.msra.mxu0 0.0
          %2096 = vmatprep.subr.mxu0 0.0
          %2097 = vmatpush1.msra.mxu0 0.0
          %2098 = vmatprep.mubr.f32.mxu0 0.0
          %2099 = vmatmul.mubr.f32.gmra.mrb[0].mxu0 %v2033
          %v2100 = vpop.f32.mrb[0].mxu0
          %v2101 = vadd.f32 %v1216, %v2100
          %v2102 = vpop.f32.mrb[0].mxu0
          %2103 = vdwg.mxu0
          %v2104 = vmul.f32 %v2101, %v1815
          %2105 = vmatprep.subr.mxu0 0.0
          %2106 = vmatpush1.msra.mxu0 %v1653
          %2107 = vmatprep.subr.mxu0 0.0
          %2108 = vmatpush1.msra.mxu0 %v1654
          %2109 = vmatprep.subr.mxu0 0.0
          %2110 = vmatpush1.msra.mxu0 %v1655
          %2111 = vmatprep.subr.mxu0 0.0
          %2112 = vmatpush1.msra.mxu0 %v1656
          %2113 = vmatprep.subr.mxu0 0.0
          %2114 = vmatpush1.msra.mxu0 %v1657
          %2115 = vmatprep.subr.mxu0 0.0
          %2116 = vmatpush1.msra.mxu0 %v1658
          %2117 = vmatprep.subr.mxu0 0.0
          %2118 = vmatpush1.msra.mxu0 %v1659
          %2119 = vmatprep.subr.mxu0 0.0
          %2120 = vmatpush1.msra.mxu0 %v1660
          %2121 = vmatprep.subr.mxu0 0.0
          %2122 = vmatpush1.msra.mxu0 %v1661
          %2123 = vmatprep.subr.mxu0 0.0
          %2124 = vmatpush1.msra.mxu0 %v1662
          %2125 = vmatprep.subr.mxu0 0.0
          %2126 = vmatpush1.msra.mxu0 %v1663
          %2127 = vmatprep.subr.mxu0 0.0
          %2128 = vmatpush1.msra.mxu0 %v1664
          %2129 = vmatprep.subr.mxu0 0.0
          %2130 = vmatpush1.msra.mxu0 %v1665
          %2131 = vmatprep.subr.mxu0 0.0
          %2132 = vmatpush1.msra.mxu0 %v1666
          %2133 = vmatprep.subr.mxu0 0.0
          %2134 = vmatpush1.msra.mxu0 %v1667
          %2135 = vmatprep.subr.mxu0 0.0
          %2136 = vmatpush1.msra.mxu0 %v1668
          %2137 = vmatprep.subr.mxu0 0.0
          %2138 = vmatpush1.msra.mxu0 0.0
          %2139 = vmatprep.subr.mxu0 0.0
          %2140 = vmatpush1.msra.mxu0 0.0
          %2141 = vmatprep.subr.mxu0 0.0
          %2142 = vmatpush1.msra.mxu0 0.0
          %2143 = vmatprep.subr.mxu0 0.0
          %2144 = vmatpush1.msra.mxu0 0.0
          %2145 = vmatprep.subr.mxu0 0.0
          %2146 = vmatpush1.msra.mxu0 0.0
          %2147 = vmatprep.subr.mxu0 0.0
          %2148 = vmatpush1.msra.mxu0 0.0
          %2149 = vmatprep.subr.mxu0 0.0
          %2150 = vmatpush1.msra.mxu0 0.0
          %2151 = vmatprep.subr.mxu0 0.0
          %2152 = vmatpush1.msra.mxu0 0.0
          %2153 = vmatprep.subr.mxu0 0.0
          %2154 = vmatpush1.msra.mxu0 0.0
          %2155 = vmatprep.subr.mxu0 0.0
          %2156 = vmatpush1.msra.mxu0 0.0
          %2157 = vmatprep.subr.mxu0 0.0
          %2158 = vmatpush1.msra.mxu0 0.0
          %2159 = vmatprep.subr.mxu0 0.0
          %2160 = vmatpush1.msra.mxu0 0.0
          %2161 = vmatprep.subr.mxu0 0.0
          %2162 = vmatpush1.msra.mxu0 0.0
          %2163 = vmatprep.subr.mxu0 0.0
          %2164 = vmatpush1.msra.mxu0 0.0
          %2165 = vmatprep.subr.mxu0 0.0
          %2166 = vmatpush1.msra.mxu0 0.0
          %2167 = vmatprep.subr.mxu0 0.0
          %2168 = vmatpush1.msra.mxu0 0.0
          %2169 = vmatprep.mubr.f32.mxu0 0.0
          %2170 = vmatmul.mubr.f32.gmra.mrb[0].mxu0 %v2104
          %v2171 = vpop.f32.mrb[0].mxu0
          %v2172 = vadd.f32 0.0, %v2171
          %v2173 = vpop.f32.mrb[0].mxu0
          %2174 = vdwg.mxu0
          %v2175 = vsub.f32 %v2172, %v1739
          %v2176 = vadd.f32 %v1229, %v2175
          %s2177 = sadd.s32 %s1230, 2
          %s2178 = smul.u32 %s2177, 8
          %s2179 = scalar_lea.vmem %s1038, %s2178 [#allocation3]
          %v2180 = vld [vmem:[%s2179] sm:$0xff]
          %v2182 = vsel %vm1235, %v2180, 0
          %2184 = vmatprep.subr.mxu0 0.0
          %2185 = vmatpush1.msra.mxu0 %v1241
          %2186 = vmatprep.subr.mxu0 0.0
          %2187 = vmatpush1.msra.mxu0 0.0
          %2188 = vmatprep.subr.mxu0 0.0
          %2189 = vmatpush1.msra.mxu0 0.0
          %2190 = vmatprep.subr.mxu0 0.0
          %2191 = vmatpush1.msra.mxu0 0.0
          %2192 = vmatprep.subr.mxu0 0.0
          %2193 = vmatpush1.msra.mxu0 0.0
          %2194 = vmatprep.subr.mxu0 0.0
          %2195 = vmatpush1.msra.mxu0 0.0
          %2196 = vmatprep.subr.mxu0 0.0
          %2197 = vmatpush1.msra.mxu0 0.0
          %2198 = vmatprep.subr.mxu0 0.0
          %2199 = vmatpush1.msra.mxu0 0.0
          %2200 = vmatprep.subr.mxu0 0.0
          %2201 = vmatpush1.msra.mxu0 0.0
          %2202 = vmatprep.subr.mxu0 0.0
          %2203 = vmatpush1.msra.mxu0 0.0
          %2204 = vmatprep.subr.mxu0 0.0
          %2205 = vmatpush1.msra.mxu0 0.0
          %2206 = vmatprep.subr.mxu0 0.0
          %2207 = vmatpush1.msra.mxu0 0.0
          %2208 = vmatprep.subr.mxu0 0.0
          %2209 = vmatpush1.msra.mxu0 0.0
          %2210 = vmatprep.subr.mxu0 0.0
          %2211 = vmatpush1.msra.mxu0 0.0
          %2212 = vmatprep.subr.mxu0 0.0
          %2213 = vmatpush1.msra.mxu0 0.0
          %2214 = vmatprep.subr.mxu0 0.0
          %2215 = vmatpush1.msra.mxu0 0.0
          %2216 = vmatprep.subr.mxu0 0.0
          %2217 = vmatpush1.msra.mxu0 0.0
          %2218 = vmatprep.subr.mxu0 0.0
          %2219 = vmatpush1.msra.mxu0 0.0
          %2220 = vmatprep.subr.mxu0 0.0
          %2221 = vmatpush1.msra.mxu0 0.0
          %2222 = vmatprep.subr.mxu0 0.0
          %2223 = vmatpush1.msra.mxu0 0.0
          %2224 = vmatprep.subr.mxu0 0.0
          %2225 = vmatpush1.msra.mxu0 0.0
          %2226 = vmatprep.subr.mxu0 0.0
          %2227 = vmatpush1.msra.mxu0 0.0
          %2228 = vmatprep.subr.mxu0 0.0
          %2229 = vmatpush1.msra.mxu0 0.0
          %2230 = vmatprep.subr.mxu0 0.0
          %2231 = vmatpush1.msra.mxu0 0.0
          %2232 = vmatprep.subr.mxu0 0.0
          %2233 = vmatpush1.msra.mxu0 0.0
          %2234 = vmatprep.subr.mxu0 0.0
          %2235 = vmatpush1.msra.mxu0 0.0
          %2236 = vmatprep.subr.mxu0 0.0
          %2237 = vmatpush1.msra.mxu0 0.0
          %2238 = vmatprep.subr.mxu0 0.0
          %2239 = vmatpush1.msra.mxu0 0.0
          %2240 = vmatprep.subr.mxu0 0.0
          %2241 = vmatpush1.msra.mxu0 0.0
          %2242 = vmatprep.subr.mxu0 0.0
          %2243 = vmatpush1.msra.mxu0 0.0
          %2244 = vmatprep.subr.mxu0 0.0
          %2245 = vmatpush1.msra.mxu0 0.0
          %2246 = vmatprep.subr.mxu0 0.0
          %2247 = vmatpush1.msra.mxu0 0.0
          %2248 = vmatprep.mubr.f32.mxu0 0.0
          %2249 = vmatmul.mubr.f32.gmra.mrb[0].mxu0 %v2182
          %v2250 = vpop.f32.mrb[0].mxu0
          %v2251 = vadd.f32 0.0, %v2250
          %v2252 = vpop.f32.mrb[0].mxu0
          %2253 = vdwg.mxu0
          %v2255 = vsel %vm1317, %v2176, 0
          %2257 = vmatprep.subr.mxu0 0.0
          %2258 = vmatpush1.msra.mxu0 %v1313
          %2259 = vmatprep.subr.mxu0 0.0
          %2260 = vmatpush1.msra.mxu0 %v1314
          %2261 = vmatprep.subr.mxu0 0.0
          %2262 = vmatpush1.msra.mxu0 %v1315
          %2263 = vmatprep.subr.mxu0 0.0
          %2264 = vmatpush1.msra.mxu0 %v1316
          %2265 = vmatprep.subr.mxu0 0.0
          %2266 = vmatpush1.msra.mxu0 0.0
          %2267 = vmatprep.subr.mxu0 0.0
          %2268 = vmatpush1.msra.mxu0 0.0
          %2269 = vmatprep.subr.mxu0 0.0
          %2270 = vmatpush1.msra.mxu0 0.0
          %2271 = vmatprep.subr.mxu0 0.0
          %2272 = vmatpush1.msra.mxu0 0.0
          %2273 = vmatprep.subr.mxu0 0.0
          %2274 = vmatpush1.msra.mxu0 0.0
          %2275 = vmatprep.subr.mxu0 0.0
          %2276 = vmatpush1.msra.mxu0 0.0
          %2277 = vmatprep.subr.mxu0 0.0
          %2278 = vmatpush1.msra.mxu0 0.0
          %2279 = vmatprep.subr.mxu0 0.0
          %2280 = vmatpush1.msra.mxu0 0.0
          %2281 = vmatprep.subr.mxu0 0.0
          %2282 = vmatpush1.msra.mxu0 0.0
          %2283 = vmatprep.subr.mxu0 0.0
          %2284 = vmatpush1.msra.mxu0 0.0
          %2285 = vmatprep.subr.mxu0 0.0
          %2286 = vmatpush1.msra.mxu0 0.0
          %2287 = vmatprep.subr.mxu0 0.0
          %2288 = vmatpush1.msra.mxu0 0.0
          %2289 = vmatprep.subr.mxu0 0.0
          %2290 = vmatpush1.msra.mxu0 0.0
          %2291 = vmatprep.subr.mxu0 0.0
          %2292 = vmatpush1.msra.mxu0 0.0
          %2293 = vmatprep.subr.mxu0 0.0
          %2294 = vmatpush1.msra.mxu0 0.0
          %2295 = vmatprep.subr.mxu0 0.0
          %2296 = vmatpush1.msra.mxu0 0.0
          %2297 = vmatprep.subr.mxu0 0.0
          %2298 = vmatpush1.msra.mxu0 0.0
          %2299 = vmatprep.subr.mxu0 0.0
          %2300 = vmatpush1.msra.mxu0 0.0
          %2301 = vmatprep.subr.mxu0 0.0
          %2302 = vmatpush1.msra.mxu0 0.0
          %2303 = vmatprep.subr.mxu0 0.0
          %2304 = vmatpush1.msra.mxu0 0.0
          %2305 = vmatprep.subr.mxu0 0.0
          %2306 = vmatpush1.msra.mxu0 0.0
          %2307 = vmatprep.subr.mxu0 0.0
          %2308 = vmatpush1.msra.mxu0 0.0
          %2309 = vmatprep.subr.mxu0 0.0
          %2310 = vmatpush1.msra.mxu0 0.0
          %2311 = vmatprep.subr.mxu0 0.0
          %2312 = vmatpush1.msra.mxu0 0.0
          %2313 = vmatprep.subr.mxu0 0.0
          %2314 = vmatpush1.msra.mxu0 0.0
          %2315 = vmatprep.subr.mxu0 0.0
          %2316 = vmatpush1.msra.mxu0 0.0
          %2317 = vmatprep.subr.mxu0 0.0
          %2318 = vmatpush1.msra.mxu0 0.0
          %2319 = vmatprep.subr.mxu0 0.0
          %2320 = vmatpush1.msra.mxu0 0.0
          %2321 = vmatprep.mubr.f32.mxu0 0.0
          %2322 = vmatmul.mubr.f32.gmra.mrb[0].mxu0 %v2255
          %v2323 = vpop.f32.mrb[0].mxu0
          %v2324 = vadd.f32 %v1195, %v2323
          %v2325 = vpop.f32.mrb[0].mxu0
          %2326 = vdwg.mxu0
          %v2327 = vtanh.pop %v2324
          %2328 = vmatprep.subr.mxu0 0.0
          %2329 = vmatpush1.msra.mxu0 %v1392
          %2330 = vmatprep.subr.mxu0 0.0
          %2331 = vmatpush1.msra.mxu0 %v1393
          %2332 = vmatprep.subr.mxu0 0.0
          %2333 = vmatpush1.msra.mxu0 %v1394
          %2334 = vmatprep.subr.mxu0 0.0
          %2335 = vmatpush1.msra.mxu0 %v1395
          %2336 = vmatprep.subr.mxu0 0.0
          %2337 = vmatpush1.msra.mxu0 %v1396
          %2338 = vmatprep.subr.mxu0 0.0
          %2339 = vmatpush1.msra.mxu0 %v1397
          %2340 = vmatprep.subr.mxu0 0.0
          %2341 = vmatpush1.msra.mxu0 %v1398
          %2342 = vmatprep.subr.mxu0 0.0
          %2343 = vmatpush1.msra.mxu0 %v1399
          %2344 = vmatprep.subr.mxu0 0.0
          %2345 = vmatpush1.msra.mxu0 %v1400
          %2346 = vmatprep.subr.mxu0 0.0
          %2347 = vmatpush1.msra.mxu0 %v1401
          %2348 = vmatprep.subr.mxu0 0.0
          %2349 = vmatpush1.msra.mxu0 %v1402
          %2350 = vmatprep.subr.mxu0 0.0
          %2351 = vmatpush1.msra.mxu0 %v1403
          %2352 = vmatprep.subr.mxu0 0.0
          %2353 = vmatpush1.msra.mxu0 %v1404
          %2354 = vmatprep.subr.mxu0 0.0
          %2355 = vmatpush1.msra.mxu0 %v1405
          %2356 = vmatprep.subr.mxu0 0.0
          %2357 = vmatpush1.msra.mxu0 %v1406
          %2358 = vmatprep.subr.mxu0 0.0
          %2359 = vmatpush1.msra.mxu0 %v1407
          %2360 = vmatprep.subr.mxu0 0.0
          %2361 = vmatpush1.msra.mxu0 0.0
          %2362 = vmatprep.subr.mxu0 0.0
          %2363 = vmatpush1.msra.mxu0 0.0
          %2364 = vmatprep.subr.mxu0 0.0
          %2365 = vmatpush1.msra.mxu0 0.0
          %2366 = vmatprep.subr.mxu0 0.0
          %2367 = vmatpush1.msra.mxu0 0.0
          %2368 = vmatprep.subr.mxu0 0.0
          %2369 = vmatpush1.msra.mxu0 0.0
          %2370 = vmatprep.subr.mxu0 0.0
          %2371 = vmatpush1.msra.mxu0 0.0
          %2372 = vmatprep.subr.mxu0 0.0
          %2373 = vmatpush1.msra.mxu0 0.0
          %2374 = vmatprep.subr.mxu0 0.0
          %2375 = vmatpush1.msra.mxu0 0.0
          %2376 = vmatprep.subr.mxu0 0.0
          %2377 = vmatpush1.msra.mxu0 0.0
          %2378 = vmatprep.subr.mxu0 0.0
          %2379 = vmatpush1.msra.mxu0 0.0
          %2380 = vmatprep.subr.mxu0 0.0
          %2381 = vmatpush1.msra.mxu0 0.0
          %2382 = vmatprep.subr.mxu0 0.0
          %2383 = vmatpush1.msra.mxu0 0.0
          %2384 = vmatprep.subr.mxu0 0.0
          %2385 = vmatpush1.msra.mxu0 0.0
          %2386 = vmatprep.subr.mxu0 0.0
          %2387 = vmatpush1.msra.mxu0 0.0
          %2388 = vmatprep.subr.mxu0 0.0
          %2389 = vmatpush1.msra.mxu0 0.0
          %2390 = vmatprep.subr.mxu0 0.0
          %2391 = vmatpush1.msra.mxu0 0.0
          %2392 = vmatprep.mubr.f32.mxu0 0.0
          %2393 = vmatmul.mubr.f32.gmra.mrb[0].mxu0 %v2327
          %v2394 = vpop.f32.mrb[0].mxu0
          %v2395 = vadd.f32 %v1202, %v2394
          %v2396 = vpop.f32.mrb[0].mxu0
          %2397 = vdwg.mxu0
          %v2398 = vtanh.pop %v2395
          %2399 = vmatprep.subr.mxu0 0.0
          %2400 = vmatpush1.msra.mxu0 %v1479
          %2401 = vmatprep.subr.mxu0 0.0
          %2402 = vmatpush1.msra.mxu0 %v1480
          %2403 = vmatprep.subr.mxu0 0.0
          %2404 = vmatpush1.msra.mxu0 %v1481
          %2405 = vmatprep.subr.mxu0 0.0
          %2406 = vmatpush1.msra.mxu0 %v1482
          %2407 = vmatprep.subr.mxu0 0.0
          %2408 = vmatpush1.msra.mxu0 %v1483
          %2409 = vmatprep.subr.mxu0 0.0
          %2410 = vmatpush1.msra.mxu0 %v1484
          %2411 = vmatprep.subr.mxu0 0.0
          %2412 = vmatpush1.msra.mxu0 %v1485
          %2413 = vmatprep.subr.mxu0 0.0
          %2414 = vmatpush1.msra.mxu0 %v1486
          %2415 = vmatprep.subr.mxu0 0.0
          %2416 = vmatpush1.msra.mxu0 %v1487
          %2417 = vmatprep.subr.mxu0 0.0
          %2418 = vmatpush1.msra.mxu0 %v1488
          %2419 = vmatprep.subr.mxu0 0.0
          %2420 = vmatpush1.msra.mxu0 %v1489
          %2421 = vmatprep.subr.mxu0 0.0
          %2422 = vmatpush1.msra.mxu0 %v1490
          %2423 = vmatprep.subr.mxu0 0.0
          %2424 = vmatpush1.msra.mxu0 %v1491
          %2425 = vmatprep.subr.mxu0 0.0
          %2426 = vmatpush1.msra.mxu0 %v1492
          %2427 = vmatprep.subr.mxu0 0.0
          %2428 = vmatpush1.msra.mxu0 %v1493
          %2429 = vmatprep.subr.mxu0 0.0
          %2430 = vmatpush1.msra.mxu0 %v1494
          %2431 = vmatprep.subr.mxu0 0.0
          %2432 = vmatpush1.msra.mxu0 0.0
          %2433 = vmatprep.subr.mxu0 0.0
          %2434 = vmatpush1.msra.mxu0 0.0
          %2435 = vmatprep.subr.mxu0 0.0
          %2436 = vmatpush1.msra.mxu0 0.0
          %2437 = vmatprep.subr.mxu0 0.0
          %2438 = vmatpush1.msra.mxu0 0.0
          %2439 = vmatprep.subr.mxu0 0.0
          %2440 = vmatpush1.msra.mxu0 0.0
          %2441 = vmatprep.subr.mxu0 0.0
          %2442 = vmatpush1.msra.mxu0 0.0
          %2443 = vmatprep.subr.mxu0 0.0
          %2444 = vmatpush1.msra.mxu0 0.0
          %2445 = vmatprep.subr.mxu0 0.0
          %2446 = vmatpush1.msra.mxu0 0.0
          %2447 = vmatprep.subr.mxu0 0.0
          %2448 = vmatpush1.msra.mxu0 0.0
          %2449 = vmatprep.subr.mxu0 0.0
          %2450 = vmatpush1.msra.mxu0 0.0
          %2451 = vmatprep.subr.mxu0 0.0
          %2452 = vmatpush1.msra.mxu0 0.0
          %2453 = vmatprep.subr.mxu0 0.0
          %2454 = vmatpush1.msra.mxu0 0.0
          %2455 = vmatprep.subr.mxu0 0.0
          %2456 = vmatpush1.msra.mxu0 0.0
          %2457 = vmatprep.subr.mxu0 0.0
          %2458 = vmatpush1.msra.mxu0 0.0
          %2459 = vmatprep.subr.mxu0 0.0
          %2460 = vmatpush1.msra.mxu0 0.0
          %2461 = vmatprep.subr.mxu0 0.0
          %2462 = vmatpush1.msra.mxu0 0.0
          %2463 = vmatprep.mubr.f32.mxu0 0.0
          %2464 = vmatmul.mubr.f32.gmra.mrb[0].mxu0 %v2398
          %v2465 = vpop.f32.mrb[0].mxu0
          %v2466 = vadd.f32 %v1209, %v2465
          %v2467 = vpop.f32.mrb[0].mxu0
          %2468 = vdwg.mxu0
          %v2469 = vtanh.pop %v2466
          %2470 = vmatprep.subr.mxu0 0.0
          %2471 = vmatpush1.msra.mxu0 %v1566
          %2472 = vmatprep.subr.mxu0 0.0
          %2473 = vmatpush1.msra.mxu0 %v1567
          %2474 = vmatprep.subr.mxu0 0.0
          %2475 = vmatpush1.msra.mxu0 %v1568
          %2476 = vmatprep.subr.mxu0 0.0
          %2477 = vmatpush1.msra.mxu0 %v1569
          %2478 = vmatprep.subr.mxu0 0.0
          %2479 = vmatpush1.msra.mxu0 %v1570
          %2480 = vmatprep.subr.mxu0 0.0
          %2481 = vmatpush1.msra.mxu0 %v1571
          %2482 = vmatprep.subr.mxu0 0.0
          %2483 = vmatpush1.msra.mxu0 %v1572
          %2484 = vmatprep.subr.mxu0 0.0
          %2485 = vmatpush1.msra.mxu0 %v1573
          %2486 = vmatprep.subr.mxu0 0.0
          %2487 = vmatpush1.msra.mxu0 %v1574
          %2488 = vmatprep.subr.mxu0 0.0
          %2489 = vmatpush1.msra.mxu0 %v1575
          %2490 = vmatprep.subr.mxu0 0.0
          %2491 = vmatpush1.msra.mxu0 %v1576
          %2492 = vmatprep.subr.mxu0 0.0
          %2493 = vmatpush1.msra.mxu0 %v1577
          %2494 = vmatprep.subr.mxu0 0.0
          %2495 = vmatpush1.msra.mxu0 %v1578
          %2496 = vmatprep.subr.mxu0 0.0
          %2497 = vmatpush1.msra.mxu0 %v1579
          %2498 = vmatprep.subr.mxu0 0.0
          %2499 = vmatpush1.msra.mxu0 %v1580
          %2500 = vmatprep.subr.mxu0 0.0
          %2501 = vmatpush1.msra.mxu0 %v1581
          %2502 = vmatprep.subr.mxu0 0.0
          %2503 = vmatpush1.msra.mxu0 0.0
          %2504 = vmatprep.subr.mxu0 0.0
          %2505 = vmatpush1.msra.mxu0 0.0
          %2506 = vmatprep.subr.mxu0 0.0
          %2507 = vmatpush1.msra.mxu0 0.0
          %2508 = vmatprep.subr.mxu0 0.0
          %2509 = vmatpush1.msra.mxu0 0.0
          %2510 = vmatprep.subr.mxu0 0.0
          %2511 = vmatpush1.msra.mxu0 0.0
          %2512 = vmatprep.subr.mxu0 0.0
          %2513 = vmatpush1.msra.mxu0 0.0
          %2514 = vmatprep.subr.mxu0 0.0
          %2515 = vmatpush1.msra.mxu0 0.0
          %2516 = vmatprep.subr.mxu0 0.0
          %2517 = vmatpush1.msra.mxu0 0.0
          %2518 = vmatprep.subr.mxu0 0.0
          %2519 = vmatpush1.msra.mxu0 0.0
          %2520 = vmatprep.subr.mxu0 0.0
          %2521 = vmatpush1.msra.mxu0 0.0
          %2522 = vmatprep.subr.mxu0 0.0
          %2523 = vmatpush1.msra.mxu0 0.0
          %2524 = vmatprep.subr.mxu0 0.0
          %2525 = vmatpush1.msra.mxu0 0.0
          %2526 = vmatprep.subr.mxu0 0.0
          %2527 = vmatpush1.msra.mxu0 0.0
          %2528 = vmatprep.subr.mxu0 0.0
          %2529 = vmatpush1.msra.mxu0 0.0
          %2530 = vmatprep.subr.mxu0 0.0
          %2531 = vmatpush1.msra.mxu0 0.0
          %2532 = vmatprep.subr.mxu0 0.0
          %2533 = vmatpush1.msra.mxu0 0.0
          %2534 = vmatprep.mubr.f32.mxu0 0.0
          %2535 = vmatmul.mubr.f32.gmra.mrb[0].mxu0 %v2469
          %v2536 = vpop.f32.mrb[0].mxu0
          %v2537 = vadd.f32 %v1216, %v2536
          %v2538 = vpop.f32.mrb[0].mxu0
          %2539 = vdwg.mxu0
          %v2540 = vmul.f32 %v2537, %v2251
          %2541 = vmatprep.subr.mxu0 0.0
          %2542 = vmatpush1.msra.mxu0 %v1653
          %2543 = vmatprep.subr.mxu0 0.0
          %2544 = vmatpush1.msra.mxu0 %v1654
          %2545 = vmatprep.subr.mxu0 0.0
          %2546 = vmatpush1.msra.mxu0 %v1655
          %2547 = vmatprep.subr.mxu0 0.0
          %2548 = vmatpush1.msra.mxu0 %v1656
          %2549 = vmatprep.subr.mxu0 0.0
          %2550 = vmatpush1.msra.mxu0 %v1657
          %2551 = vmatprep.subr.mxu0 0.0
          %2552 = vmatpush1.msra.mxu0 %v1658
          %2553 = vmatprep.subr.mxu0 0.0
          %2554 = vmatpush1.msra.mxu0 %v1659
          %2555 = vmatprep.subr.mxu0 0.0
          %2556 = vmatpush1.msra.mxu0 %v1660
          %2557 = vmatprep.subr.mxu0 0.0
          %2558 = vmatpush1.msra.mxu0 %v1661
          %2559 = vmatprep.subr.mxu0 0.0
          %2560 = vmatpush1.msra.mxu0 %v1662
          %2561 = vmatprep.subr.mxu0 0.0
          %2562 = vmatpush1.msra.mxu0 %v1663
          %2563 = vmatprep.subr.mxu0 0.0
          %2564 = vmatpush1.msra.mxu0 %v1664
          %2565 = vmatprep.subr.mxu0 0.0
          %2566 = vmatpush1.msra.mxu0 %v1665
          %2567 = vmatprep.subr.mxu0 0.0
          %2568 = vmatpush1.msra.mxu0 %v1666
          %2569 = vmatprep.subr.mxu0 0.0
          %2570 = vmatpush1.msra.mxu0 %v1667
          %2571 = vmatprep.subr.mxu0 0.0
          %2572 = vmatpush1.msra.mxu0 %v1668
          %2573 = vmatprep.subr.mxu0 0.0
          %2574 = vmatpush1.msra.mxu0 0.0
          %2575 = vmatprep.subr.mxu0 0.0
          %2576 = vmatpush1.msra.mxu0 0.0
          %2577 = vmatprep.subr.mxu0 0.0
          %2578 = vmatpush1.msra.mxu0 0.0
          %2579 = vmatprep.subr.mxu0 0.0
          %2580 = vmatpush1.msra.mxu0 0.0
          %2581 = vmatprep.subr.mxu0 0.0
          %2582 = vmatpush1.msra.mxu0 0.0
          %2583 = vmatprep.subr.mxu0 0.0
          %2584 = vmatpush1.msra.mxu0 0.0
          %2585 = vmatprep.subr.mxu0 0.0
          %2586 = vmatpush1.msra.mxu0 0.0
          %2587 = vmatprep.subr.mxu0 0.0
          %2588 = vmatpush1.msra.mxu0 0.0
          %2589 = vmatprep.subr.mxu0 0.0
          %2590 = vmatpush1.msra.mxu0 0.0
          %2591 = vmatprep.subr.mxu0 0.0
          %2592 = vmatpush1.msra.mxu0 0.0
          %2593 = vmatprep.subr.mxu0 0.0
          %2594 = vmatpush1.msra.mxu0 0.0
          %2595 = vmatprep.subr.mxu0 0.0
          %2596 = vmatpush1.msra.mxu0 0.0
          %2597 = vmatprep.subr.mxu0 0.0
          %2598 = vmatpush1.msra.mxu0 0.0
          %2599 = vmatprep.subr.mxu0 0.0
          %2600 = vmatpush1.msra.mxu0 0.0
          %2601 = vmatprep.subr.mxu0 0.0
          %2602 = vmatpush1.msra.mxu0 0.0
          %2603 = vmatprep.subr.mxu0 0.0
          %2604 = vmatpush1.msra.mxu0 0.0
          %2605 = vmatprep.mubr.f32.mxu0 0.0
          %2606 = vmatmul.mubr.f32.gmra.mrb[0].mxu0 %v2540
          %v2607 = vpop.f32.mrb[0].mxu0
          %v2608 = vadd.f32 0.0, %v2607
          %v2609 = vpop.f32.mrb[0].mxu0
          %2610 = vdwg.mxu0
          %v2611 = vsub.f32 %v1736, %v2172
          %v2612 = vadd.f32 %v2611, %v2608
          %v2613 = vadd.f32 %v1229, %v2612
          %s2614 = sadd.s32 %s1230, 3
          %s2615 = smul.u32 %s2614, 8
          %s2616 = scalar_lea.vmem %s1038, %s2615 [#allocation3]
          %v2617 = vld [vmem:[%s2616] sm:$0xff]
          %v2619 = vsel %vm1235, %v2617, 0
          %2621 = vmatprep.subr.mxu0 0.0
          %2622 = vmatpush1.msra.mxu0 %v1241
          %2623 = vmatprep.subr.mxu0 0.0
          %2624 = vmatpush1.msra.mxu0 0.0
          %2625 = vmatprep.subr.mxu0 0.0
          %2626 = vmatpush1.msra.mxu0 0.0
          %2627 = vmatprep.subr.mxu0 0.0
          %2628 = vmatpush1.msra.mxu0 0.0
          %2629 = vmatprep.subr.mxu0 0.0
          %2630 = vmatpush1.msra.mxu0 0.0
          %2631 = vmatprep.subr.mxu0 0.0
          %2632 = vmatpush1.msra.mxu0 0.0
          %2633 = vmatprep.subr.mxu0 0.0
          %2634 = vmatpush1.msra.mxu0 0.0
          %2635 = vmatprep.subr.mxu0 0.0
          %2636 = vmatpush1.msra.mxu0 0.0
          %2637 = vmatprep.subr.mxu0 0.0
          %2638 = vmatpush1.msra.mxu0 0.0
          %2639 = vmatprep.subr.mxu0 0.0
          %2640 = vmatpush1.msra.mxu0 0.0
          %2641 = vmatprep.subr.mxu0 0.0
          %2642 = vmatpush1.msra.mxu0 0.0
          %2643 = vmatprep.subr.mxu0 0.0
          %2644 = vmatpush1.msra.mxu0 0.0
          %2645 = vmatprep.subr.mxu0 0.0
          %2646 = vmatpush1.msra.mxu0 0.0
          %2647 = vmatprep.subr.mxu0 0.0
          %2648 = vmatpush1.msra.mxu0 0.0
          %2649 = vmatprep.subr.mxu0 0.0
          %2650 = vmatpush1.msra.mxu0 0.0
          %2651 = vmatprep.subr.mxu0 0.0
          %2652 = vmatpush1.msra.mxu0 0.0
          %2653 = vmatprep.subr.mxu0 0.0
          %2654 = vmatpush1.msra.mxu0 0.0
          %2655 = vmatprep.subr.mxu0 0.0
          %2656 = vmatpush1.msra.mxu0 0.0
          %2657 = vmatprep.subr.mxu0 0.0
          %2658 = vmatpush1.msra.mxu0 0.0
          %2659 = vmatprep.subr.mxu0 0.0
          %2660 = vmatpush1.msra.mxu0 0.0
          %2661 = vmatprep.subr.mxu0 0.0
          %2662 = vmatpush1.msra.mxu0 0.0
          %2663 = vmatprep.subr.mxu0 0.0
          %2664 = vmatpush1.msra.mxu0 0.0
          %2665 = vmatprep.subr.mxu0 0.0
          %2666 = vmatpush1.msra.mxu0 0.0
          %2667 = vmatprep.subr.mxu0 0.0
          %2668 = vmatpush1.msra.mxu0 0.0
          %2669 = vmatprep.subr.mxu0 0.0
          %2670 = vmatpush1.msra.mxu0 0.0
          %2671 = vmatprep.subr.mxu0 0.0
          %2672 = vmatpush1.msra.mxu0 0.0
          %2673 = vmatprep.subr.mxu0 0.0
          %2674 = vmatpush1.msra.mxu0 0.0
          %2675 = vmatprep.subr.mxu0 0.0
          %2676 = vmatpush1.msra.mxu0 0.0
          %2677 = vmatprep.subr.mxu0 0.0
          %2678 = vmatpush1.msra.mxu0 0.0
          %2679 = vmatprep.subr.mxu0 0.0
          %2680 = vmatpush1.msra.mxu0 0.0
          %2681 = vmatprep.subr.mxu0 0.0
          %2682 = vmatpush1.msra.mxu0 0.0
          %2683 = vmatprep.subr.mxu0 0.0
          %2684 = vmatpush1.msra.mxu0 0.0
          %2685 = vmatprep.mubr.f32.mxu0 0.0
          %2686 = vmatmul.mubr.f32.gmra.mrb[0].mxu0 %v2619
          %v2687 = vpop.f32.mrb[0].mxu0
          %v2688 = vadd.f32 0.0, %v2687
          %v2689 = vpop.f32.mrb[0].mxu0
          %2690 = vdwg.mxu0
          %v2692 = vsel %vm1317, %v2613, 0
          %2694 = vmatprep.subr.mxu0 0.0
          %2695 = vmatpush1.msra.mxu0 %v1313
          %2696 = vmatprep.subr.mxu0 0.0
          %2697 = vmatpush1.msra.mxu0 %v1314
          %2698 = vmatprep.subr.mxu0 0.0
          %2699 = vmatpush1.msra.mxu0 %v1315
          %2700 = vmatprep.subr.mxu0 0.0
          %2701 = vmatpush1.msra.mxu0 %v1316
          %2702 = vmatprep.subr.mxu0 0.0
          %2703 = vmatpush1.msra.mxu0 0.0
          %2704 = vmatprep.subr.mxu0 0.0
          %2705 = vmatpush1.msra.mxu0 0.0
          %2706 = vmatprep.subr.mxu0 0.0
          %2707 = vmatpush1.msra.mxu0 0.0
          %2708 = vmatprep.subr.mxu0 0.0
          %2709 = vmatpush1.msra.mxu0 0.0
          %2710 = vmatprep.subr.mxu0 0.0
          %2711 = vmatpush1.msra.mxu0 0.0
          %2712 = vmatprep.subr.mxu0 0.0
          %2713 = vmatpush1.msra.mxu0 0.0
          %2714 = vmatprep.subr.mxu0 0.0
          %2715 = vmatpush1.msra.mxu0 0.0
          %2716 = vmatprep.subr.mxu0 0.0
          %2717 = vmatpush1.msra.mxu0 0.0
          %2718 = vmatprep.subr.mxu0 0.0
          %2719 = vmatpush1.msra.mxu0 0.0
          %2720 = vmatprep.subr.mxu0 0.0
          %2721 = vmatpush1.msra.mxu0 0.0
          %2722 = vmatprep.subr.mxu0 0.0
          %2723 = vmatpush1.msra.mxu0 0.0
          %2724 = vmatprep.subr.mxu0 0.0
          %2725 = vmatpush1.msra.mxu0 0.0
          %2726 = vmatprep.subr.mxu0 0.0
          %2727 = vmatpush1.msra.mxu0 0.0
          %2728 = vmatprep.subr.mxu0 0.0
          %2729 = vmatpush1.msra.mxu0 0.0
          %2730 = vmatprep.subr.mxu0 0.0
          %2731 = vmatpush1.msra.mxu0 0.0
          %2732 = vmatprep.subr.mxu0 0.0
          %2733 = vmatpush1.msra.mxu0 0.0
          %2734 = vmatprep.subr.mxu0 0.0
          %2735 = vmatpush1.msra.mxu0 0.0
          %2736 = vmatprep.subr.mxu0 0.0
          %2737 = vmatpush1.msra.mxu0 0.0
          %2738 = vmatprep.subr.mxu0 0.0
          %2739 = vmatpush1.msra.mxu0 0.0
          %2740 = vmatprep.subr.mxu0 0.0
          %2741 = vmatpush1.msra.mxu0 0.0
          %2742 = vmatprep.subr.mxu0 0.0
          %2743 = vmatpush1.msra.mxu0 0.0
          %2744 = vmatprep.subr.mxu0 0.0
          %2745 = vmatpush1.msra.mxu0 0.0
          %2746 = vmatprep.subr.mxu0 0.0
          %2747 = vmatpush1.msra.mxu0 0.0
          %2748 = vmatprep.subr.mxu0 0.0
          %2749 = vmatpush1.msra.mxu0 0.0
          %2750 = vmatprep.subr.mxu0 0.0
          %2751 = vmatpush1.msra.mxu0 0.0
          %2752 = vmatprep.subr.mxu0 0.0
          %2753 = vmatpush1.msra.mxu0 0.0
          %2754 = vmatprep.subr.mxu0 0.0
          %2755 = vmatpush1.msra.mxu0 0.0
          %2756 = vmatprep.subr.mxu0 0.0
          %2757 = vmatpush1.msra.mxu0 0.0
          %2758 = vmatprep.mubr.f32.mxu0 0.0
          %2759 = vmatmul.mubr.f32.gmra.mrb[0].mxu0 %v2692
          %v2760 = vpop.f32.mrb[0].mxu0
          %v2761 = vadd.f32 %v1195, %v2760
          %v2762 = vpop.f32.mrb[0].mxu0
          %2763 = vdwg.mxu0
          %v2764 = vtanh.pop %v2761
          %2765 = vmatprep.subr.mxu0 0.0
          %2766 = vmatpush1.msra.mxu0 %v1392
          %2767 = vmatprep.subr.mxu0 0.0
          %2768 = vmatpush1.msra.mxu0 %v1393
          %2769 = vmatprep.subr.mxu0 0.0
          %2770 = vmatpush1.msra.mxu0 %v1394
          %2771 = vmatprep.subr.mxu0 0.0
          %2772 = vmatpush1.msra.mxu0 %v1395
          %2773 = vmatprep.subr.mxu0 0.0
          %2774 = vmatpush1.msra.mxu0 %v1396
          %2775 = vmatprep.subr.mxu0 0.0
          %2776 = vmatpush1.msra.mxu0 %v1397
          %2777 = vmatprep.subr.mxu0 0.0
          %2778 = vmatpush1.msra.mxu0 %v1398
          %2779 = vmatprep.subr.mxu0 0.0
          %2780 = vmatpush1.msra.mxu0 %v1399
          %2781 = vmatprep.subr.mxu0 0.0
          %2782 = vmatpush1.msra.mxu0 %v1400
          %2783 = vmatprep.subr.mxu0 0.0
          %2784 = vmatpush1.msra.mxu0 %v1401
          %2785 = vmatprep.subr.mxu0 0.0
          %2786 = vmatpush1.msra.mxu0 %v1402
          %2787 = vmatprep.subr.mxu0 0.0
          %2788 = vmatpush1.msra.mxu0 %v1403
          %2789 = vmatprep.subr.mxu0 0.0
          %2790 = vmatpush1.msra.mxu0 %v1404
          %2791 = vmatprep.subr.mxu0 0.0
          %2792 = vmatpush1.msra.mxu0 %v1405
          %2793 = vmatprep.subr.mxu0 0.0
          %2794 = vmatpush1.msra.mxu0 %v1406
          %2795 = vmatprep.subr.mxu0 0.0
          %2796 = vmatpush1.msra.mxu0 %v1407
          %2797 = vmatprep.subr.mxu0 0.0
          %2798 = vmatpush1.msra.mxu0 0.0
          %2799 = vmatprep.subr.mxu0 0.0
          %2800 = vmatpush1.msra.mxu0 0.0
          %2801 = vmatprep.subr.mxu0 0.0
          %2802 = vmatpush1.msra.mxu0 0.0
          %2803 = vmatprep.subr.mxu0 0.0
          %2804 = vmatpush1.msra.mxu0 0.0
          %2805 = vmatprep.subr.mxu0 0.0
          %2806 = vmatpush1.msra.mxu0 0.0
          %2807 = vmatprep.subr.mxu0 0.0
          %2808 = vmatpush1.msra.mxu0 0.0
          %2809 = vmatprep.subr.mxu0 0.0
          %2810 = vmatpush1.msra.mxu0 0.0
          %2811 = vmatprep.subr.mxu0 0.0
          %2812 = vmatpush1.msra.mxu0 0.0
          %2813 = vmatprep.subr.mxu0 0.0
          %2814 = vmatpush1.msra.mxu0 0.0
          %2815 = vmatprep.subr.mxu0 0.0
          %2816 = vmatpush1.msra.mxu0 0.0
          %2817 = vmatprep.subr.mxu0 0.0
          %2818 = vmatpush1.msra.mxu0 0.0
          %2819 = vmatprep.subr.mxu0 0.0
          %2820 = vmatpush1.msra.mxu0 0.0
          %2821 = vmatprep.subr.mxu0 0.0
          %2822 = vmatpush1.msra.mxu0 0.0
          %2823 = vmatprep.subr.mxu0 0.0
          %2824 = vmatpush1.msra.mxu0 0.0
          %2825 = vmatprep.subr.mxu0 0.0
          %2826 = vmatpush1.msra.mxu0 0.0
          %2827 = vmatprep.subr.mxu0 0.0
          %2828 = vmatpush1.msra.mxu0 0.0
          %2829 = vmatprep.mubr.f32.mxu0 0.0
          %2830 = vmatmul.mubr.f32.gmra.mrb[0].mxu0 %v2764
          %v2831 = vpop.f32.mrb[0].mxu0
          %v2832 = vadd.f32 %v1202, %v2831
          %v2833 = vpop.f32.mrb[0].mxu0
          %2834 = vdwg.mxu0
          %v2835 = vtanh.pop %v2832
          %2836 = vmatprep.subr.mxu0 0.0
          %2837 = vmatpush1.msra.mxu0 %v1479
          %2838 = vmatprep.subr.mxu0 0.0
          %2839 = vmatpush1.msra.mxu0 %v1480
          %2840 = vmatprep.subr.mxu0 0.0
          %2841 = vmatpush1.msra.mxu0 %v1481
          %2842 = vmatprep.subr.mxu0 0.0
          %2843 = vmatpush1.msra.mxu0 %v1482
          %2844 = vmatprep.subr.mxu0 0.0
          %2845 = vmatpush1.msra.mxu0 %v1483
          %2846 = vmatprep.subr.mxu0 0.0
          %2847 = vmatpush1.msra.mxu0 %v1484
          %2848 = vmatprep.subr.mxu0 0.0
          %2849 = vmatpush1.msra.mxu0 %v1485
          %2850 = vmatprep.subr.mxu0 0.0
          %2851 = vmatpush1.msra.mxu0 %v1486
          %2852 = vmatprep.subr.mxu0 0.0
          %2853 = vmatpush1.msra.mxu0 %v1487
          %2854 = vmatprep.subr.mxu0 0.0
          %2855 = vmatpush1.msra.mxu0 %v1488
          %2856 = vmatprep.subr.mxu0 0.0
          %2857 = vmatpush1.msra.mxu0 %v1489
          %2858 = vmatprep.subr.mxu0 0.0
          %2859 = vmatpush1.msra.mxu0 %v1490
          %2860 = vmatprep.subr.mxu0 0.0
          %2861 = vmatpush1.msra.mxu0 %v1491
          %2862 = vmatprep.subr.mxu0 0.0
          %2863 = vmatpush1.msra.mxu0 %v1492
          %2864 = vmatprep.subr.mxu0 0.0
          %2865 = vmatpush1.msra.mxu0 %v1493
          %2866 = vmatprep.subr.mxu0 0.0
          %2867 = vmatpush1.msra.mxu0 %v1494
          %2868 = vmatprep.subr.mxu0 0.0
          %2869 = vmatpush1.msra.mxu0 0.0
          %2870 = vmatprep.subr.mxu0 0.0
          %2871 = vmatpush1.msra.mxu0 0.0
          %2872 = vmatprep.subr.mxu0 0.0
          %2873 = vmatpush1.msra.mxu0 0.0
          %2874 = vmatprep.subr.mxu0 0.0
          %2875 = vmatpush1.msra.mxu0 0.0
          %2876 = vmatprep.subr.mxu0 0.0
          %2877 = vmatpush1.msra.mxu0 0.0
          %2878 = vmatprep.subr.mxu0 0.0
          %2879 = vmatpush1.msra.mxu0 0.0
          %2880 = vmatprep.subr.mxu0 0.0
          %2881 = vmatpush1.msra.mxu0 0.0
          %2882 = vmatprep.subr.mxu0 0.0
          %2883 = vmatpush1.msra.mxu0 0.0
          %2884 = vmatprep.subr.mxu0 0.0
          %2885 = vmatpush1.msra.mxu0 0.0
          %2886 = vmatprep.subr.mxu0 0.0
          %2887 = vmatpush1.msra.mxu0 0.0
          %2888 = vmatprep.subr.mxu0 0.0
          %2889 = vmatpush1.msra.mxu0 0.0
          %2890 = vmatprep.subr.mxu0 0.0
          %2891 = vmatpush1.msra.mxu0 0.0
          %2892 = vmatprep.subr.mxu0 0.0
          %2893 = vmatpush1.msra.mxu0 0.0
          %2894 = vmatprep.subr.mxu0 0.0
          %2895 = vmatpush1.msra.mxu0 0.0
          %2896 = vmatprep.subr.mxu0 0.0
          %2897 = vmatpush1.msra.mxu0 0.0
          %2898 = vmatprep.subr.mxu0 0.0
          %2899 = vmatpush1.msra.mxu0 0.0
          %2900 = vmatprep.mubr.f32.mxu0 0.0
          %2901 = vmatmul.mubr.f32.gmra.mrb[0].mxu0 %v2835
          %v2902 = vpop.f32.mrb[0].mxu0
          %v2903 = vadd.f32 %v1209, %v2902
          %v2904 = vpop.f32.mrb[0].mxu0
          %2905 = vdwg.mxu0
          %v2906 = vtanh.pop %v2903
          %2907 = vmatprep.subr.mxu0 0.0
          %2908 = vmatpush1.msra.mxu0 %v1566
          %2909 = vmatprep.subr.mxu0 0.0
          %2910 = vmatpush1.msra.mxu0 %v1567
          %2911 = vmatprep.subr.mxu0 0.0
          %2912 = vmatpush1.msra.mxu0 %v1568
          %2913 = vmatprep.subr.mxu0 0.0
          %2914 = vmatpush1.msra.mxu0 %v1569
          %2915 = vmatprep.subr.mxu0 0.0
          %2916 = vmatpush1.msra.mxu0 %v1570
          %2917 = vmatprep.subr.mxu0 0.0
          %2918 = vmatpush1.msra.mxu0 %v1571
          %2919 = vmatprep.subr.mxu0 0.0
          %2920 = vmatpush1.msra.mxu0 %v1572
          %2921 = vmatprep.subr.mxu0 0.0
          %2922 = vmatpush1.msra.mxu0 %v1573
          %2923 = vmatprep.subr.mxu0 0.0
          %2924 = vmatpush1.msra.mxu0 %v1574
          %2925 = vmatprep.subr.mxu0 0.0
          %2926 = vmatpush1.msra.mxu0 %v1575
          %2927 = vmatprep.subr.mxu0 0.0
          %2928 = vmatpush1.msra.mxu0 %v1576
          %2929 = vmatprep.subr.mxu0 0.0
          %2930 = vmatpush1.msra.mxu0 %v1577
          %2931 = vmatprep.subr.mxu0 0.0
          %2932 = vmatpush1.msra.mxu0 %v1578
          %2933 = vmatprep.subr.mxu0 0.0
          %2934 = vmatpush1.msra.mxu0 %v1579
          %2935 = vmatprep.subr.mxu0 0.0
          %2936 = vmatpush1.msra.mxu0 %v1580
          %2937 = vmatprep.subr.mxu0 0.0
          %2938 = vmatpush1.msra.mxu0 %v1581
          %2939 = vmatprep.subr.mxu0 0.0
          %2940 = vmatpush1.msra.mxu0 0.0
          %2941 = vmatprep.subr.mxu0 0.0
          %2942 = vmatpush1.msra.mxu0 0.0
          %2943 = vmatprep.subr.mxu0 0.0
          %2944 = vmatpush1.msra.mxu0 0.0
          %2945 = vmatprep.subr.mxu0 0.0
          %2946 = vmatpush1.msra.mxu0 0.0
          %2947 = vmatprep.subr.mxu0 0.0
          %2948 = vmatpush1.msra.mxu0 0.0
          %2949 = vmatprep.subr.mxu0 0.0
          %2950 = vmatpush1.msra.mxu0 0.0
          %2951 = vmatprep.subr.mxu0 0.0
          %2952 = vmatpush1.msra.mxu0 0.0
          %2953 = vmatprep.subr.mxu0 0.0
          %2954 = vmatpush1.msra.mxu0 0.0
          %2955 = vmatprep.subr.mxu0 0.0
          %2956 = vmatpush1.msra.mxu0 0.0
          %2957 = vmatprep.subr.mxu0 0.0
          %2958 = vmatpush1.msra.mxu0 0.0
          %2959 = vmatprep.subr.mxu0 0.0
          %2960 = vmatpush1.msra.mxu0 0.0
          %2961 = vmatprep.subr.mxu0 0.0
          %2962 = vmatpush1.msra.mxu0 0.0
          %2963 = vmatprep.subr.mxu0 0.0
          %2964 = vmatpush1.msra.mxu0 0.0
          %2965 = vmatprep.subr.mxu0 0.0
          %2966 = vmatpush1.msra.mxu0 0.0
          %2967 = vmatprep.subr.mxu0 0.0
          %2968 = vmatpush1.msra.mxu0 0.0
          %2969 = vmatprep.subr.mxu0 0.0
          %2970 = vmatpush1.msra.mxu0 0.0
          %2971 = vmatprep.mubr.f32.mxu0 0.0
          %2972 = vmatmul.mubr.f32.gmra.mrb[0].mxu0 %v2906
          %v2973 = vpop.f32.mrb[0].mxu0
          %v2974 = vadd.f32 %v1216, %v2973
          %v2975 = vpop.f32.mrb[0].mxu0
          %2976 = vdwg.mxu0
          %v2977 = vmul.f32 %v2974, %v2688
          %2978 = vmatprep.subr.mxu0 0.0
          %2979 = vmatpush1.msra.mxu0 %v1653
          %2980 = vmatprep.subr.mxu0 0.0
          %2981 = vmatpush1.msra.mxu0 %v1654
          %2982 = vmatprep.subr.mxu0 0.0
          %2983 = vmatpush1.msra.mxu0 %v1655
          %2984 = vmatprep.subr.mxu0 0.0
          %2985 = vmatpush1.msra.mxu0 %v1656
          %2986 = vmatprep.subr.mxu0 0.0
          %2987 = vmatpush1.msra.mxu0 %v1657
          %2988 = vmatprep.subr.mxu0 0.0
          %2989 = vmatpush1.msra.mxu0 %v1658
          %2990 = vmatprep.subr.mxu0 0.0
          %2991 = vmatpush1.msra.mxu0 %v1659
          %2992 = vmatprep.subr.mxu0 0.0
          %2993 = vmatpush1.msra.mxu0 %v1660
          %2994 = vmatprep.subr.mxu0 0.0
          %2995 = vmatpush1.msra.mxu0 %v1661
          %2996 = vmatprep.subr.mxu0 0.0
          %2997 = vmatpush1.msra.mxu0 %v1662
          %2998 = vmatprep.subr.mxu0 0.0
          %2999 = vmatpush1.msra.mxu0 %v1663
          %3000 = vmatprep.subr.mxu0 0.0
          %3001 = vmatpush1.msra.mxu0 %v1664
          %3002 = vmatprep.subr.mxu0 0.0
          %3003 = vmatpush1.msra.mxu0 %v1665
          %3004 = vmatprep.subr.mxu0 0.0
          %3005 = vmatpush1.msra.mxu0 %v1666
          %3006 = vmatprep.subr.mxu0 0.0
          %3007 = vmatpush1.msra.mxu0 %v1667
          %3008 = vmatprep.subr.mxu0 0.0
          %3009 = vmatpush1.msra.mxu0 %v1668
          %3010 = vmatprep.subr.mxu0 0.0
          %3011 = vmatpush1.msra.mxu0 0.0
          %3012 = vmatprep.subr.mxu0 0.0
          %3013 = vmatpush1.msra.mxu0 0.0
          %3014 = vmatprep.subr.mxu0 0.0
          %3015 = vmatpush1.msra.mxu0 0.0
          %3016 = vmatprep.subr.mxu0 0.0
          %3017 = vmatpush1.msra.mxu0 0.0
          %3018 = vmatprep.subr.mxu0 0.0
          %3019 = vmatpush1.msra.mxu0 0.0
          %3020 = vmatprep.subr.mxu0 0.0
          %3021 = vmatpush1.msra.mxu0 0.0
          %3022 = vmatprep.subr.mxu0 0.0
          %3023 = vmatpush1.msra.mxu0 0.0
          %3024 = vmatprep.subr.mxu0 0.0
          %3025 = vmatpush1.msra.mxu0 0.0
          %3026 = vmatprep.subr.mxu0 0.0
          %3027 = vmatpush1.msra.mxu0 0.0
          %3028 = vmatprep.subr.mxu0 0.0
          %3029 = vmatpush1.msra.mxu0 0.0
          %3030 = vmatprep.subr.mxu0 0.0
          %3031 = vmatpush1.msra.mxu0 0.0
          %3032 = vmatprep.subr.mxu0 0.0
          %3033 = vmatpush1.msra.mxu0 0.0
          %3034 = vmatprep.subr.mxu0 0.0
          %3035 = vmatpush1.msra.mxu0 0.0
          %3036 = vmatprep.subr.mxu0 0.0
          %3037 = vmatpush1.msra.mxu0 0.0
          %3038 = vmatprep.subr.mxu0 0.0
          %3039 = vmatpush1.msra.mxu0 0.0
          %3040 = vmatprep.subr.mxu0 0.0
          %3041 = vmatpush1.msra.mxu0 0.0
          %3042 = vmatprep.mubr.f32.mxu0 0.0
          %3043 = vmatmul.mubr.f32.gmra.mrb[0].mxu0 %v2977
          %v3044 = vpop.f32.mrb[0].mxu0
          %v3045 = vadd.f32 0.0, %v3044
          %v3046 = vpop.f32.mrb[0].mxu0
          %3047 = vdwg.mxu0
          %v3048 = vadd.f32 %v2172, %v2608
          %v3049 = vmul.f32 %v3048, 3.0
          %v3050 = vadd.f32 %v1736, %v3049
          %v3051 = vadd.f32 %v3050, %v3045
          %v3052 = vmul.f32 %v3051, 0.125
          %v3053 = vadd.f32 %v1229, %v3052
        $region131: #{tpu_custom_call.1} parent=117 // loop_footer
          %s1226 = sadd.s32 %s1224, 1
        $region132: #{tpu_custom_call.1} parent=117 // loop_footer_branch
          %1223 = sbr.rel target = $region128
        $region133: #{tpu_custom_call.1} parent=117 // loop_exit
          _
        %vm3054 = vcmask 261120
        %3055 = vst.msk [vmem:[#allocation2] sm:$0xff] %vm3054, %v1229
        %p3056 = scmp.eq.s32.totalorder %s32, 2
        // Predicated region
        $region134: #{tpu_custom_call.1} parent=117 // pred_check
          %p3057 = pneg %p3056
        $region135: #{tpu_custom_call.1} parent=117 // pred_check_branch
          %3059 = sbr.rel (%p3057) target = $region137
        $region136: #{tpu_custom_call.1} parent=117 // pred_region
          %v3060 = vld [vmem:[#allocation2] sm:$0xff]
          %v3061 = vld [vmem:[%s14] sm:$0xff]
          %v3062 = vld [vmem:[%s14 + $0x8] sm:$0xff]
          %v3063 = vld [vmem:[%s14 + $0x10] sm:$0xff]
          %v3064 = vld [vmem:[%s14 + $0x18] sm:$0xff]
          %v3065 = vld [vmem:[%s15] sm:$0x1]
          %v3067 = vlaneseq
          %v3068 = vshrl.u32 %v3067, 7
          %v3069 = vsub.s32 0, %v3068
          %v3070 = vrot.slane %v3065, %v3069
          %v3073 = vsel %vm3054, %v3060, 0
          %3075 = vmatprep.subr.mxu0 0.0
          %3076 = vmatpush1.msra.mxu0 %v3061
          %3077 = vmatprep.subr.mxu0 0.0
          %3078 = vmatpush1.msra.mxu0 %v3062
          %3079 = vmatprep.subr.mxu0 0.0
          %3080 = vmatpush1.msra.mxu0 %v3063
          %3081 = vmatprep.subr.mxu0 0.0
          %3082 = vmatpush1.msra.mxu0 %v3064
          %3083 = vmatprep.subr.mxu0 0.0
          %3084 = vmatpush1.msra.mxu0 0.0
          %3085 = vmatprep.subr.mxu0 0.0
          %3086 = vmatpush1.msra.mxu0 0.0
          %3087 = vmatprep.subr.mxu0 0.0
          %3088 = vmatpush1.msra.mxu0 0.0
          %3089 = vmatprep.subr.mxu0 0.0
          %3090 = vmatpush1.msra.mxu0 0.0
          %3091 = vmatprep.subr.mxu0 0.0
          %3092 = vmatpush1.msra.mxu0 0.0
          %3093 = vmatprep.subr.mxu0 0.0
          %3094 = vmatpush1.msra.mxu0 0.0
          %3095 = vmatprep.subr.mxu0 0.0
          %3096 = vmatpush1.msra.mxu0 0.0
          %3097 = vmatprep.subr.mxu0 0.0
          %3098 = vmatpush1.msra.mxu0 0.0
          %3099 = vmatprep.subr.mxu0 0.0
          %3100 = vmatpush1.msra.mxu0 0.0
          %3101 = vmatprep.subr.mxu0 0.0
          %3102 = vmatpush1.msra.mxu0 0.0
          %3103 = vmatprep.subr.mxu0 0.0
          %3104 = vmatpush1.msra.mxu0 0.0
          %3105 = vmatprep.subr.mxu0 0.0
          %3106 = vmatpush1.msra.mxu0 0.0
          %3107 = vmatprep.subr.mxu0 0.0
          %3108 = vmatpush1.msra.mxu0 0.0
          %3109 = vmatprep.subr.mxu0 0.0
          %3110 = vmatpush1.msra.mxu0 0.0
          %3111 = vmatprep.subr.mxu0 0.0
          %3112 = vmatpush1.msra.mxu0 0.0
          %3113 = vmatprep.subr.mxu0 0.0
          %3114 = vmatpush1.msra.mxu0 0.0
          %3115 = vmatprep.subr.mxu0 0.0
          %3116 = vmatpush1.msra.mxu0 0.0
          %3117 = vmatprep.subr.mxu0 0.0
          %3118 = vmatpush1.msra.mxu0 0.0
          %3119 = vmatprep.subr.mxu0 0.0
          %3120 = vmatpush1.msra.mxu0 0.0
          %3121 = vmatprep.subr.mxu0 0.0
          %3122 = vmatpush1.msra.mxu0 0.0
          %3123 = vmatprep.subr.mxu0 0.0
          %3124 = vmatpush1.msra.mxu0 0.0
          %3125 = vmatprep.subr.mxu0 0.0
          %3126 = vmatpush1.msra.mxu0 0.0
          %3127 = vmatprep.subr.mxu0 0.0
          %3128 = vmatpush1.msra.mxu0 0.0
          %3129 = vmatprep.subr.mxu0 0.0
          %3130 = vmatpush1.msra.mxu0 0.0
          %3131 = vmatprep.subr.mxu0 0.0
          %3132 = vmatpush1.msra.mxu0 0.0
          %3133 = vmatprep.subr.mxu0 0.0
          %3134 = vmatpush1.msra.mxu0 0.0
          %3135 = vmatprep.subr.mxu0 0.0
          %3136 = vmatpush1.msra.mxu0 0.0
          %3137 = vmatprep.subr.mxu0 0.0
          %3138 = vmatpush1.msra.mxu0 0.0
          %3139 = vmatprep.mubr.f32.mxu0 0.0
          %3140 = vmatmul.mubr.f32.gmra.mrb[0].mxu0 %v3073
          %v3141 = vpop.f32.mrb[0].mxu0
          %v3142 = vadd.f32 %v3070, %v3141
          %v3143 = vpop.f32.mrb[0].mxu0
          %3144 = vdwg.mxu0
          %vm3145 = vcmask 31744
          %3146 = vst.msk [vmem:[%s1096] sm:$0xff] %vm3145, %v3142
        $region137: #{tpu_custom_call.1} parent=117 // pred_fallthru
          _
        %p3147 = scmp.lt.s32.totalorder %s31, 1
        %s3148 = scalar_select %p3147, %s31, 1
        %s3149 = smul.addr %s3148, 8
        %s3150 = scalar_lea.vmem %s16, %s3149
        // Predicated region
        $region138: #{tpu_custom_call.1} parent=117 // pred_check
          %p3151 = pneg %p405
        $region139: #{tpu_custom_call.1} parent=117 // pred_check_branch
          %3153 = sbr.rel (%p3151) target = $region141
        $region140: #{tpu_custom_call.1} parent=117 // pred_region
          _
        $region141: #{tpu_custom_call.1} parent=117 // pred_fallthru
          _
      $region118: #{tpu_custom_call.1} parent=5 // pred_fallthru
        _
      %p3154 = scmp.le.s32.totalorder 2, %s22
      // Predicated region
      $region142: #{tpu_custom_call.1} parent=5 // pred_check
        %p3155 = pneg %p3154
      $region143: #{tpu_custom_call.1} parent=5 // pred_check_branch
        %3157 = sbr.rel (%p3155) target = $region145
      $region144: #{tpu_custom_call.1} parent=5 // pred_region
        %s3158 = ssub.s32 %s22, 2
        // Predicated region
        $region146: #{tpu_custom_call.1} parent=144 // pred_check
          %p3159 = pneg %p411
        $region147: #{tpu_custom_call.1} parent=144 // pred_check_branch
          %3161 = sbr.rel (%p3159) target = $region149
        $region148: #{tpu_custom_call.1} parent=144 // pred_region
          %p3162 = scmp.lt.s32.totalorder %s33, 1
          %s3163 = scalar_select %p3162, %s33, 1
          %s3164 = smul.addr %s3163, 8
          %s3165 = scalar_lea.vmem %s16, %s3164
        $region149: #{tpu_custom_call.1} parent=144 // pred_fallthru
          _
      $region145: #{tpu_custom_call.1} parent=5 // pred_fallthru
        _
    $region6: #{tpu_custom_call.1} parent=1 // loop_footer
      %s26 = sadd.s32 1, %s22
    $region7: #{tpu_custom_call.1} parent=1 // loop_footer_branch
      %21 = sbr.rel target = $region3
    $region8: #{tpu_custom_call.1} parent=1 // loop_exit
      _

</llo_original>
